<compile_context>
chip_gen: v6e
topology: v6e:2x2x1
jax: 0.10.0
libtpu: 0.0.40
codegen_flags: <defaults>
</compile_context>

<pallas_src>
import functools

import jax
import jax.numpy as jnp
from jax.experimental import pallas as pl
from jax.experimental.pallas import tpu as pltpu


# ----------------------------------------------------------------------------
# Fused kernel: depth->3D, re-projection, scatter/occlusion/gather (as one-hot
# matmuls), encoder conv, decoder MLP, white-background compositing.
# Per-batch tile layout: [C, K] with K = N*M flattened pixels on the lane axis.
# ----------------------------------------------------------------------------
def _fused_kernel(cam_ref, d_ref, p_ref, cond_d_ref, img_ref,
                  wlf_ref, w1_ref, w2_ref, out_ref, *, N, M):
    K = N * M
    b = pl.program_id(0)

    d_raw = d_ref[0]                  # (1, K)  negated & transposed depth
    p = p_ref[0]                      # (2, K)  pixel grid / M * 2
    cond_d = cond_d_ref[0]            # (1, K)  condition depth (N,M row-major)
    img = img_ref[0]                  # (3, K)  condition image (N,M row-major)
    wlf = wlf_ref[...]                # (Clf, 4) = [w_lf | b_lf]
    w1 = w1_ref[0]                    # (H, 3+Clf+1)  last col = b1 + wc @ cond
    w2 = w2_ref[...]                  # (3, H+1)      last col = b2

    inf_mask = jnp.abs(d_raw) == jnp.inf
    mask = jnp.logical_not(inf_mask).astype(jnp.float32)      # (1, K)
    d = jnp.where(inf_mask, 0.0, d_raw)                       # (1, K)
    ones = jnp.ones_like(d)

    u0 = p[0:1, :] * d
    u1 = p[1:2, :] * d

    # Prefolded affine maps read as scalars from SMEM, applied as FMA chains.
    def affine3x4(base):
        rows = []
        for r in range(3):
            a0 = cam_ref[b, base + 4 * r + 0]
            a1 = cam_ref[b, base + 4 * r + 1]
            a2 = cam_ref[b, base + 4 * r + 2]
            a3 = cam_ref[b, base + 4 * r + 3]
            rows.append(a0 * u0 + a1 * u1 + a2 * d + a3 * ones)
        return rows

    loc0, loc1, loc2 = affine3x4(0)        # loc3d rows        (each (1, K))
    pm0, pm1, pm2 = affine3x4(12)          # pixel mapping rows (each (1, K))

    # pixel mapping -> target indices in condition-image space (N,M row-major)
    c = pm2 * (1.0 / 112.0)
    c_safe = jnp.where(jnp.abs(c) < 1e-8, 1e-8, c)   # keep indices finite
    inv_c = 1.0 / c_safe                             # exact (feeds rounding)
    idx_h = jnp.clip(N - jnp.round(pm1 * inv_c), 0.0, float(N - 1))
    idx_w = jnp.clip(jnp.round(pm0 * inv_c), 0.0, float(M - 1))
    idx = (idx_h * M + idx_w).astype(jnp.int32)      # (1, K)

    # One-hot matrix P[j, k] = (j == idx[k]); used for scatter AND gather.
    row_iota = jax.lax.broadcasted_iota(jnp.int32, (K, K), 0)
    P = (row_iota == idx).astype(jnp.float32)        # (K, K)

    # Projection scatter of converted depth into condition-image space.
    # TODO(synk): duplicate indices sum here; torch in-place indexing is
    # last-write-wins (undefined order) for duplicates.
    vals = c * (2.0 * 112.0 / 137.0)                 # (1, K)
    converted = jax.lax.dot_general(
        vals, P, (((1,), (1,)), ((), ())),
        preferred_element_type=jnp.float32)          # (1, K) in target space

    occ = jnp.logical_and(jnp.abs(converted - cond_d) < 0.02,
                          converted != 0.0).astype(jnp.float32)   # (1, K)

    # Synthetic encoder: 1x1 conv as a VPU broadcast-FMA chain (contraction 3).
    lf = jnp.maximum(wlf[:, 0:1] * img[0:1, :]
                     + wlf[:, 1:2] * img[1:2, :]
                     + wlf[:, 2:3] * img[2:3, :]
                     + wlf[:, 3:4], 0.0)             # (Clf, K)
    lf = lf * occ                                    # filter_local_features
    lf_arr = jnp.dot(lf, P, preferred_element_type=jnp.float32)   # gather

    # Synthetic decoder MLP; conditioning folded into w1's last column.
    x_aug = jnp.concatenate([loc0, loc1, loc2, lf_arr, ones], axis=0)
    h = jnp.maximum(jnp.dot(w1, x_aug, preferred_element_type=jnp.float32), 0.0)
    h_aug = jnp.concatenate([h, ones], axis=0)
    rgb = jax.nn.sigmoid(jnp.dot(w2, h_aug, preferred_element_type=jnp.float32))

    # white background compositing (white_bg=True)
    out_ref[0] = mask * rgb + (1.0 - mask)


# ----------------------------------------------------------------------------
# Wrapper: tiny camera algebra, conditioning fold, and the single pallas_call.
# ----------------------------------------------------------------------------
def texture_network_forward(depth, cam_K, cam_W, geometry_points,
                            condition_image, condition_depth,
                            condition_cam_K, condition_cam_W, params):
    B, _, N, M = depth.shape
    K = N * M
    f32 = jnp.float32

    # --- depth / pixel grid flattening (same ordering as the torch code) ---
    depth_perm = -jnp.transpose(depth, (0, 1, 3, 2))          # B x 1 x M x N
    d_flat = depth_perm.reshape(B, 1, K).astype(f32)

    px, py = jnp.meshgrid(jnp.arange(N), jnp.arange(M), indexing="ij")
    p = jnp.stack([px, M - py], axis=0).astype(f32).reshape(1, 2, K) / M * 2.0

    # --- prefold camera algebra: loc3d = A @ [p0*d, p1*d, d, 1] -------------
    P2 = cam_K[:, :2, :2].astype(f32)
    invP = jnp.linalg.inv(P2)
    q = cam_K[:, 2, 2].astype(f32)
    bvec = cam_K[:, :2, 2:3].astype(f32)
    zero_one = jnp.broadcast_to(
        jnp.array([[[0.0, 0.0, 0.0, 1.0]]], f32), (B, 1, 4))
    W4 = jnp.concatenate([cam_W.astype(f32), zero_one], axis=1)
    invW = jnp.linalg.inv(W4)

    M4 = jnp.zeros((B, 4, 4), f32)
    M4 = M4.at[:, :2, :2].set(q[:, None, None] * invP)
    M4 = M4.at[:, :2, 2:3].set(-(invP @ bvec))
    M4 = M4.at[:, 2, 2].set(1.0)
    M4 = M4.at[:, 3, 3].set(1.0)
    A = (invW @ M4)[:, :3, :]                                  # (B, 3, 4)

    # pixel_mapping = cond_K @ [cond_W;0001] @ [loc3d;1] = Apm @ [p0*d,p1*d,d,1]
    cond_W4 = jnp.concatenate([condition_cam_W.astype(f32), zero_one], axis=1)
    mproj = condition_cam_K.astype(f32) @ cond_W4              # (B, 3, 4)
    Apm = mproj[:, :, :3] @ A
    Apm = Apm.at[:, :, 3].add(mproj[:, :, 3])                  # (B, 3, 4)

    cam_sm = jnp.concatenate([A.reshape(B, 12), Apm.reshape(B, 12)], axis=-1)

    # --- conditioning (geometry + global feature) folded into decoder bias ---
    # TODO(synk): real mesh2tex encoder/geometry_encoder/decoder are injected
    # modules; synthetic stand-ins are used here.
    geom = jnp.tanh(jnp.mean(geometry_points, axis=1) @ params["w_geo"].T
                    + params["b_geo"])                         # (B, Cgeo)
    img_flat = condition_image.reshape(B, 3, K).astype(f32)
    gf = jnp.tanh(jnp.mean(img_flat, axis=2) @ params["w_gf"].T
                  + params["b_gf"][:, 0])                      # (B, Cgf)
    cond = jnp.concatenate([gf, geom], axis=-1)                # (B, Cc)
    b1_eff = params["b1"][None, :, 0] + cond @ params["wc"].T  # (B, H)

    W1 = jnp.concatenate([params["w1_loc"], params["w1_lf"]], axis=1)  # (H,3+Clf)
    H, Cin = W1.shape
    w1_aug = jnp.concatenate(
        [jnp.broadcast_to(W1[None], (B, H, Cin)), b1_eff[:, :, None]], axis=2)
    w2_aug = jnp.concatenate([params["w2"], params["b2"]], axis=1)     # (3, H+1)
    wlf_aug = jnp.concatenate([params["w_lf"], params["b_lf"]], axis=1)  # (Clf,4)
    Clf = wlf_aug.shape[0]

    cond_d_flat = condition_depth.reshape(B, 1, K).astype(f32)

    out_flat = pl.pallas_call(
        functools.partial(_fused_kernel, N=N, M=M),
        out_shape=jax.ShapeDtypeStruct((B, 3, K), f32),
        grid=(B,),
        in_specs=[
            pl.BlockSpec(memory_space=pltpu.MemorySpace.SMEM),        # cam_sm
            pl.BlockSpec((1, 1, K), lambda b: (b, 0, 0)),             # d_flat
            pl.BlockSpec((1, 2, K), lambda b: (0, 0, 0)),             # pixel grid
            pl.BlockSpec((1, 1, K), lambda b: (b, 0, 0)),             # cond depth
            pl.BlockSpec((1, 3, K), lambda b: (b, 0, 0)),             # cond image
            pl.BlockSpec((Clf, 4), lambda b: (0, 0)),                 # wlf_aug
            pl.BlockSpec((1, H, Cin + 1), lambda b: (b, 0, 0)),       # w1_aug
            pl.BlockSpec((3, H + 1), lambda b: (0, 0)),               # w2_aug
        ],
        out_specs=pl.BlockSpec((1, 3, K), lambda b: (b, 0, 0)),
        compiler_params=pltpu.CompilerParams(
            dimension_semantics=("parallel",)),
    )(cam_sm, d_flat, p, cond_d_flat, img_flat, wlf_aug, w1_aug, w2_aug)

    # (mask*x).permute(0,1,3,2) + (1 - mask.permute(0,1,3,2)) * ones
    img = jnp.transpose(out_flat.reshape(B, 3, N, M), (0, 1, 3, 2))
    return img


def init_params(key, Clf=8, Cgf=16, Cgeo=16, H=32):
    ks = jax.random.split(key, 11)
    s = 0.1
    return {
        "w_lf": s * jax.random.normal(ks[0], (Clf, 3), jnp.float32),
        "b_lf": s * jax.random.normal(ks[1], (Clf, 1), jnp.float32),
        "w_gf": s * jax.random.normal(ks[2], (Cgf, 3), jnp.float32),
        "b_gf": s * jax.random.normal(ks[3], (Cgf, 1), jnp.float32),
        "w_geo": s * jax.random.normal(ks[4], (Cgeo, 3), jnp.float32),
        "b_geo": s * jax.random.normal(ks[5], (Cgeo,), jnp.float32),
        "w1_loc": s * jax.random.normal(ks[6], (H, 3), jnp.float32),
        "w1_lf": s * jax.random.normal(ks[7], (H, Clf), jnp.float32),
        "b1": s * jax.random.normal(ks[8], (H, 1), jnp.float32),
        "wc": s * jax.random.normal(ks[9], (H, Cgf + Cgeo), jnp.float32),
        "w2": s * jax.random.normal(ks[10], (3, H), jnp.float32),
        "b2": jnp.zeros((3, 1), jnp.float32),
    }


if __name__ == "__main__":
    key = jax.random.PRNGKey(0)
    k_depth, k_img, k_cdepth, k_pts, k_noise, k_param = jax.random.split(key, 6)

    B, N, M = 2, 16, 16
    depth = 1.0 + jax.random.uniform(k_depth, (B, 1, N, M), jnp.float32)
    depth = depth.at[:, :, :2, :2].set(jnp.inf)        # background (masked) pixels
    condition_image = jax.random.uniform(k_img, (B, 3, N, M), jnp.float32)
    condition_depth = 1.0 + jax.random.uniform(k_cdepth, (B, 1, N, M), jnp.float32)
    geometry_points = jax.random.normal(k_pts, (B, 32, 3), jnp.float32)

    def make_cams(noise_key, tz):
        nK, nW = jax.random.split(noise_key)
        base_K = jnp.array([[2.0, 0.0, 0.5, 0.0],
                            [0.0, 2.0, 0.5, 0.0],
                            [0.0, 0.0, 1.0, 0.0]], jnp.float32)
        base_W = jnp.array([[1.0, 0.0, 0.0, 0.1],
                            [0.0, 1.0, 0.0, 0.2],
                            [0.0, 0.0, 1.0, tz]], jnp.float32)
        cam_K = base_K[None] + 0.01 * jax.random.normal(nK, (B, 3, 4), jnp.float32)
        cam_W = base_W[None] + 0.01 * jax.random.normal(nW, (B, 3, 4), jnp.float32)
        return cam_K, cam_W

    kc1, kc2 = jax.random.split(k_noise)
    cam_K, cam_W = make_cams(kc1, 2.0)
    condition_cam_K, condition_cam_W = make_cams(kc2, 6.0)

    params = init_params(k_param)

    fwd = jax.jit(lambda *a: texture_network_forward(*a, params=params))
    img = fwd(depth, cam_K, cam_W, geometry_points, condition_image,
              condition_depth, condition_cam_K, condition_cam_W)
    jax.block_until_ready(img)

    assert img.shape == (B, 3, M, N), img.shape
    assert bool(jnp.all(jnp.isfinite(img)))
    print("KERNEL_OK")
</pallas_src>

<mosaic_0001>
module attributes {stable_mosaic.version = 11 : i64} {
  func.func @_fused_kernel(%arg0: i32, %arg1: memref<2x24xf32, #tpu.memory_space<smem>>, %arg2: memref<1x1x256xf32, #tpu.memory_space<vmem>>, %arg3: memref<1x2x256xf32, #tpu.memory_space<vmem>>, %arg4: memref<1x1x256xf32, #tpu.memory_space<vmem>>, %arg5: memref<1x3x256xf32, #tpu.memory_space<vmem>>, %arg6: memref<8x4xf32, #tpu.memory_space<vmem>>, %arg7: memref<1x32x12xf32, #tpu.memory_space<vmem>>, %arg8: memref<3x33xf32, #tpu.memory_space<vmem>>, %arg9: memref<1x3x256xf32, #tpu.memory_space<vmem>>) attributes {dimension_semantics = [#tpu.dimension_semantics<parallel>], iteration_bounds = array<i64: 2>, scalar_prefetch = 0 : i64, scratch_operands = 0 : i64, tpu.core_type = #tpu.core_type<tc>, window_params = [{transform_indices = @transform_0, window_bounds = array<i64: 2, 24>}, {transform_indices = @transform_1, window_bounds = array<i64: 1, 1, 256>}, {pipeline_mode = #tpu.pipeline_mode<synchronous>, transform_indices = @transform_2, window_bounds = array<i64: 1, 2, 256>}, {transform_indices = @transform_3, window_bounds = array<i64: 1, 1, 256>}, {transform_indices = @transform_4, window_bounds = array<i64: 1, 3, 256>}, {pipeline_mode = #tpu.pipeline_mode<synchronous>, transform_indices = @transform_5, window_bounds = array<i64: 8, 4>}, {transform_indices = @transform_6, window_bounds = array<i64: 1, 32, 12>}, {pipeline_mode = #tpu.pipeline_mode<synchronous>, transform_indices = @transform_7, window_bounds = array<i64: 3, 33>}, {transform_indices = @transform_8, window_bounds = array<i64: 1, 3, 256>}]} {
    %c0 = arith.constant 0 : index
    %c0_0 = arith.constant 0 : index
    %c0_1 = arith.constant 0 : index
    %0 = vector.load %arg2[%c0, %c0_0, %c0_1] : memref<1x1x256xf32, #tpu.memory_space<vmem>>, vector<1x1x256xf32>
    %1 = vector.shape_cast %0 : vector<1x1x256xf32> to vector<1x256xf32>
    %c0_2 = arith.constant 0 : index
    %c0_3 = arith.constant 0 : index
    %c0_4 = arith.constant 0 : index
    %2 = vector.load %arg3[%c0_2, %c0_3, %c0_4] : memref<1x2x256xf32, #tpu.memory_space<vmem>>, vector<1x2x256xf32>
    %3 = vector.shape_cast %2 : vector<1x2x256xf32> to vector<2x256xf32>
    %c0_5 = arith.constant 0 : index
    %c0_6 = arith.constant 0 : index
    %c0_7 = arith.constant 0 : index
    %4 = vector.load %arg4[%c0_5, %c0_6, %c0_7] : memref<1x1x256xf32, #tpu.memory_space<vmem>>, vector<1x1x256xf32>
    %5 = vector.shape_cast %4 : vector<1x1x256xf32> to vector<1x256xf32>
    %c0_8 = arith.constant 0 : index
    %c0_9 = arith.constant 0 : index
    %c0_10 = arith.constant 0 : index
    %6 = vector.load %arg5[%c0_8, %c0_9, %c0_10] : memref<1x3x256xf32, #tpu.memory_space<vmem>>, vector<1x3x256xf32>
    %7 = vector.shape_cast %6 : vector<1x3x256xf32> to vector<3x256xf32>
    %c0_11 = arith.constant 0 : index
    %c0_12 = arith.constant 0 : index
    %8 = vector.load %arg6[%c0_11, %c0_12] : memref<8x4xf32, #tpu.memory_space<vmem>>, vector<8x4xf32>
    %c0_13 = arith.constant 0 : index
    %c0_14 = arith.constant 0 : index
    %c0_15 = arith.constant 0 : index
    %9 = vector.load %arg7[%c0_13, %c0_14, %c0_15] : memref<1x32x12xf32, #tpu.memory_space<vmem>>, vector<1x32x12xf32>
    %10 = vector.shape_cast %9 : vector<1x32x12xf32> to vector<32x12xf32>
    %c0_16 = arith.constant 0 : index
    %c0_17 = arith.constant 0 : index
    %11 = vector.load %arg8[%c0_16, %c0_17] : memref<3x33xf32, #tpu.memory_space<vmem>>, vector<3x33xf32>
    %12 = math.absf %1 : vector<1x256xf32>
    %cst = arith.constant 0x7F800000 : f32
    %13 = vector.broadcast %cst : f32 to vector<1x256xf32>
    %14 = arith.cmpf oeq, %12, %13 : vector<1x256xf32>
    %cst_18 = arith.constant dense<true> : vector<1x256xi1>
    %15 = arith.xori %14, %cst_18 : vector<1x256xi1>
    %16 = arith.extui %15 : vector<1x256xi1> to vector<1x256xi32>
    %17 = arith.sitofp %16 : vector<1x256xi32> to vector<1x256xf32>
    %cst_19 = arith.constant 0.000000e+00 : f32
    %18 = vector.broadcast %cst_19 : f32 to vector<1x256xf32>
    %19 = arith.select %14, %18, %1 : vector<1x256xi1>, vector<1x256xf32>
    %cst_20 = arith.constant 1.000000e+00 : f32
    %20 = vector.broadcast %cst_20 : f32 to vector<1x256xf32>
    %21 = vector.extract_strided_slice %3 {offsets = [0, 0], sizes = [1, 256], strides = [1, 1]} : vector<2x256xf32> to vector<1x256xf32>
    %22 = arith.mulf %21, %19 : vector<1x256xf32>
    %23 = vector.extract_strided_slice %3 {offsets = [1, 0], sizes = [1, 256], strides = [1, 1]} : vector<2x256xf32> to vector<1x256xf32>
    %24 = arith.mulf %23, %19 : vector<1x256xf32>
    %25 = arith.index_cast %arg0 : i32 to index
    %c0_21 = arith.constant 0 : index
    %26 = memref.load %arg1[%25, %c0_21] : memref<2x24xf32, #tpu.memory_space<smem>>
    %27 = arith.index_cast %arg0 : i32 to index
    %c1 = arith.constant 1 : index
    %28 = memref.load %arg1[%27, %c1] : memref<2x24xf32, #tpu.memory_space<smem>>
    %29 = arith.index_cast %arg0 : i32 to index
    %c2 = arith.constant 2 : index
    %30 = memref.load %arg1[%29, %c2] : memref<2x24xf32, #tpu.memory_space<smem>>
    %31 = arith.index_cast %arg0 : i32 to index
    %c3 = arith.constant 3 : index
    %32 = memref.load %arg1[%31, %c3] : memref<2x24xf32, #tpu.memory_space<smem>>
    %33 = vector.broadcast %26 : f32 to vector<1x256xf32>
    %34 = arith.mulf %33, %22 : vector<1x256xf32>
    %35 = vector.broadcast %28 : f32 to vector<1x256xf32>
    %36 = arith.mulf %35, %24 : vector<1x256xf32>
    %37 = arith.addf %34, %36 : vector<1x256xf32>
    %38 = vector.broadcast %30 : f32 to vector<1x256xf32>
    %39 = arith.mulf %38, %19 : vector<1x256xf32>
    %40 = arith.addf %37, %39 : vector<1x256xf32>
    %41 = vector.broadcast %32 : f32 to vector<1x256xf32>
    %42 = arith.mulf %41, %20 : vector<1x256xf32>
    %43 = arith.addf %40, %42 : vector<1x256xf32>
    %44 = arith.index_cast %arg0 : i32 to index
    %c4 = arith.constant 4 : index
    %45 = memref.load %arg1[%44, %c4] : memref<2x24xf32, #tpu.memory_space<smem>>
    %46 = arith.index_cast %arg0 : i32 to index
    %c5 = arith.constant 5 : index
    %47 = memref.load %arg1[%46, %c5] : memref<2x24xf32, #tpu.memory_space<smem>>
    %48 = arith.index_cast %arg0 : i32 to index
    %c6 = arith.constant 6 : index
    %49 = memref.load %arg1[%48, %c6] : memref<2x24xf32, #tpu.memory_space<smem>>
    %50 = arith.index_cast %arg0 : i32 to index
    %c7 = arith.constant 7 : index
    %51 = memref.load %arg1[%50, %c7] : memref<2x24xf32, #tpu.memory_space<smem>>
    %52 = vector.broadcast %45 : f32 to vector<1x256xf32>
    %53 = arith.mulf %52, %22 : vector<1x256xf32>
    %54 = vector.broadcast %47 : f32 to vector<1x256xf32>
    %55 = arith.mulf %54, %24 : vector<1x256xf32>
    %56 = arith.addf %53, %55 : vector<1x256xf32>
    %57 = vector.broadcast %49 : f32 to vector<1x256xf32>
    %58 = arith.mulf %57, %19 : vector<1x256xf32>
    %59 = arith.addf %56, %58 : vector<1x256xf32>
    %60 = vector.broadcast %51 : f32 to vector<1x256xf32>
    %61 = arith.mulf %60, %20 : vector<1x256xf32>
    %62 = arith.addf %59, %61 : vector<1x256xf32>
    %63 = arith.index_cast %arg0 : i32 to index
    %c8 = arith.constant 8 : index
    %64 = memref.load %arg1[%63, %c8] : memref<2x24xf32, #tpu.memory_space<smem>>
    %65 = arith.index_cast %arg0 : i32 to index
    %c9 = arith.constant 9 : index
    %66 = memref.load %arg1[%65, %c9] : memref<2x24xf32, #tpu.memory_space<smem>>
    %67 = arith.index_cast %arg0 : i32 to index
    %c10 = arith.constant 10 : index
    %68 = memref.load %arg1[%67, %c10] : memref<2x24xf32, #tpu.memory_space<smem>>
    %69 = arith.index_cast %arg0 : i32 to index
    %c11 = arith.constant 11 : index
    %70 = memref.load %arg1[%69, %c11] : memref<2x24xf32, #tpu.memory_space<smem>>
    %71 = vector.broadcast %64 : f32 to vector<1x256xf32>
    %72 = arith.mulf %71, %22 : vector<1x256xf32>
    %73 = vector.broadcast %66 : f32 to vector<1x256xf32>
    %74 = arith.mulf %73, %24 : vector<1x256xf32>
    %75 = arith.addf %72, %74 : vector<1x256xf32>
    %76 = vector.broadcast %68 : f32 to vector<1x256xf32>
    %77 = arith.mulf %76, %19 : vector<1x256xf32>
    %78 = arith.addf %75, %77 : vector<1x256xf32>
    %79 = vector.broadcast %70 : f32 to vector<1x256xf32>
    %80 = arith.mulf %79, %20 : vector<1x256xf32>
    %81 = arith.addf %78, %80 : vector<1x256xf32>
    %82 = arith.index_cast %arg0 : i32 to index
    %c12 = arith.constant 12 : index
    %83 = memref.load %arg1[%82, %c12] : memref<2x24xf32, #tpu.memory_space<smem>>
    %84 = arith.index_cast %arg0 : i32 to index
    %c13 = arith.constant 13 : index
    %85 = memref.load %arg1[%84, %c13] : memref<2x24xf32, #tpu.memory_space<smem>>
    %86 = arith.index_cast %arg0 : i32 to index
    %c14 = arith.constant 14 : index
    %87 = memref.load %arg1[%86, %c14] : memref<2x24xf32, #tpu.memory_space<smem>>
    %88 = arith.index_cast %arg0 : i32 to index
    %c15 = arith.constant 15 : index
    %89 = memref.load %arg1[%88, %c15] : memref<2x24xf32, #tpu.memory_space<smem>>
    %90 = vector.broadcast %83 : f32 to vector<1x256xf32>
    %91 = arith.mulf %90, %22 : vector<1x256xf32>
    %92 = vector.broadcast %85 : f32 to vector<1x256xf32>
    %93 = arith.mulf %92, %24 : vector<1x256xf32>
    %94 = arith.addf %91, %93 : vector<1x256xf32>
    %95 = vector.broadcast %87 : f32 to vector<1x256xf32>
    %96 = arith.mulf %95, %19 : vector<1x256xf32>
    %97 = arith.addf %94, %96 : vector<1x256xf32>
    %98 = vector.broadcast %89 : f32 to vector<1x256xf32>
    %99 = arith.mulf %98, %20 : vector<1x256xf32>
    %100 = arith.addf %97, %99 : vector<1x256xf32>
    %101 = arith.index_cast %arg0 : i32 to index
    %c16 = arith.constant 16 : index
    %102 = memref.load %arg1[%101, %c16] : memref<2x24xf32, #tpu.memory_space<smem>>
    %103 = arith.index_cast %arg0 : i32 to index
    %c17 = arith.constant 17 : index
    %104 = memref.load %arg1[%103, %c17] : memref<2x24xf32, #tpu.memory_space<smem>>
    %105 = arith.index_cast %arg0 : i32 to index
    %c18 = arith.constant 18 : index
    %106 = memref.load %arg1[%105, %c18] : memref<2x24xf32, #tpu.memory_space<smem>>
    %107 = arith.index_cast %arg0 : i32 to index
    %c19 = arith.constant 19 : index
    %108 = memref.load %arg1[%107, %c19] : memref<2x24xf32, #tpu.memory_space<smem>>
    %109 = vector.broadcast %102 : f32 to vector<1x256xf32>
    %110 = arith.mulf %109, %22 : vector<1x256xf32>
    %111 = vector.broadcast %104 : f32 to vector<1x256xf32>
    %112 = arith.mulf %111, %24 : vector<1x256xf32>
    %113 = arith.addf %110, %112 : vector<1x256xf32>
    %114 = vector.broadcast %106 : f32 to vector<1x256xf32>
    %115 = arith.mulf %114, %19 : vector<1x256xf32>
    %116 = arith.addf %113, %115 : vector<1x256xf32>
    %117 = vector.broadcast %108 : f32 to vector<1x256xf32>
    %118 = arith.mulf %117, %20 : vector<1x256xf32>
    %119 = arith.addf %116, %118 : vector<1x256xf32>
    %120 = arith.index_cast %arg0 : i32 to index
    %c20 = arith.constant 20 : index
    %121 = memref.load %arg1[%120, %c20] : memref<2x24xf32, #tpu.memory_space<smem>>
    %122 = arith.index_cast %arg0 : i32 to index
    %c21 = arith.constant 21 : index
    %123 = memref.load %arg1[%122, %c21] : memref<2x24xf32, #tpu.memory_space<smem>>
    %124 = arith.index_cast %arg0 : i32 to index
    %c22 = arith.constant 22 : index
    %125 = memref.load %arg1[%124, %c22] : memref<2x24xf32, #tpu.memory_space<smem>>
    %126 = arith.index_cast %arg0 : i32 to index
    %c23 = arith.constant 23 : index
    %127 = memref.load %arg1[%126, %c23] : memref<2x24xf32, #tpu.memory_space<smem>>
    %128 = vector.broadcast %121 : f32 to vector<1x256xf32>
    %129 = arith.mulf %128, %22 : vector<1x256xf32>
    %130 = vector.broadcast %123 : f32 to vector<1x256xf32>
    %131 = arith.mulf %130, %24 : vector<1x256xf32>
    %132 = arith.addf %129, %131 : vector<1x256xf32>
    %133 = vector.broadcast %125 : f32 to vector<1x256xf32>
    %134 = arith.mulf %133, %19 : vector<1x256xf32>
    %135 = arith.addf %132, %134 : vector<1x256xf32>
    %136 = vector.broadcast %127 : f32 to vector<1x256xf32>
    %137 = arith.mulf %136, %20 : vector<1x256xf32>
    %138 = arith.addf %135, %137 : vector<1x256xf32>
    %cst_22 = arith.constant 0.00892857183 : f32
    %139 = vector.broadcast %cst_22 : f32 to vector<1x256xf32>
    %140 = arith.mulf %138, %139 : vector<1x256xf32>
    %141 = math.absf %140 : vector<1x256xf32>
    %cst_23 = arith.constant 9.99999993E-9 : f32
    %142 = vector.broadcast %cst_23 : f32 to vector<1x256xf32>
    %143 = arith.cmpf olt, %141, %142 : vector<1x256xf32>
    %cst_24 = arith.constant 9.99999993E-9 : f32
    %144 = vector.broadcast %cst_24 : f32 to vector<1x256xf32>
    %145 = arith.select %143, %144, %140 : vector<1x256xi1>, vector<1x256xf32>
    %cst_25 = arith.constant 1.000000e+00 : f32
    %146 = vector.broadcast %cst_25 : f32 to vector<1x256xf32>
    %147 = arith.divf %146, %145 : vector<1x256xf32>
    %148 = arith.mulf %119, %147 : vector<1x256xf32>
    %149 = math.roundeven %148 : vector<1x256xf32>
    %cst_26 = arith.constant 1.600000e+01 : f32
    %150 = vector.broadcast %cst_26 : f32 to vector<1x256xf32>
    %151 = arith.subf %150, %149 : vector<1x256xf32>
    %cst_27 = arith.constant 0.000000e+00 : f32
    %cst_28 = arith.constant 1.500000e+01 : f32
    %152 = vector.broadcast %cst_27 : f32 to vector<1x256xf32>
    %153 = arith.maximumf %152, %151 : vector<1x256xf32>
    %154 = vector.broadcast %cst_28 : f32 to vector<1x256xf32>
    %155 = arith.minimumf %154, %153 : vector<1x256xf32>
    %156 = arith.mulf %100, %147 : vector<1x256xf32>
    %157 = math.roundeven %156 : vector<1x256xf32>
    %cst_29 = arith.constant 0.000000e+00 : f32
    %cst_30 = arith.constant 1.500000e+01 : f32
    %158 = vector.broadcast %cst_29 : f32 to vector<1x256xf32>
    %159 = arith.maximumf %158, %157 : vector<1x256xf32>
    %160 = vector.broadcast %cst_30 : f32 to vector<1x256xf32>
    %161 = arith.minimumf %160, %159 : vector<1x256xf32>
    %cst_31 = arith.constant 1.600000e+01 : f32
    %162 = vector.broadcast %cst_31 : f32 to vector<1x256xf32>
    %163 = arith.mulf %155, %162 : vector<1x256xf32>
    %164 = arith.addf %163, %161 : vector<1x256xf32>
    %165 = arith.fptosi %164 : vector<1x256xf32> to vector<1x256xi32>
    %166 = tpu.iota {dimensions = array<i32: 0>} : vector<256x256xi32>
    %167 = vector.broadcast %165 : vector<1x256xi32> to vector<256x256xi32>
    %168 = arith.cmpi eq, %166, %167 : vector<256x256xi32>
    %169 = arith.extui %168 : vector<256x256xi1> to vector<256x256xi32>
    %170 = arith.sitofp %169 : vector<256x256xi32> to vector<256x256xf32>
    %cst_32 = arith.constant 1.63503647 : f32
    %171 = vector.broadcast %cst_32 : f32 to vector<1x256xf32>
    %172 = arith.mulf %140, %171 : vector<1x256xf32>
    %cst_33 = arith.constant dense<0.000000e+00> : vector<1x256xf32>
    %173 = tpu.matmul %172, %170, %cst_33 {dimension_numbers = #tpu.dot_dimension_numbers<[1], [1], [0], [0], [0, 0, 1, 0], [], []>} : vector<1x256xf32>, vector<256x256xf32>, vector<1x256xf32> -> vector<1x256xf32>
    %174 = arith.subf %173, %5 : vector<1x256xf32>
    %175 = math.absf %174 : vector<1x256xf32>
    %cst_34 = arith.constant 2.000000e-02 : f32
    %176 = vector.broadcast %cst_34 : f32 to vector<1x256xf32>
    %177 = arith.cmpf olt, %175, %176 : vector<1x256xf32>
    %cst_35 = arith.constant 0.000000e+00 : f32
    %178 = vector.broadcast %cst_35 : f32 to vector<1x256xf32>
    %179 = arith.cmpf one, %173, %178 : vector<1x256xf32>
    %180 = arith.andi %177, %179 : vector<1x256xi1>
    %181 = arith.extui %180 : vector<1x256xi1> to vector<1x256xi32>
    %182 = arith.sitofp %181 : vector<1x256xi32> to vector<1x256xf32>
    %183 = vector.extract_strided_slice %8 {offsets = [0, 0], sizes = [8, 1], strides = [1, 1]} : vector<8x4xf32> to vector<8x1xf32>
    %184 = vector.extract_strided_slice %7 {offsets = [0, 0], sizes = [1, 256], strides = [1, 1]} : vector<3x256xf32> to vector<1x256xf32>
    %185 = vector.broadcast %183 : vector<8x1xf32> to vector<8x256xf32>
    %186 = vector.broadcast %184 : vector<1x256xf32> to vector<8x256xf32>
    %187 = arith.mulf %185, %186 : vector<8x256xf32>
    %188 = vector.extract_strided_slice %8 {offsets = [0, 1], sizes = [8, 1], strides = [1, 1]} : vector<8x4xf32> to vector<8x1xf32>
    %189 = vector.extract_strided_slice %7 {offsets = [1, 0], sizes = [1, 256], strides = [1, 1]} : vector<3x256xf32> to vector<1x256xf32>
    %190 = vector.broadcast %188 : vector<8x1xf32> to vector<8x256xf32>
    %191 = vector.broadcast %189 : vector<1x256xf32> to vector<8x256xf32>
    %192 = arith.mulf %190, %191 : vector<8x256xf32>
    %193 = arith.addf %187, %192 : vector<8x256xf32>
    %194 = vector.extract_strided_slice %8 {offsets = [0, 2], sizes = [8, 1], strides = [1, 1]} : vector<8x4xf32> to vector<8x1xf32>
    %195 = vector.extract_strided_slice %7 {offsets = [2, 0], sizes = [1, 256], strides = [1, 1]} : vector<3x256xf32> to vector<1x256xf32>
    %196 = vector.broadcast %194 : vector<8x1xf32> to vector<8x256xf32>
    %197 = vector.broadcast %195 : vector<1x256xf32> to vector<8x256xf32>
    %198 = arith.mulf %196, %197 : vector<8x256xf32>
    %199 = arith.addf %193, %198 : vector<8x256xf32>
    %200 = vector.extract_strided_slice %8 {offsets = [0, 3], sizes = [8, 1], strides = [1, 1]} : vector<8x4xf32> to vector<8x1xf32>
    %201 = vector.broadcast %200 : vector<8x1xf32> to vector<8x256xf32>
    %202 = arith.addf %199, %201 : vector<8x256xf32>
    %cst_36 = arith.constant 0.000000e+00 : f32
    %203 = vector.broadcast %cst_36 : f32 to vector<8x256xf32>
    %204 = arith.maximumf %202, %203 : vector<8x256xf32>
    %205 = vector.broadcast %182 : vector<1x256xf32> to vector<8x256xf32>
    %206 = arith.mulf %204, %205 : vector<8x256xf32>
    %cst_37 = arith.constant dense<0.000000e+00> : vector<8x256xf32>
    %207 = tpu.matmul %206, %170, %cst_37 {dimension_numbers = #tpu.dot_dimension_numbers<[1], [0], [0], [1], [0, 0, 1, 1], [], []>} : vector<8x256xf32>, vector<256x256xf32>, vector<8x256xf32> -> vector<8x256xf32>
    %208 = tpu.concatenate %43, %62, %81, %207, %20 in 0 : vector<1x256xf32>, vector<1x256xf32>, vector<1x256xf32>, vector<8x256xf32>, vector<1x256xf32> -> vector<12x256xf32>
    %cst_38 = arith.constant dense<0.000000e+00> : vector<32x256xf32>
    %209 = tpu.matmul %10, %208, %cst_38 {dimension_numbers = #tpu.dot_dimension_numbers<[1], [0], [0], [1], [0, 0, 1, 1], [], []>} : vector<32x12xf32>, vector<12x256xf32>, vector<32x256xf32> -> vector<32x256xf32>
    %cst_39 = arith.constant 0.000000e+00 : f32
    %210 = vector.broadcast %cst_39 : f32 to vector<32x256xf32>
    %211 = arith.maximumf %209, %210 : vector<32x256xf32>
    %212 = tpu.concatenate %211, %20 in 0 : vector<32x256xf32>, vector<1x256xf32> -> vector<33x256xf32>
    %cst_40 = arith.constant dense<0.000000e+00> : vector<3x256xf32>
    %213 = tpu.matmul %11, %212, %cst_40 {dimension_numbers = #tpu.dot_dimension_numbers<[1], [0], [0], [1], [0, 0, 1, 1], [], []>} : vector<3x33xf32>, vector<33x256xf32>, vector<3x256xf32> -> vector<3x256xf32>
    %214 = arith.negf %213 : vector<3x256xf32>
    %215 = math.exp %214 : vector<3x256xf32>
    %cst_41 = arith.constant 1.000000e+00 : f32
    %216 = vector.broadcast %cst_41 : f32 to vector<3x256xf32>
    %217 = arith.addf %216, %215 : vector<3x256xf32>
    %218 = arith.divf %216, %217 : vector<3x256xf32>
    %219 = vector.broadcast %17 : vector<1x256xf32> to vector<3x256xf32>
    %220 = arith.mulf %219, %218 : vector<3x256xf32>
    %cst_42 = arith.constant 1.000000e+00 : f32
    %221 = vector.broadcast %cst_42 : f32 to vector<1x256xf32>
    %222 = arith.subf %221, %17 : vector<1x256xf32>
    %223 = vector.broadcast %222 : vector<1x256xf32> to vector<3x256xf32>
    %224 = arith.addf %220, %223 : vector<3x256xf32>
    %c0_43 = arith.constant 0 : index
    %c0_44 = arith.constant 0 : index
    %c0_45 = arith.constant 0 : index
    %225 = vector.load %arg9[%c0_43, %c0_44, %c0_45] : memref<1x3x256xf32, #tpu.memory_space<vmem>>, vector<1x3x256xf32>
    %226 = vector.shape_cast %225 : vector<1x3x256xf32> to vector<3x256xf32>
    %227 = vector.shape_cast %224 : vector<3x256xf32> to vector<1x3x256xf32>
    tpu.vector_store %arg9[%c0_43, %c0_44, %c0_45], %227 {strides = array<i32>} : memref<1x3x256xf32, #tpu.memory_space<vmem>>, vector<1x3x256xf32>,
    return
  }
  func.func @transform_0(%arg0: i32) -> (i32, i32) {
    %c0_i32 = arith.constant 0 : i32
    %c0_i32_0 = arith.constant 0 : i32
    %c0_i32_1 = arith.constant 0 : i32
    return %c0_i32, %c0_i32_0 : i32, i32
  }
  func.func @transform_1(%arg0: i32) -> (i32, i32, i32) {
    %c0_i32 = arith.constant 0 : i32
    %c0_i32_0 = arith.constant 0 : i32
    %c0_i32_1 = arith.constant 0 : i32
    return %arg0, %c0_i32, %c0_i32_0 : i32, i32, i32
  }
  func.func @transform_2(%arg0: i32) -> (i32, i32, i32) {
    %c0_i32 = arith.constant 0 : i32
    %c0_i32_0 = arith.constant 0 : i32
    %c0_i32_1 = arith.constant 0 : i32
    %c0_i32_2 = arith.constant 0 : i32
    return %c0_i32, %c0_i32_0, %c0_i32_1 : i32, i32, i32
  }
  func.func @transform_3(%arg0: i32) -> (i32, i32, i32) {
    %c0_i32 = arith.constant 0 : i32
    %c0_i32_0 = arith.constant 0 : i32
    %c0_i32_1 = arith.constant 0 : i32
    return %arg0, %c0_i32, %c0_i32_0 : i32, i32, i32
  }
  func.func @transform_4(%arg0: i32) -> (i32, i32, i32) {
    %c0_i32 = arith.constant 0 : i32
    %c0_i32_0 = arith.constant 0 : i32
    %c0_i32_1 = arith.constant 0 : i32
    return %arg0, %c0_i32, %c0_i32_0 : i32, i32, i32
  }
  func.func @transform_5(%arg0: i32) -> (i32, i32) {
    %c0_i32 = arith.constant 0 : i32
    %c0_i32_0 = arith.constant 0 : i32
    %c0_i32_1 = arith.constant 0 : i32
    return %c0_i32, %c0_i32_0 : i32, i32
  }
  func.func @transform_6(%arg0: i32) -> (i32, i32, i32) {
    %c0_i32 = arith.constant 0 : i32
    %c0_i32_0 = arith.constant 0 : i32
    %c0_i32_1 = arith.constant 0 : i32
    return %arg0, %c0_i32, %c0_i32_0 : i32, i32, i32
  }
  func.func @transform_7(%arg0: i32) -> (i32, i32) {
    %c0_i32 = arith.constant 0 : i32
    %c0_i32_0 = arith.constant 0 : i32
    %c0_i32_1 = arith.constant 0 : i32
    return %c0_i32, %c0_i32_0 : i32, i32
  }
  func.func @transform_8(%arg0: i32) -> (i32, i32, i32) {
    %c0_i32 = arith.constant 0 : i32
    %c0_i32_0 = arith.constant 0 : i32
    %c0_i32_1 = arith.constant 0 : i32
    return %arg0, %c0_i32, %c0_i32_0 : i32, i32, i32
  }
}

</mosaic_0001>

<llo_original>
// kernel: custom-call.25
$region0: #{custom-call.25}
  %s0 = inlined_call_operand.vmem [shape: f32[2,2,2], index: 0, kind: input, shape index: {}]
  %s1 = inlined_call_operand.vmem [shape: f32[2,2,2], index: 1, kind: output, shape index: {0}]
  %s2 = inlined_call_operand.hbm [shape: s32[2,2], index: 2, kind: output, shape index: {1}]
  %s3 = inlined_call_operand.vmem [shape: s32[2,2], index: 3, kind: output, shape index: {2}]
  %4 = xla_tuple %s1, %s2, %s3
  $region1: #{custom-call.25} parent=0
    #allocation0 [shape = 'u8[4096]{0}', space=vmem, size = 0x1000, scoped, tag = 'operand span for operand 0']
    #allocation1 [shape = 'u8[2048]{0}', space=vmem, size = 0x800, scoped, tag = 'packed  for operand 0']
    #allocation2 [shape = 'u8[4096]{0}', space=vmem, size = 0x1000, scoped, tag = 'operand span for operand 1']
    #allocation3 [shape = 'u8[2048]{0}', space=vmem, size = 0x800, scoped, tag = 'packed  for operand 1']
    #allocation4 [shape = 'u8[4096]{0}', space=vmem, size = 0x1000, scoped, tag = 'operand span for operand 2']
    #allocation5 [shape = 'u8[2048]{0}', space=vmem, size = 0x800, scoped, tag = 'packed  for operand 2']
    #allocation6 [shape = 's32[2]{0}', space=sflag, size = 0x8, scoped, tag = 'scoped memory for custom-call.25']
    #allocation7 [shape = 'u8[4096]{0}', space=vmem, size = 0x1000, scoped, tag = 'operand span for operand 3']
    #allocation8 [shape = 'u8[2048]{0}', space=vmem, size = 0x800, scoped, tag = 'packed  for operand 3']
    %5 = vsyncpa [#allocation6], 0
    %s6 = scalar_lea.sflag [#allocation6], 1
    %7 = vsyncpa %s6, 0
    loop: start=0, step=1, limit=4
    $region2: #{custom-call.25} parent=1 // loop_pre_header
      _
    $region3: #{custom-call.25} parent=1 // loop_header
      %s9 = sphi 0, %s13
      %p10 = scmp.ge.s32.totalorder %s9, 4
      %s21 = sphi 0, %s23
      %s24 = sphi 0, %s21
      %s25 = sphi 0, %s24
      %s41 = sphi 0, %s25
      %s49 = sphi 0, %s51
      %s52 = sphi 0, %s49
      %s53 = sphi 0, %s52
      %s69 = sphi 0, %s53
    $region4: #{custom-call.25} parent=1 // loop_header_branch
      %12 = sbr.rel (%p10) target = $region8
    $region5: #{custom-call.25} parent=1 // loop_body
      %s14 = ssub.s32 %s9, 1
      %s15 = ssub.s32 %s9, 2
      %s16 = sadd.s32 %s9, 1
      %s17 = sshrl.u32 %s9, 3
      %s18 = sshrl.u32 %s16, 3
      %s19 = ssub.s32 %s17, %s18
      %p20 = scmp.eq.s32.totalorder %s19, 0
      %s22 = sadd.s32 %s21, 1
      %s23 = scalar_select %p20, %s21, %s22
      %p26 = pneg %p20
      %p27 = scmp.eq.s32.totalorder %s9, 1
      %p28 = por %p26, %p27
      %p29 = scmp.ne.s32.totalorder %s21, %s24
      %p30 = scmp.eq.s32.totalorder %s9, 0
      %p31 = por %p29, %p30
      %p32 = scmp.ne.s32.totalorder %s21, %s24
      %p33 = scmp.eq.s32.totalorder %s14, 1
      %p34 = por %p32, %p33
      %p35 = scmp.ne.s32.totalorder %s24, %s25
      %p36 = scmp.eq.s32.totalorder %s14, 0
      %p37 = por %p35, %p36
      %p38 = scmp.ne.s32.totalorder %s24, %s25
      %p39 = scmp.eq.s32.totalorder %s15, 1
      %p40 = por %p38, %p39
      %p42 = scmp.ne.s32.totalorder %s25, %s41
      %p43 = scmp.eq.s32.totalorder %s15, 0
      %p44 = por %p42, %p43
      %s45 = sshrl.u32 %s9, 3
      %s46 = sshrl.u32 %s16, 3
      %s47 = ssub.s32 %s45, %s46
      %p48 = scmp.eq.s32.totalorder %s47, 0
      %s50 = sadd.s32 %s49, 1
      %s51 = scalar_select %p48, %s49, %s50
      %p54 = pneg %p48
      %p55 = scmp.eq.s32.totalorder %s9, 1
      %p56 = por %p54, %p55
      %p57 = scmp.ne.s32.totalorder %s49, %s52
      %p58 = scmp.eq.s32.totalorder %s9, 0
      %p59 = por %p57, %p58
      %p60 = scmp.ne.s32.totalorder %s49, %s52
      %p61 = scmp.eq.s32.totalorder %s14, 1
      %p62 = por %p60, %p61
      %p63 = scmp.ne.s32.totalorder %s52, %s53
      %p64 = scmp.eq.s32.totalorder %s14, 0
      %p65 = por %p63, %p64
      %p66 = scmp.ne.s32.totalorder %s52, %s53
      %p67 = scmp.eq.s32.totalorder %s15, 1
      %p68 = por %p66, %p67
      %p70 = scmp.ne.s32.totalorder %s53, %s69
      %p71 = scmp.eq.s32.totalorder %s15, 0
      %p72 = por %p70, %p71
      %p73 = scmp.le.s32.totalorder 1, %s9
      %p74 = scmp.lt.s32.totalorder %s9, 3
      %p75 = pnand %p73, %p74
      %p76 = pneg %p75
      // Predicated region
      $region9: #{custom-call.25} parent=5 // pred_check
        _
      $region10: #{custom-call.25} parent=5 // pred_check_branch
        %78 = sbr.rel (%p75) target = $region12
      $region11: #{custom-call.25} parent=5 // pred_region
        %s79 = ssub.s32 %s9, 1
      $region12: #{custom-call.25} parent=5 // pred_fallthru
        _
      %p80 = scmp.lt.s32.totalorder %s9, 2
      // Predicated region
      $region13: #{custom-call.25} parent=5 // pred_check
        %p81 = pneg %p80
      $region14: #{custom-call.25} parent=5 // pred_check_branch
        %83 = sbr.rel (%p81) target = $region16
      $region15: #{custom-call.25} parent=5 // pred_region
        %s84 = sand.u32 %s9, 1
        %s85 = sand.u32 %s9, 1
        %s86 = smul.addr %s85, 2
        %s87 = scalar_lea.vmem [#allocation1], %s86
        %s88 = smul.addr %s9, 2
        %s89 = scalar_lea.vmem %s0, %s88
        // Predicated region
        $region17: #{custom-call.25} parent=15 // pred_check
          _
        $region18: #{custom-call.25} parent=15 // pred_check_branch
          %91 = sbr.rel (0) target = $region20
        $region19: #{custom-call.25} parent=15 // pred_region
          // Predicated region
          $region21: #{custom-call.25} parent=19 // pred_check
            _
          $region22: #{custom-call.25} parent=19 // pred_check_branch
            %93 = sbr.rel target = $region24
          $region23: #{custom-call.25} parent=19 // pred_region
            // Predicated region
            $region36: #{custom-call.25} parent=23 // pred_check
              _
            $region37: #{custom-call.25} parent=23 // pred_check_branch
              %109 = sbr.rel (0) target = $region39
            $region38: #{custom-call.25} parent=23 // pred_region
              %s111 = ssub.s32 4, 1
              loop: start=0, step=1, limit=1
              $region40: #{custom-call.25} parent=38 // loop_pre_header
                _
              $region41: #{custom-call.25} parent=38 // loop_header
                %s113 = sphi 0, %s117
                %p114 = scmp.ge.s32.totalorder %s113, 1
                %s118 = sphi %s89, %s89
                %s119 = sphi %s87, %s87
              $region42: #{custom-call.25} parent=38 // loop_header_branch
                %116 = sbr.rel (%p114) target = $region46
              $region43: #{custom-call.25} parent=38 // loop_body
                %v120 = vld [vmem:[%s118] sm:%s111]
                %121 = vst [vmem:[%s119] sm:%s111] %v120
              $region44: #{custom-call.25} parent=38 // loop_footer
                %s117 = sadd.s32 1, %s113
              $region45: #{custom-call.25} parent=38 // loop_footer_branch
                %112 = sbr.rel target = $region41
              $region46: #{custom-call.25} parent=38 // loop_exit
                _
            $region39: #{custom-call.25} parent=23 // pred_fallthru
              _
          $region24: #{custom-call.25} parent=19 // pred_fallthru
            _
          // Predicated region
          $region25: #{custom-call.25} parent=19 // pred_check
            _
          $region26: #{custom-call.25} parent=19 // pred_check_branch
            %95 = sbr.rel (0) target = $region28
          $region27: #{custom-call.25} parent=19 // pred_region
            %s97 = ssub.s32 4, 1
            loop: start=0, step=1, limit=1
            $region29: #{custom-call.25} parent=27 // loop_pre_header
              _
            $region30: #{custom-call.25} parent=27 // loop_header
              %s99 = sphi 0, %s103
              %p100 = scmp.ge.s32.totalorder %s99, 1
              %s104 = sphi %s89, %s89
              %s105 = sphi %s87, %s87
            $region31: #{custom-call.25} parent=27 // loop_header_branch
              %102 = sbr.rel (%p100) target = $region35
            $region32: #{custom-call.25} parent=27 // loop_body
              %v106 = vld [vmem:[%s104] sm:%s97]
              %107 = vst [vmem:[%s105] sm:%s97] %v106
            $region33: #{custom-call.25} parent=27 // loop_footer
              %s103 = sadd.s32 1, %s99
            $region34: #{custom-call.25} parent=27 // loop_footer_branch
              %98 = sbr.rel target = $region30
            $region35: #{custom-call.25} parent=27 // loop_exit
              _
          $region28: #{custom-call.25} parent=19 // pred_fallthru
            _
        $region20: #{custom-call.25} parent=15 // pred_fallthru
          _
        %122 = vnop
      $region16: #{custom-call.25} parent=5 // pred_fallthru
        _
      %p123 = scmp.le.s32.totalorder 1, %s9
      %p124 = scmp.lt.s32.totalorder %s9, 3
      %p125 = pnand %p123, %p124
      %p126 = pneg %p125
      // Predicated region
      $region47: #{custom-call.25} parent=5 // pred_check
        _
      $region48: #{custom-call.25} parent=5 // pred_check_branch
        %128 = sbr.rel (%p125) target = $region50
      $region49: #{custom-call.25} parent=5 // pred_region
        #allocation9 [shape = 's32[2,128]{1,0}', space=vmem, size = 0x1000, scoped, tag = 'scratch for permutations']
        %s129 = ssub.s32 %s9, 1
        %s130 = sand.u32 %s14, 1
        %s131 = sand.u32 %s14, 1
        %s132 = smul.addr %s131, 2
        %s133 = scalar_lea.vmem [#allocation1], %s132
        %s134 = sand.u32 %s14, 1
        %s135 = sand.u32 %s14, 1
        %s136 = smul.addr %s135, 2
        %s137 = scalar_lea.vmem [#allocation1], %s136
        %s138 = sand.u32 %s14, 1
        %s139 = sand.u32 %s14, 1
        %s140 = smul.addr %s139, 2
        %s141 = scalar_lea.vmem [#allocation3], %s140
        %p142 = pneg %p37
        %p143 = pneg %p34
        %s144 = sand.u32 %s24, 1
        %s145 = scalar_lea.sflag [#allocation6], %s144
        %s146 = sand.u32 %s24, 1
        %s147 = smul.addr %s146, 2
        %s148 = scalar_lea.vmem [#allocation5], %s147
        %p149 = pneg %p65
        %p150 = pneg %p62
        %s151 = sand.u32 %s52, 1
        %s152 = sand.u32 %s52, 1
        %s153 = smul.addr %s152, 2
        %s154 = scalar_lea.vmem [#allocation8], %s153
        %s156 = sshll.u32 1, 2
        %s157 = ssub.s32 %s156, 1
        %v158 = vld [vmem:[%s137] sm:%s157]
        %159 = vst [vmem:[#allocation0] sm:%s157] %v158
        %s160 = sshrl.u32 %s14, 3
        %s161 = sshrl.u32 %s14, 3
        %v162 = vld [vmem:[#allocation0] sm:$0xff]
        %163 = vst [vmem:[#allocation2] sm:$0xff] %v162
        %s164 = sand.u32 %s14, 7
        %s165 = scalar_lea.vmem [#allocation4], %s164
        %s166 = sand.u32 %s14, 7
        %s167 = scalar_lea.vmem [#allocation7], %s166
        %168 = vst [vmem:[%s165] sm:$0x1] 0
        %v169 = vlaneseq
        %v170 = vshrl.u32 %v169, 7
        %v171 = vmov %v170
        %173 = vst [vmem:[#allocation9] sm:$0xff] %v171
        loop: start=0, step=1, limit=2
        $region52: #{custom-call.25} parent=49 // loop_pre_header
          _
        $region53: #{custom-call.25} parent=49 // loop_header
          %s175 = sphi 0, %s179
          %p176 = scmp.ge.s32.totalorder %s175, 2
        $region54: #{custom-call.25} parent=49 // loop_header_branch
          %178 = sbr.rel (%p176) target = $region58
        $region55: #{custom-call.25} parent=49 // loop_body
          %v180 = vstv %s175
          %v181 = vlaneseq
          %v182 = vshrl.u32 %v181, 7
          %v183 = vmov %v182
          %v184 = vld [vmem:[#allocation2] sm:$0xff]
          %v185 = vand.u32 2147483647, %v184
          %v187 = vstv %s175
          %vm188 = vcmp.ge.s32.totalorder %v183, %v187
          %vm189 = vcmp.lt.s32.totalorder %v183, 2
          %vm190 = vmand %vm188, %vm189
          %vm191 = vcmp.lt.f32.partialorder -inf, %v185
          %vm192 = vmand %vm190, %vm191
          %v193 = vsel %vm192, %v183, %v180
          %v194 = vsel %vm192, %v185, -inf
          %v195 = vrot.slane %v194, 1
          %v196 = vrot.slane %v193, 1
          %vm197 = vcmp.ge.f32.partialorder %v195, %v194
          %v198 = vsel %vm197, %v195, %v194
          %v199 = vsel %vm197, %v196, %v193
          %v200 = vrot.slane %v195, 1
          %v201 = vrot.slane %v196, 1
          %vm202 = vcmp.ge.f32.partialorder %v200, %v198
          %v203 = vsel %vm202, %v200, %v198
          %v204 = vsel %vm202, %v201, %v199
          %v205 = vrot.slane %v200, 1
          %v206 = vrot.slane %v201, 1
          %vm207 = vcmp.ge.f32.partialorder %v205, %v203
          %v208 = vsel %vm207, %v205, %v203
          %v209 = vsel %vm207, %v206, %v204
          %v210 = vrot.slane %v205, 1
          %v211 = vrot.slane %v206, 1
          %vm212 = vcmp.ge.f32.partialorder %v210, %v208
          %v213 = vsel %vm212, %v210, %v208
          %v214 = vsel %vm212, %v211, %v209
          %v215 = vrot.slane %v210, 1
          %v216 = vrot.slane %v211, 1
          %vm217 = vcmp.ge.f32.partialorder %v215, %v213
          %v218 = vsel %vm217, %v215, %v213
          %v219 = vsel %vm217, %v216, %v214
          %v220 = vrot.slane %v215, 1
          %v221 = vrot.slane %v216, 1
          %vm222 = vcmp.ge.f32.partialorder %v220, %v218
          %v223 = vsel %vm222, %v220, %v218
          %v224 = vsel %vm222, %v221, %v219
          %v225 = vrot.slane %v220, 1
          %v226 = vrot.slane %v221, 1
          %vm227 = vcmp.ge.f32.partialorder %v225, %v223
          %v228 = vsel %vm227, %v225, %v223
          %v229 = vsel %vm227, %v226, %v224
          %s230 = ssub.s32 128, %s175
          %231 = vrot.lane.b32.xlu0 %v229, %s230
          %v232 = vpop.permute.xlu0 %231
          %s233 = vtos %v232
          %v234 = vstv %s175
          %v235 = vlaneseq
          %v236 = vand.u32 %v235, 127
          %vm237 = vcmp.eq.s32.totalorder %v236, %v234
          %v238 = vstv %s233
          %v239 = vld [vmem:[%s165] ss:$0 sm:$0xff]
          %v240 = vsel %vm237, %v238, %v239
          %241 = vst [vmem:[%s165] sm:$0x1] %v240
          %s242 = scalar_lea.vmem [#allocation2], %s175
          %s243 = scalar_lea.vmem [#allocation2], %s233
          %v244 = vld [vmem:[%s242] ss:$0 sm:$0xff]
          %v245 = vld [vmem:[%s243] ss:$0 sm:$0xff]
          %246 = vst [vmem:[%s243] sm:$0x1] %v244
          %247 = vst [vmem:[%s242] sm:$0x1] %v245
          %s248 = scalar_lea.vmem [#allocation9], %s175
          %s249 = scalar_lea.vmem [#allocation9], %s233
          %v250 = vld [vmem:[%s248] ss:$0 sm:$0xff]
          %v251 = vld [vmem:[%s249] ss:$0 sm:$0xff]
          %252 = vst [vmem:[%s249] sm:$0x1] %v250
          %253 = vst [vmem:[%s248] sm:$0x1] %v251
          %vm254 = vcmp.ne.f32.partialorder %v245, 0.0
          %vm255 = vmand %vm237, %vm254
          %v256 = vsel %vm255, %v245, 1.0
          %v257 = vlaneseq
          %v258 = vand.u32 %v257, 127
          %v259 = vstv %s175
          %vm260 = vcmp.gt.s32.totalorder %v258, %v259
          %v261 = vsel %vm260, %v245, 0.0
          %v262 = vlaneseq
          %v263 = vshrl.u32 %v262, 7
          %v264 = vmov %v263
          %v265 = vld [vmem:[#allocation2] sm:$0xff]
          %v267 = vstv %s175
          %vm268 = vcmp.gt.s32.totalorder %v264, %v267
          %v269 = vsel %vm268, %v256, 1.0
          %v270 = vrcp.pop %v269
          %v271 = vmul.f32 %v265, %v270
          %vm272 = vmand %vm268, %vm237
          %v273 = vsel %vm272, %v271, 0.0
          %274 = vadd.xlane.f32.xlu0 %v273
          %v275 = vpop.xlane.xlu0 %274
          %v276 = vmul.f32 %v275, %v261
          %v277 = vsub.f32 %v271, %v276
          %278 = vst [vmem:[#allocation2] sm:$0xff] %v277
        $region56: #{custom-call.25} parent=49 // loop_footer
          %s179 = sadd.s32 1, %s175
        $region57: #{custom-call.25} parent=49 // loop_footer_branch
          %174 = sbr.rel target = $region53
        $region58: #{custom-call.25} parent=49 // loop_exit
          _
        %v279 = vld [vmem:[#allocation9] sm:$0xff]
        %s280 = scalar_lea.vmem [#allocation9], 8
        %s281 = scalar_lea.vmem [#allocation9], 16
        %s282 = scalar_lea.vmem [#allocation9], 24
        %s283 = scalar_lea.vmem [#allocation9], 32
        %s284 = scalar_lea.vmem [#allocation9], 40
        %s285 = scalar_lea.vmem [#allocation9], 48
        %s286 = scalar_lea.vmem [#allocation9], 56
        %s287 = scalar_lea.vmem [#allocation9], 64
        %s288 = scalar_lea.vmem [#allocation9], 72
        %s289 = scalar_lea.vmem [#allocation9], 80
        %s290 = scalar_lea.vmem [#allocation9], 88
        %s291 = scalar_lea.vmem [#allocation9], 96
        %s292 = scalar_lea.vmem [#allocation9], 104
        %s293 = scalar_lea.vmem [#allocation9], 112
        %s294 = scalar_lea.vmem [#allocation9], 120
        %295 = vxpose.xlu0.b32.start [1/16] %v279, 128
        %296 = vxpose.xlu0.b32.cont [2/16] 0, 128
        %297 = vxpose.xlu0.b32.cont [3/16] 0, 128
        %298 = vxpose.xlu0.b32.cont [4/16] 0, 128
        %299 = vxpose.xlu0.b32.cont [5/16] 0, 128
        %300 = vxpose.xlu0.b32.cont [6/16] 0, 128
        %301 = vxpose.xlu0.b32.cont [7/16] 0, 128
        %302 = vxpose.xlu0.b32.cont [8/16] 0, 128
        %303 = vxpose.xlu0.b32.cont [9/16] 0, 128
        %304 = vxpose.xlu0.b32.cont [10/16] 0, 128
        %305 = vxpose.xlu0.b32.cont [11/16] 0, 128
        %306 = vxpose.xlu0.b32.cont [12/16] 0, 128
        %307 = vxpose.xlu0.b32.cont [13/16] 0, 128
        %308 = vxpose.xlu0.b32.cont [14/16] 0, 128
        %309 = vxpose.xlu0.b32.cont [15/16] 0, 128
        %310 = vxpose.xlu0.b32.end [16/16] 0, 128
        %v311 = vpop.trf.xlu0
        %v312 = vpop.trf.xlu0
        %v313 = vpop.trf.xlu0
        %v314 = vpop.trf.xlu0
        %v315 = vpop.trf.xlu0
        %v316 = vpop.trf.xlu0
        %v317 = vpop.trf.xlu0
        %v318 = vpop.trf.xlu0
        %v319 = vpop.trf.xlu0
        %v320 = vpop.trf.xlu0
        %v321 = vpop.trf.xlu0
        %v322 = vpop.trf.xlu0
        %v323 = vpop.trf.xlu0
        %v324 = vpop.trf.xlu0
        %v325 = vpop.trf.xlu0
        %v326 = vpop.trf.xlu0
        %327 = vst [vmem:[%s167] sm:$0x1] %v311
        %s329 = sshll.u32 1, 2
        %s330 = ssub.s32 %s329, 1
        %v332 = vld [vmem:[#allocation2] sm:%s330]
        %s333 = sshll.u32 1, 2
        %s334 = ssub.s32 %s333, 1
        %335 = vst [vmem:[%s141] sm:%s334] %v332
        %s337 = sshll.u32 1, 2
        %s338 = ssub.s32 %s337, 1
        %v340 = vld [vmem:[#allocation4] sm:%s338]
        %s341 = sshll.u32 1, 2
        %s342 = ssub.s32 %s341, 1
        %343 = vst [vmem:[%s148] sm:%s342] %v340
        %s345 = sshll.u32 1, 2
        %s346 = ssub.s32 %s345, 1
        %v348 = vld [vmem:[#allocation7] sm:%s346]
        %s349 = sshll.u32 1, 2
        %s350 = ssub.s32 %s349, 1
        %351 = vst [vmem:[%s154] sm:%s350] %v348
        %s352 = sand.u32 %s14, 1
        %s353 = sand.u32 %s14, 1
        %s354 = smul.addr %s353, 2
        %s355 = scalar_lea.vmem [#allocation3], %s354
        %s356 = sand.u32 %s24, 1
        %s357 = scalar_lea.sflag [#allocation6], %s356
        %s358 = sand.u32 %s24, 1
        %s359 = smul.addr %s358, 2
        %s360 = scalar_lea.vmem [#allocation5], %s359
        %s361 = sand.u32 %s52, 1
        %s362 = sand.u32 %s52, 1
        %s363 = smul.addr %s362, 2
        %s364 = scalar_lea.vmem [#allocation8], %s363
        %s365 = smul.addr %s14, 2
        %s366 = scalar_lea.vmem %s1, %s365
        // Predicated region
        $region59: #{custom-call.25} parent=49 // pred_check
          _
        $region60: #{custom-call.25} parent=49 // pred_check_branch
          %368 = sbr.rel (0) target = $region62
        $region61: #{custom-call.25} parent=49 // pred_region
          // Predicated region
          $region63: #{custom-call.25} parent=61 // pred_check
            _
          $region64: #{custom-call.25} parent=61 // pred_check_branch
            %370 = sbr.rel target = $region66
          $region65: #{custom-call.25} parent=61 // pred_region
            // Predicated region
            $region78: #{custom-call.25} parent=65 // pred_check
              _
            $region79: #{custom-call.25} parent=65 // pred_check_branch
              %386 = sbr.rel (0) target = $region81
            $region80: #{custom-call.25} parent=65 // pred_region
              %s388 = ssub.s32 4, 1
              loop: start=0, step=1, limit=1
              $region82: #{custom-call.25} parent=80 // loop_pre_header
                _
              $region83: #{custom-call.25} parent=80 // loop_header
                %s390 = sphi 0, %s394
                %p391 = scmp.ge.s32.totalorder %s390, 1
                %s395 = sphi %s355, %s355
                %s396 = sphi %s366, %s366
              $region84: #{custom-call.25} parent=80 // loop_header_branch
                %393 = sbr.rel (%p391) target = $region88
              $region85: #{custom-call.25} parent=80 // loop_body
                %v397 = vld [vmem:[%s395] sm:%s388]
                %398 = vst [vmem:[%s396] sm:%s388] %v397
              $region86: #{custom-call.25} parent=80 // loop_footer
                %s394 = sadd.s32 1, %s390
              $region87: #{custom-call.25} parent=80 // loop_footer_branch
                %389 = sbr.rel target = $region83
              $region88: #{custom-call.25} parent=80 // loop_exit
                _
            $region81: #{custom-call.25} parent=65 // pred_fallthru
              _
          $region66: #{custom-call.25} parent=61 // pred_fallthru
            _
          // Predicated region
          $region67: #{custom-call.25} parent=61 // pred_check
            _
          $region68: #{custom-call.25} parent=61 // pred_check_branch
            %372 = sbr.rel (0) target = $region70
          $region69: #{custom-call.25} parent=61 // pred_region
            %s374 = ssub.s32 4, 1
            loop: start=0, step=1, limit=1
            $region71: #{custom-call.25} parent=69 // loop_pre_header
              _
            $region72: #{custom-call.25} parent=69 // loop_header
              %s376 = sphi 0, %s380
              %p377 = scmp.ge.s32.totalorder %s376, 1
              %s381 = sphi %s355, %s355
              %s382 = sphi %s366, %s366
            $region73: #{custom-call.25} parent=69 // loop_header_branch
              %379 = sbr.rel (%p377) target = $region77
            $region74: #{custom-call.25} parent=69 // loop_body
              %v383 = vld [vmem:[%s381] sm:%s374]
              %384 = vst [vmem:[%s382] sm:%s374] %v383
            $region75: #{custom-call.25} parent=69 // loop_footer
              %s380 = sadd.s32 1, %s376
            $region76: #{custom-call.25} parent=69 // loop_footer_branch
              %375 = sbr.rel target = $region72
            $region77: #{custom-call.25} parent=69 // loop_exit
              _
          $region70: #{custom-call.25} parent=61 // pred_fallthru
            _
        $region62: #{custom-call.25} parent=49 // pred_fallthru
          _
        %399 = vnop
        // Predicated region
        $region89: #{custom-call.25} parent=49 // pred_check
          %p400 = pneg %p34
        $region90: #{custom-call.25} parent=49 // pred_check_branch
          %402 = sbr.rel (%p400) target = $region92
        $region91: #{custom-call.25} parent=49 // pred_region
          %s403 = sshrl.u32 %s14, 3
          %s405 = ssub.s32 32, 32
          %406 = vsyncadd %s357, %s405
          %s407 = smul.addr %s403, 32
          %s408 = scalar_lea.hbm %s2, %s407
          %s410 = sshll.u32 %s360, 4
          %s411 = int_to_ptr.vmem [resolvable:$true] %s410
          %413 = dma.vmem_to_hbm [thread:$0]  %s411, 32, %s408, %s357
        $region92: #{custom-call.25} parent=49 // pred_fallthru
          _
        // Predicated region
        $region93: #{custom-call.25} parent=49 // pred_check
          %p414 = pneg %p62
        $region94: #{custom-call.25} parent=49 // pred_check_branch
          %416 = sbr.rel (%p414) target = $region96
        $region95: #{custom-call.25} parent=49 // pred_region
          %s417 = sshrl.u32 %s14, 3
          %s418 = smul.addr %s417, 2
          %s419 = scalar_lea.vmem %s3, %s418
          // Predicated region
          $region97: #{custom-call.25} parent=95 // pred_check
            _
          $region98: #{custom-call.25} parent=95 // pred_check_branch
            %421 = sbr.rel (0) target = $region100
          $region99: #{custom-call.25} parent=95 // pred_region
            // Predicated region
            $region101: #{custom-call.25} parent=99 // pred_check
              _
            $region102: #{custom-call.25} parent=99 // pred_check_branch
              %423 = sbr.rel target = $region104
            $region103: #{custom-call.25} parent=99 // pred_region
              // Predicated region
              $region116: #{custom-call.25} parent=103 // pred_check
                _
              $region117: #{custom-call.25} parent=103 // pred_check_branch
                %439 = sbr.rel (0) target = $region119
              $region118: #{custom-call.25} parent=103 // pred_region
                %s441 = ssub.s32 4, 1
                loop: start=0, step=1, limit=1
                $region120: #{custom-call.25} parent=118 // loop_pre_header
                  _
                $region121: #{custom-call.25} parent=118 // loop_header
                  %s443 = sphi 0, %s447
                  %p444 = scmp.ge.s32.totalorder %s443, 1
                  %s448 = sphi %s364, %s364
                  %s449 = sphi %s419, %s419
                $region122: #{custom-call.25} parent=118 // loop_header_branch
                  %446 = sbr.rel (%p444) target = $region126
                $region123: #{custom-call.25} parent=118 // loop_body
                  %v450 = vld [vmem:[%s448] sm:%s441]
                  %451 = vst [vmem:[%s449] sm:%s441] %v450
                $region124: #{custom-call.25} parent=118 // loop_footer
                  %s447 = sadd.s32 1, %s443
                $region125: #{custom-call.25} parent=118 // loop_footer_branch
                  %442 = sbr.rel target = $region121
                $region126: #{custom-call.25} parent=118 // loop_exit
                  _
              $region119: #{custom-call.25} parent=103 // pred_fallthru
                _
            $region104: #{custom-call.25} parent=99 // pred_fallthru
              _
            // Predicated region
            $region105: #{custom-call.25} parent=99 // pred_check
              _
            $region106: #{custom-call.25} parent=99 // pred_check_branch
              %425 = sbr.rel (0) target = $region108
            $region107: #{custom-call.25} parent=99 // pred_region
              %s427 = ssub.s32 4, 1
              loop: start=0, step=1, limit=1
              $region109: #{custom-call.25} parent=107 // loop_pre_header
                _
              $region110: #{custom-call.25} parent=107 // loop_header
                %s429 = sphi 0, %s433
                %p430 = scmp.ge.s32.totalorder %s429, 1
                %s434 = sphi %s364, %s364
                %s435 = sphi %s419, %s419
              $region111: #{custom-call.25} parent=107 // loop_header_branch
                %432 = sbr.rel (%p430) target = $region115
              $region112: #{custom-call.25} parent=107 // loop_body
                %v436 = vld [vmem:[%s434] sm:%s427]
                %437 = vst [vmem:[%s435] sm:%s427] %v436
              $region113: #{custom-call.25} parent=107 // loop_footer
                %s433 = sadd.s32 1, %s429
              $region114: #{custom-call.25} parent=107 // loop_footer_branch
                %428 = sbr.rel target = $region110
              $region115: #{custom-call.25} parent=107 // loop_exit
                _
            $region108: #{custom-call.25} parent=99 // pred_fallthru
              _
          $region100: #{custom-call.25} parent=95 // pred_fallthru
            _
          %452 = vnop
        $region96: #{custom-call.25} parent=49 // pred_fallthru
          _
      $region50: #{custom-call.25} parent=5 // pred_fallthru
        _
      %p453 = scmp.le.s32.totalorder 2, %s9
      // Predicated region
      $region127: #{custom-call.25} parent=5 // pred_check
        %p454 = pneg %p453
      $region128: #{custom-call.25} parent=5 // pred_check_branch
        %456 = sbr.rel (%p454) target = $region130
      $region129: #{custom-call.25} parent=5 // pred_region
        %s457 = ssub.s32 %s9, 2
        %s458 = sand.u32 %s15, 1
        %s459 = sand.u32 %s15, 1
        %s460 = smul.addr %s459, 2
        %s461 = scalar_lea.vmem [#allocation3], %s460
        // Predicated region
        $region131: #{custom-call.25} parent=129 // pred_check
          %p462 = pneg %p40
        $region132: #{custom-call.25} parent=129 // pred_check_branch
          %464 = sbr.rel (%p462) target = $region134
        $region133: #{custom-call.25} parent=129 // pred_region
          %s465 = sand.u32 %s25, 1
          %s466 = scalar_lea.sflag [#allocation6], %s465
          %s467 = sand.u32 %s25, 1
          %s468 = smul.addr %s467, 2
          %s469 = scalar_lea.vmem [#allocation5], %s468
          %470 = dma.done %s466, 32
        $region134: #{custom-call.25} parent=129 // pred_fallthru
          _
        // Predicated region
        $region135: #{custom-call.25} parent=129 // pred_check
          %p471 = pneg %p68
        $region136: #{custom-call.25} parent=129 // pred_check_branch
          %473 = sbr.rel (%p471) target = $region138
        $region137: #{custom-call.25} parent=129 // pred_region
          %s474 = sand.u32 %s53, 1
          %s475 = sand.u32 %s53, 1
          %s476 = smul.addr %s475, 2
          %s477 = scalar_lea.vmem [#allocation8], %s476
        $region138: #{custom-call.25} parent=129 // pred_fallthru
          _
      $region130: #{custom-call.25} parent=5 // pred_fallthru
        _
    $region6: #{custom-call.25} parent=1 // loop_footer
      %s13 = sadd.s32 1, %s9
    $region7: #{custom-call.25} parent=1 // loop_footer_branch
      %8 = sbr.rel target = $region3
    $region8: #{custom-call.25} parent=1 // loop_exit
      _
    %478 = vsyncpa [#allocation6], 1
    %s479 = scalar_lea.sflag [#allocation6], 1
    %480 = vsyncpa %s479, 1

// kernel: custom-call.26
$region0: #{custom-call.26}
  %s0 = inlined_call_operand.vmem [shape: f32[2,1,2,2], index: 0, kind: input, shape index: {}]
  %s1 = inlined_call_operand.vmem [shape: f32[2,1,2,2], index: 1, kind: output, shape index: {}]
  $region1: #{custom-call.26} parent=0
    #allocation0 [shape = 'u8[4096]{0}', space=vmem, size = 0x1000, scoped, tag = 'operand span for operand 0']
    #allocation1 [shape = 'u8[2048]{0}', space=vmem, size = 0x800, scoped, tag = 'packed  for operand 0']
    #allocation2 [shape = 'u8[4096]{0}', space=vmem, size = 0x1000, scoped, tag = 'operand span for operand 1']
    #allocation3 [shape = 'u8[2048]{0}', space=vmem, size = 0x800, scoped, tag = 'packed  for operand 1']
    loop: start=0, step=1, limit=4
    $region2: #{custom-call.26} parent=1 // loop_pre_header
      _
    $region3: #{custom-call.26} parent=1 // loop_header
      %s3 = sphi 0, %s7
      %p4 = scmp.ge.s32.totalorder %s3, 4
      %s10 = sphi 0, %s36
      %s11 = sphi 0, %s32
      %s12 = sphi 0, %s28
      %s13 = sphi 0, %s24
      %s14 = sphi 0, %s10
      %s15 = sphi 0, %s11
      %s16 = sphi 0, %s12
      %s17 = sphi 0, %s13
      %s18 = sphi 0, %s14
      %s19 = sphi 0, %s15
      %s20 = sphi 0, %s16
      %s21 = sphi 0, %s17
    $region4: #{custom-call.26} parent=1 // loop_header_branch
      %6 = sbr.rel (%p4) target = $region8
    $region5: #{custom-call.26} parent=1 // loop_body
      %s8 = ssub.s32 %s3, 1
      %s9 = ssub.s32 %s3, 2
      %s22 = sadd.s32 1, %s13
      %p23 = scmp.ge.s32.totalorder %s22, 1
      %s24 = scalar_select %p23, 0, %s22
      %s25 = sadd.s32 1, %s12
      %s26 = scalar_select %p23, %s25, %s12
      %p27 = scmp.ge.s32.totalorder %s26, 1
      %s28 = scalar_select %p27, 0, %s26
      %s29 = sadd.s32 1, %s11
      %s30 = scalar_select %p27, %s29, %s11
      %p31 = scmp.ge.s32.totalorder %s30, 1
      %s32 = scalar_select %p31, 0, %s30
      %s33 = sadd.s32 1, %s10
      %s34 = scalar_select %p31, %s33, %s10
      %p35 = scmp.ge.s32.totalorder %s34, 2
      %s36 = scalar_select %p35, 0, %s34
      %p37 = scmp.le.s32.totalorder 1, %s3
      %p38 = scmp.lt.s32.totalorder %s3, 3
      %p39 = pnand %p37, %p38
      %p40 = pneg %p39
      // Predicated region
      $region9: #{custom-call.26} parent=5 // pred_check
        _
      $region10: #{custom-call.26} parent=5 // pred_check_branch
        %42 = sbr.rel (%p39) target = $region12
      $region11: #{custom-call.26} parent=5 // pred_region
        %s43 = ssub.s32 %s3, 1
      $region12: #{custom-call.26} parent=5 // pred_fallthru
        _
      %p44 = scmp.lt.s32.totalorder %s3, 2
      // Predicated region
      $region13: #{custom-call.26} parent=5 // pred_check
        %p45 = pneg %p44
      $region14: #{custom-call.26} parent=5 // pred_check_branch
        %47 = sbr.rel (%p45) target = $region16
      $region15: #{custom-call.26} parent=5 // pred_region
        %s48 = sand.u32 %s3, 1
        %s49 = sand.u32 %s3, 1
        %s50 = smul.addr %s49, 2
        %s51 = scalar_lea.vmem [#allocation1], %s50
        %s52 = sadd.s32 %s13, %s12
        %s53 = sadd.s32 %s52, %s11
        %s54 = sadd.s32 %s53, %s10
        %s55 = smul.addr %s54, 2
        %s56 = scalar_lea.vmem %s0, %s55
        // Predicated region
        $region17: #{custom-call.26} parent=15 // pred_check
          _
        $region18: #{custom-call.26} parent=15 // pred_check_branch
          %58 = sbr.rel (0) target = $region20
        $region19: #{custom-call.26} parent=15 // pred_region
          // Predicated region
          $region21: #{custom-call.26} parent=19 // pred_check
            _
          $region22: #{custom-call.26} parent=19 // pred_check_branch
            %60 = sbr.rel target = $region24
          $region23: #{custom-call.26} parent=19 // pred_region
            // Predicated region
            $region36: #{custom-call.26} parent=23 // pred_check
              _
            $region37: #{custom-call.26} parent=23 // pred_check_branch
              %76 = sbr.rel (0) target = $region39
            $region38: #{custom-call.26} parent=23 // pred_region
              %s78 = ssub.s32 4, 1
              loop: start=0, step=1, limit=1
              $region40: #{custom-call.26} parent=38 // loop_pre_header
                _
              $region41: #{custom-call.26} parent=38 // loop_header
                %s80 = sphi 0, %s84
                %p81 = scmp.ge.s32.totalorder %s80, 1
                %s85 = sphi %s56, %s56
                %s86 = sphi %s51, %s51
              $region42: #{custom-call.26} parent=38 // loop_header_branch
                %83 = sbr.rel (%p81) target = $region46
              $region43: #{custom-call.26} parent=38 // loop_body
                %v87 = vld [vmem:[%s85] sm:%s78]
                %88 = vst [vmem:[%s86] sm:%s78] %v87
              $region44: #{custom-call.26} parent=38 // loop_footer
                %s84 = sadd.s32 1, %s80
              $region45: #{custom-call.26} parent=38 // loop_footer_branch
                %79 = sbr.rel target = $region41
              $region46: #{custom-call.26} parent=38 // loop_exit
                _
            $region39: #{custom-call.26} parent=23 // pred_fallthru
              _
          $region24: #{custom-call.26} parent=19 // pred_fallthru
            _
          // Predicated region
          $region25: #{custom-call.26} parent=19 // pred_check
            _
          $region26: #{custom-call.26} parent=19 // pred_check_branch
            %62 = sbr.rel (0) target = $region28
          $region27: #{custom-call.26} parent=19 // pred_region
            %s64 = ssub.s32 4, 1
            loop: start=0, step=1, limit=1
            $region29: #{custom-call.26} parent=27 // loop_pre_header
              _
            $region30: #{custom-call.26} parent=27 // loop_header
              %s66 = sphi 0, %s70
              %p67 = scmp.ge.s32.totalorder %s66, 1
              %s71 = sphi %s56, %s56
              %s72 = sphi %s51, %s51
            $region31: #{custom-call.26} parent=27 // loop_header_branch
              %69 = sbr.rel (%p67) target = $region35
            $region32: #{custom-call.26} parent=27 // loop_body
              %v73 = vld [vmem:[%s71] sm:%s64]
              %74 = vst [vmem:[%s72] sm:%s64] %v73
            $region33: #{custom-call.26} parent=27 // loop_footer
              %s70 = sadd.s32 1, %s66
            $region34: #{custom-call.26} parent=27 // loop_footer_branch
              %65 = sbr.rel target = $region30
            $region35: #{custom-call.26} parent=27 // loop_exit
              _
          $region28: #{custom-call.26} parent=19 // pred_fallthru
            _
        $region20: #{custom-call.26} parent=15 // pred_fallthru
          _
        %89 = vnop
      $region16: #{custom-call.26} parent=5 // pred_fallthru
        _
      %p90 = scmp.le.s32.totalorder 1, %s3
      %p91 = scmp.lt.s32.totalorder %s3, 3
      %p92 = pnand %p90, %p91
      %p93 = pneg %p92
      // Predicated region
      $region47: #{custom-call.26} parent=5 // pred_check
        _
      $region48: #{custom-call.26} parent=5 // pred_check_branch
        %95 = sbr.rel (%p92) target = $region50
      $region49: #{custom-call.26} parent=5 // pred_region
        #allocation4 [shape = 'f32[2,2]{1,0}', space=vmem, size = 0x1000, scoped, tag = 'rescaled input a']
        %s96 = ssub.s32 %s3, 1
        %s97 = sand.u32 %s8, 1
        %s98 = sand.u32 %s8, 1
        %s99 = smul.addr %s98, 2
        %s100 = scalar_lea.vmem [#allocation1], %s99
        %s101 = sand.u32 %s8, 1
        %s102 = sand.u32 %s8, 1
        %s103 = smul.addr %s102, 2
        %s104 = scalar_lea.vmem [#allocation1], %s103
        %s105 = sand.u32 %s8, 1
        %s106 = sand.u32 %s8, 1
        %s107 = smul.addr %s106, 2
        %s108 = scalar_lea.vmem [#allocation3], %s107
        %s110 = sshll.u32 1, 2
        %s111 = ssub.s32 %s110, 1
        %v112 = vld [vmem:[%s104] sm:%s111]
        %113 = vst [vmem:[#allocation0] sm:%s111] %v112
        %v114 = vlaneseq
        %v115 = vand.u32 %v114, 127
        %vm116 = vcmp.lt.s32.totalorder %v115, 2
        %v117 = vlaneseq
        %v118 = vshrl.u32 %v117, 7
        %vm120 = vcmp.eq.s32.totalorder %v118, %v115
        %v121 = vld [vmem:[#allocation0] sm:$0xff]
        %v122 = vsel %vm120, %v121, 0.0
        %123 = vadd.xlane.f32.xlu0 %v122
        %v124 = vpop.xlane.xlu0 %123
        %vm125 = vcmp.le.s32.totalorder %v118, %v115
        %vm126 = vmand %vm125, %vm116
        %v127 = vsel %vm126, %v121, 0.0
        %v128 = vrcp.pop %v124
        %v129 = vmul.f32 %v127, %v128
        %130 = vst [vmem:[#allocation4] sm:$0xff] %v129
        %v131 = vlaneseq
        %v132 = vand.u32 %v131, 127
        %v133 = vlaneseq
        %v134 = vshrl.u32 %v133, 7
        %vm136 = vcmp.eq.s32.totalorder %v132, %v134
        %v137 = vlaneseq
        %v138 = vand.u32 %v137, 127
        %vm139 = vcmp.eq.s32.totalorder %v138, 1
        %v140 = vsel %vm139, 1.0, -1.0
        %v141 = vsel %vm136, %v140, 0.0
        %v142 = vld [vmem:[#allocation4] ss:$0 sm:$0xff]
        %v143 = vxor.u32 %v142, 2147483648
        %v144 = vlaneseq
        %v145 = vand.u32 %v144, 127
        %vm146 = vcmp.eq.s32.totalorder %v145, 0
        %v147 = vmul.f32 %v143, %v141
        %148 = vadd.xlane.f32.xlu0 %v147
        %v149 = vpop.xlane.xlu0 %148
        %v150 = vsel %vm146, %v149, %v141
        %v151 = vrcp.pop %v124
        %v152 = vmul.f32 %v150, %v151
        %vm153 = vweird.f32 %v124
        %v154 = vsel %vm153, %v150, %v152
        %155 = vst [vmem:[#allocation2] sm:$0xff] %v154
        %s157 = sshll.u32 1, 2
        %s158 = ssub.s32 %s157, 1
        %v160 = vld [vmem:[#allocation2] sm:%s158]
        %s161 = sshll.u32 1, 2
        %s162 = ssub.s32 %s161, 1
        %163 = vst [vmem:[%s108] sm:%s162] %v160
        %s164 = sand.u32 %s8, 1
        %s165 = sand.u32 %s8, 1
        %s166 = smul.addr %s165, 2
        %s167 = scalar_lea.vmem [#allocation3], %s166
        %s168 = sadd.s32 %s17, %s16
        %s169 = sadd.s32 %s168, %s15
        %s170 = sadd.s32 %s169, %s14
        %s171 = smul.addr %s170, 2
        %s172 = scalar_lea.vmem %s1, %s171
        // Predicated region
        $region51: #{custom-call.26} parent=49 // pred_check
          _
        $region52: #{custom-call.26} parent=49 // pred_check_branch
          %174 = sbr.rel (0) target = $region54
        $region53: #{custom-call.26} parent=49 // pred_region
          // Predicated region
          $region55: #{custom-call.26} parent=53 // pred_check
            _
          $region56: #{custom-call.26} parent=53 // pred_check_branch
            %176 = sbr.rel target = $region58
          $region57: #{custom-call.26} parent=53 // pred_region
            // Predicated region
            $region70: #{custom-call.26} parent=57 // pred_check
              _
            $region71: #{custom-call.26} parent=57 // pred_check_branch
              %192 = sbr.rel (0) target = $region73
            $region72: #{custom-call.26} parent=57 // pred_region
              %s194 = ssub.s32 4, 1
              loop: start=0, step=1, limit=1
              $region74: #{custom-call.26} parent=72 // loop_pre_header
                _
              $region75: #{custom-call.26} parent=72 // loop_header
                %s196 = sphi 0, %s200
                %p197 = scmp.ge.s32.totalorder %s196, 1
                %s201 = sphi %s167, %s167
                %s202 = sphi %s172, %s172
              $region76: #{custom-call.26} parent=72 // loop_header_branch
                %199 = sbr.rel (%p197) target = $region80
              $region77: #{custom-call.26} parent=72 // loop_body
                %v203 = vld [vmem:[%s201] sm:%s194]
                %204 = vst [vmem:[%s202] sm:%s194] %v203
              $region78: #{custom-call.26} parent=72 // loop_footer
                %s200 = sadd.s32 1, %s196
              $region79: #{custom-call.26} parent=72 // loop_footer_branch
                %195 = sbr.rel target = $region75
              $region80: #{custom-call.26} parent=72 // loop_exit
                _
            $region73: #{custom-call.26} parent=57 // pred_fallthru
              _
          $region58: #{custom-call.26} parent=53 // pred_fallthru
            _
          // Predicated region
          $region59: #{custom-call.26} parent=53 // pred_check
            _
          $region60: #{custom-call.26} parent=53 // pred_check_branch
            %178 = sbr.rel (0) target = $region62
          $region61: #{custom-call.26} parent=53 // pred_region
            %s180 = ssub.s32 4, 1
            loop: start=0, step=1, limit=1
            $region63: #{custom-call.26} parent=61 // loop_pre_header
              _
            $region64: #{custom-call.26} parent=61 // loop_header
              %s182 = sphi 0, %s186
              %p183 = scmp.ge.s32.totalorder %s182, 1
              %s187 = sphi %s167, %s167
              %s188 = sphi %s172, %s172
            $region65: #{custom-call.26} parent=61 // loop_header_branch
              %185 = sbr.rel (%p183) target = $region69
            $region66: #{custom-call.26} parent=61 // loop_body
              %v189 = vld [vmem:[%s187] sm:%s180]
              %190 = vst [vmem:[%s188] sm:%s180] %v189
            $region67: #{custom-call.26} parent=61 // loop_footer
              %s186 = sadd.s32 1, %s182
            $region68: #{custom-call.26} parent=61 // loop_footer_branch
              %181 = sbr.rel target = $region64
            $region69: #{custom-call.26} parent=61 // loop_exit
              _
          $region62: #{custom-call.26} parent=53 // pred_fallthru
            _
        $region54: #{custom-call.26} parent=49 // pred_fallthru
          _
        %205 = vnop
      $region50: #{custom-call.26} parent=5 // pred_fallthru
        _
      %p206 = scmp.le.s32.totalorder 2, %s3
      // Predicated region
      $region81: #{custom-call.26} parent=5 // pred_check
        %p207 = pneg %p206
      $region82: #{custom-call.26} parent=5 // pred_check_branch
        %209 = sbr.rel (%p207) target = $region84
      $region83: #{custom-call.26} parent=5 // pred_region
        %s210 = ssub.s32 %s3, 2
        %s211 = sand.u32 %s9, 1
        %s212 = sand.u32 %s9, 1
        %s213 = smul.addr %s212, 2
        %s214 = scalar_lea.vmem [#allocation3], %s213
      $region84: #{custom-call.26} parent=5 // pred_fallthru
        _
    $region6: #{custom-call.26} parent=1 // loop_footer
      %s7 = sadd.s32 1, %s3
    $region7: #{custom-call.26} parent=1 // loop_footer_branch
      %2 = sbr.rel target = $region3
    $region8: #{custom-call.26} parent=1 // loop_exit
      _

// kernel: custom-call.27
$region0: #{custom-call.27}
  %s0 = inlined_call_operand.vmem [shape: f32[2,1,2,2], index: 0, kind: input, shape index: {}]
  %s1 = inlined_call_operand.vmem [shape: f32[2,1,2,2], index: 1, kind: output, shape index: {}]
  $region1: #{custom-call.27} parent=0
    #allocation0 [shape = 'u8[4096]{0}', space=vmem, size = 0x1000, scoped, tag = 'operand span for operand 0']
    #allocation1 [shape = 'u8[2048]{0}', space=vmem, size = 0x800, scoped, tag = 'packed  for operand 0']
    #allocation2 [shape = 'u8[4096]{0}', space=vmem, size = 0x1000, scoped, tag = 'operand span for operand 1']
    #allocation3 [shape = 'u8[2048]{0}', space=vmem, size = 0x800, scoped, tag = 'packed  for operand 1']
    loop: start=0, step=1, limit=4
    $region2: #{custom-call.27} parent=1 // loop_pre_header
      _
    $region3: #{custom-call.27} parent=1 // loop_header
      %s3 = sphi 0, %s7
      %p4 = scmp.ge.s32.totalorder %s3, 4
      %s10 = sphi 0, %s36
      %s11 = sphi 0, %s32
      %s12 = sphi 0, %s28
      %s13 = sphi 0, %s24
      %s14 = sphi 0, %s10
      %s15 = sphi 0, %s11
      %s16 = sphi 0, %s12
      %s17 = sphi 0, %s13
      %s18 = sphi 0, %s14
      %s19 = sphi 0, %s15
      %s20 = sphi 0, %s16
      %s21 = sphi 0, %s17
    $region4: #{custom-call.27} parent=1 // loop_header_branch
      %6 = sbr.rel (%p4) target = $region8
    $region5: #{custom-call.27} parent=1 // loop_body
      %s8 = ssub.s32 %s3, 1
      %s9 = ssub.s32 %s3, 2
      %s22 = sadd.s32 1, %s13
      %p23 = scmp.ge.s32.totalorder %s22, 1
      %s24 = scalar_select %p23, 0, %s22
      %s25 = sadd.s32 1, %s12
      %s26 = scalar_select %p23, %s25, %s12
      %p27 = scmp.ge.s32.totalorder %s26, 1
      %s28 = scalar_select %p27, 0, %s26
      %s29 = sadd.s32 1, %s11
      %s30 = scalar_select %p27, %s29, %s11
      %p31 = scmp.ge.s32.totalorder %s30, 1
      %s32 = scalar_select %p31, 0, %s30
      %s33 = sadd.s32 1, %s10
      %s34 = scalar_select %p31, %s33, %s10
      %p35 = scmp.ge.s32.totalorder %s34, 2
      %s36 = scalar_select %p35, 0, %s34
      %p37 = scmp.le.s32.totalorder 1, %s3
      %p38 = scmp.lt.s32.totalorder %s3, 3
      %p39 = pnand %p37, %p38
      %p40 = pneg %p39
      // Predicated region
      $region9: #{custom-call.27} parent=5 // pred_check
        _
      $region10: #{custom-call.27} parent=5 // pred_check_branch
        %42 = sbr.rel (%p39) target = $region12
      $region11: #{custom-call.27} parent=5 // pred_region
        %s43 = ssub.s32 %s3, 1
      $region12: #{custom-call.27} parent=5 // pred_fallthru
        _
      %p44 = scmp.lt.s32.totalorder %s3, 2
      // Predicated region
      $region13: #{custom-call.27} parent=5 // pred_check
        %p45 = pneg %p44
      $region14: #{custom-call.27} parent=5 // pred_check_branch
        %47 = sbr.rel (%p45) target = $region16
      $region15: #{custom-call.27} parent=5 // pred_region
        %s48 = sand.u32 %s3, 1
        %s49 = sand.u32 %s3, 1
        %s50 = smul.addr %s49, 2
        %s51 = scalar_lea.vmem [#allocation1], %s50
        %s52 = sadd.s32 %s13, %s12
        %s53 = sadd.s32 %s52, %s11
        %s54 = sadd.s32 %s53, %s10
        %s55 = smul.addr %s54, 2
        %s56 = scalar_lea.vmem %s0, %s55
        // Predicated region
        $region17: #{custom-call.27} parent=15 // pred_check
          _
        $region18: #{custom-call.27} parent=15 // pred_check_branch
          %58 = sbr.rel (0) target = $region20
        $region19: #{custom-call.27} parent=15 // pred_region
          // Predicated region
          $region21: #{custom-call.27} parent=19 // pred_check
            _
          $region22: #{custom-call.27} parent=19 // pred_check_branch
            %60 = sbr.rel target = $region24
          $region23: #{custom-call.27} parent=19 // pred_region
            // Predicated region
            $region36: #{custom-call.27} parent=23 // pred_check
              _
            $region37: #{custom-call.27} parent=23 // pred_check_branch
              %76 = sbr.rel (0) target = $region39
            $region38: #{custom-call.27} parent=23 // pred_region
              %s78 = ssub.s32 4, 1
              loop: start=0, step=1, limit=1
              $region40: #{custom-call.27} parent=38 // loop_pre_header
                _
              $region41: #{custom-call.27} parent=38 // loop_header
                %s80 = sphi 0, %s84
                %p81 = scmp.ge.s32.totalorder %s80, 1
                %s85 = sphi %s56, %s56
                %s86 = sphi %s51, %s51
              $region42: #{custom-call.27} parent=38 // loop_header_branch
                %83 = sbr.rel (%p81) target = $region46
              $region43: #{custom-call.27} parent=38 // loop_body
                %v87 = vld [vmem:[%s85] sm:%s78]
                %88 = vst [vmem:[%s86] sm:%s78] %v87
              $region44: #{custom-call.27} parent=38 // loop_footer
                %s84 = sadd.s32 1, %s80
              $region45: #{custom-call.27} parent=38 // loop_footer_branch
                %79 = sbr.rel target = $region41
              $region46: #{custom-call.27} parent=38 // loop_exit
                _
            $region39: #{custom-call.27} parent=23 // pred_fallthru
              _
          $region24: #{custom-call.27} parent=19 // pred_fallthru
            _
          // Predicated region
          $region25: #{custom-call.27} parent=19 // pred_check
            _
          $region26: #{custom-call.27} parent=19 // pred_check_branch
            %62 = sbr.rel (0) target = $region28
          $region27: #{custom-call.27} parent=19 // pred_region
            %s64 = ssub.s32 4, 1
            loop: start=0, step=1, limit=1
            $region29: #{custom-call.27} parent=27 // loop_pre_header
              _
            $region30: #{custom-call.27} parent=27 // loop_header
              %s66 = sphi 0, %s70
              %p67 = scmp.ge.s32.totalorder %s66, 1
              %s71 = sphi %s56, %s56
              %s72 = sphi %s51, %s51
            $region31: #{custom-call.27} parent=27 // loop_header_branch
              %69 = sbr.rel (%p67) target = $region35
            $region32: #{custom-call.27} parent=27 // loop_body
              %v73 = vld [vmem:[%s71] sm:%s64]
              %74 = vst [vmem:[%s72] sm:%s64] %v73
            $region33: #{custom-call.27} parent=27 // loop_footer
              %s70 = sadd.s32 1, %s66
            $region34: #{custom-call.27} parent=27 // loop_footer_branch
              %65 = sbr.rel target = $region30
            $region35: #{custom-call.27} parent=27 // loop_exit
              _
          $region28: #{custom-call.27} parent=19 // pred_fallthru
            _
        $region20: #{custom-call.27} parent=15 // pred_fallthru
          _
        %89 = vnop
      $region16: #{custom-call.27} parent=5 // pred_fallthru
        _
      %p90 = scmp.le.s32.totalorder 1, %s3
      %p91 = scmp.lt.s32.totalorder %s3, 3
      %p92 = pnand %p90, %p91
      %p93 = pneg %p92
      // Predicated region
      $region47: #{custom-call.27} parent=5 // pred_check
        _
      $region48: #{custom-call.27} parent=5 // pred_check_branch
        %95 = sbr.rel (%p92) target = $region50
      $region49: #{custom-call.27} parent=5 // pred_region
        #allocation4 [shape = 'f32[2,2]{1,0}', space=vmem, size = 0x1000, scoped, tag = 'rescaled input a']
        %s96 = ssub.s32 %s3, 1
        %s97 = sand.u32 %s8, 1
        %s98 = sand.u32 %s8, 1
        %s99 = smul.addr %s98, 2
        %s100 = scalar_lea.vmem [#allocation1], %s99
        %s101 = sand.u32 %s8, 1
        %s102 = sand.u32 %s8, 1
        %s103 = smul.addr %s102, 2
        %s104 = scalar_lea.vmem [#allocation1], %s103
        %s105 = sand.u32 %s8, 1
        %s106 = sand.u32 %s8, 1
        %s107 = smul.addr %s106, 2
        %s108 = scalar_lea.vmem [#allocation3], %s107
        %s110 = sshll.u32 1, 2
        %s111 = ssub.s32 %s110, 1
        %v112 = vld [vmem:[%s104] sm:%s111]
        %113 = vst [vmem:[#allocation0] sm:%s111] %v112
        %v114 = vlaneseq
        %v115 = vand.u32 %v114, 127
        %vm116 = vcmp.lt.s32.totalorder %v115, 2
        %v117 = vlaneseq
        %v118 = vshrl.u32 %v117, 7
        %vm120 = vcmp.eq.s32.totalorder %v118, %v115
        %v121 = vld [vmem:[#allocation0] sm:$0xff]
        %v122 = vsel %vm120, %v121, 0.0
        %123 = vadd.xlane.f32.xlu0 %v122
        %v124 = vpop.xlane.xlu0 %123
        %vm125 = vcmp.ge.s32.totalorder %v118, %v115
        %vm126 = vmand %vm125, %vm116
        %v127 = vsel %vm126, %v121, 0.0
        %v128 = vrcp.pop %v124
        %v129 = vmul.f32 %v127, %v128
        %130 = vst [vmem:[#allocation4] sm:$0xff] %v129
        %v131 = vlaneseq
        %v132 = vand.u32 %v131, 127
        %v133 = vlaneseq
        %v134 = vshrl.u32 %v133, 7
        %vm136 = vcmp.eq.s32.totalorder %v132, %v134
        %v137 = vlaneseq
        %v138 = vand.u32 %v137, 127
        %vm139 = vcmp.eq.s32.totalorder %v138, 0
        %v140 = vsel %vm139, 1.0, -1.0
        %v141 = vsel %vm136, %v140, 0.0
        %s142 = scalar_lea.vmem [#allocation4], 1
        %v143 = vld [vmem:[%s142] ss:$0 sm:$0xff]
        %v144 = vxor.u32 %v143, 2147483648
        %v145 = vlaneseq
        %v146 = vand.u32 %v145, 127
        %vm147 = vcmp.eq.s32.totalorder %v146, 1
        %v148 = vmul.f32 %v144, %v141
        %149 = vadd.xlane.f32.xlu0 %v148
        %v150 = vpop.xlane.xlu0 %149
        %v151 = vsel %vm147, %v150, %v141
        %v152 = vrcp.pop %v124
        %v153 = vmul.f32 %v151, %v152
        %vm154 = vweird.f32 %v124
        %v155 = vsel %vm154, %v151, %v153
        %156 = vst [vmem:[#allocation2] sm:$0xff] %v155
        %s158 = sshll.u32 1, 2
        %s159 = ssub.s32 %s158, 1
        %v161 = vld [vmem:[#allocation2] sm:%s159]
        %s162 = sshll.u32 1, 2
        %s163 = ssub.s32 %s162, 1
        %164 = vst [vmem:[%s108] sm:%s163] %v161
        %s165 = sand.u32 %s8, 1
        %s166 = sand.u32 %s8, 1
        %s167 = smul.addr %s166, 2
        %s168 = scalar_lea.vmem [#allocation3], %s167
        %s169 = sadd.s32 %s17, %s16
        %s170 = sadd.s32 %s169, %s15
        %s171 = sadd.s32 %s170, %s14
        %s172 = smul.addr %s171, 2
        %s173 = scalar_lea.vmem %s1, %s172
        // Predicated region
        $region51: #{custom-call.27} parent=49 // pred_check
          _
        $region52: #{custom-call.27} parent=49 // pred_check_branch
          %175 = sbr.rel (0) target = $region54
        $region53: #{custom-call.27} parent=49 // pred_region
          // Predicated region
          $region55: #{custom-call.27} parent=53 // pred_check
            _
          $region56: #{custom-call.27} parent=53 // pred_check_branch
            %177 = sbr.rel target = $region58
          $region57: #{custom-call.27} parent=53 // pred_region
            // Predicated region
            $region70: #{custom-call.27} parent=57 // pred_check
              _
            $region71: #{custom-call.27} parent=57 // pred_check_branch
              %193 = sbr.rel (0) target = $region73
            $region72: #{custom-call.27} parent=57 // pred_region
              %s195 = ssub.s32 4, 1
              loop: start=0, step=1, limit=1
              $region74: #{custom-call.27} parent=72 // loop_pre_header
                _
              $region75: #{custom-call.27} parent=72 // loop_header
                %s197 = sphi 0, %s201
                %p198 = scmp.ge.s32.totalorder %s197, 1
                %s202 = sphi %s168, %s168
                %s203 = sphi %s173, %s173
              $region76: #{custom-call.27} parent=72 // loop_header_branch
                %200 = sbr.rel (%p198) target = $region80
              $region77: #{custom-call.27} parent=72 // loop_body
                %v204 = vld [vmem:[%s202] sm:%s195]
                %205 = vst [vmem:[%s203] sm:%s195] %v204
              $region78: #{custom-call.27} parent=72 // loop_footer
                %s201 = sadd.s32 1, %s197
              $region79: #{custom-call.27} parent=72 // loop_footer_branch
                %196 = sbr.rel target = $region75
              $region80: #{custom-call.27} parent=72 // loop_exit
                _
            $region73: #{custom-call.27} parent=57 // pred_fallthru
              _
          $region58: #{custom-call.27} parent=53 // pred_fallthru
            _
          // Predicated region
          $region59: #{custom-call.27} parent=53 // pred_check
            _
          $region60: #{custom-call.27} parent=53 // pred_check_branch
            %179 = sbr.rel (0) target = $region62
          $region61: #{custom-call.27} parent=53 // pred_region
            %s181 = ssub.s32 4, 1
            loop: start=0, step=1, limit=1
            $region63: #{custom-call.27} parent=61 // loop_pre_header
              _
            $region64: #{custom-call.27} parent=61 // loop_header
              %s183 = sphi 0, %s187
              %p184 = scmp.ge.s32.totalorder %s183, 1
              %s188 = sphi %s168, %s168
              %s189 = sphi %s173, %s173
            $region65: #{custom-call.27} parent=61 // loop_header_branch
              %186 = sbr.rel (%p184) target = $region69
            $region66: #{custom-call.27} parent=61 // loop_body
              %v190 = vld [vmem:[%s188] sm:%s181]
              %191 = vst [vmem:[%s189] sm:%s181] %v190
            $region67: #{custom-call.27} parent=61 // loop_footer
              %s187 = sadd.s32 1, %s183
            $region68: #{custom-call.27} parent=61 // loop_footer_branch
              %182 = sbr.rel target = $region64
            $region69: #{custom-call.27} parent=61 // loop_exit
              _
          $region62: #{custom-call.27} parent=53 // pred_fallthru
            _
        $region54: #{custom-call.27} parent=49 // pred_fallthru
          _
        %206 = vnop
      $region50: #{custom-call.27} parent=5 // pred_fallthru
        _
      %p207 = scmp.le.s32.totalorder 2, %s3
      // Predicated region
      $region81: #{custom-call.27} parent=5 // pred_check
        %p208 = pneg %p207
      $region82: #{custom-call.27} parent=5 // pred_check_branch
        %210 = sbr.rel (%p208) target = $region84
      $region83: #{custom-call.27} parent=5 // pred_region
        %s211 = ssub.s32 %s3, 2
        %s212 = sand.u32 %s9, 1
        %s213 = sand.u32 %s9, 1
        %s214 = smul.addr %s213, 2
        %s215 = scalar_lea.vmem [#allocation3], %s214
      $region84: #{custom-call.27} parent=5 // pred_fallthru
        _
    $region6: #{custom-call.27} parent=1 // loop_footer
      %s7 = sadd.s32 1, %s3
    $region7: #{custom-call.27} parent=1 // loop_footer_branch
      %2 = sbr.rel target = $region3
    $region8: #{custom-call.27} parent=1 // loop_exit
      _

// kernel: neg.9
$region0: #{neg.9}
  #allocation0 [shape = 's32[1]{0}', space=sflag, size = 0x4, scoped, tag = 'scoped memory for neg.9']
  %s0 = inlined_call_operand.vmem [shape: f32[2,2], index: 0, kind: input, shape index: {}]
  %s1 = inlined_call_operand.vmem [shape: f32[2,2], index: 1, kind: output, shape index: {}]
  %v2 = vld [vmem:[%s0] sm:$0x3]
  %3 = xla_tuple %v2
  %4 = xla_tuple %3
  %v5 = vxor.u32 %v2, 2147483648
  %6 = xla_tuple %v5
  %7 = vst [vmem:[%s1] sm:$0x3] %v5

// kernel: custom-call.22
$region0: #{custom-call.22}
  %s0 = inlined_call_operand.vmem [shape: f32[2,4,4], index: 0, kind: input, shape index: {}]
  %s1 = inlined_call_operand.vmem [shape: f32[2,4,4], index: 1, kind: output, shape index: {0}]
  %s2 = inlined_call_operand.hbm [shape: s32[2,4], index: 2, kind: output, shape index: {1}]
  %s3 = inlined_call_operand.vmem [shape: s32[2,4], index: 3, kind: output, shape index: {2}]
  %4 = xla_tuple %s1, %s2, %s3
  $region1: #{custom-call.22} parent=0
    #allocation0 [shape = 'u8[4096]{0}', space=vmem, size = 0x1000, scoped, tag = 'operand span for operand 0']
    #allocation1 [shape = 'u8[4096]{0}', space=vmem, size = 0x1000, scoped, tag = 'packed  for operand 0']
    #allocation2 [shape = 'u8[4096]{0}', space=vmem, size = 0x1000, scoped, tag = 'operand span for operand 1']
    #allocation3 [shape = 'u8[4096]{0}', space=vmem, size = 0x1000, scoped, tag = 'packed  for operand 1']
    #allocation4 [shape = 'u8[4096]{0}', space=vmem, size = 0x1000, scoped, tag = 'operand span for operand 2']
    #allocation5 [shape = 'u8[2048]{0}', space=vmem, size = 0x800, scoped, tag = 'packed  for operand 2']
    #allocation6 [shape = 's32[2]{0}', space=sflag, size = 0x8, scoped, tag = 'scoped memory for custom-call.22']
    #allocation7 [shape = 'u8[4096]{0}', space=vmem, size = 0x1000, scoped, tag = 'operand span for operand 3']
    #allocation8 [shape = 'u8[2048]{0}', space=vmem, size = 0x800, scoped, tag = 'packed  for operand 3']
    %5 = vsyncpa [#allocation6], 0
    %s6 = scalar_lea.sflag [#allocation6], 1
    %7 = vsyncpa %s6, 0
    loop: start=0, step=1, limit=4
    $region2: #{custom-call.22} parent=1 // loop_pre_header
      _
    $region3: #{custom-call.22} parent=1 // loop_header
      %s9 = sphi 0, %s13
      %p10 = scmp.ge.s32.totalorder %s9, 4
      %s21 = sphi 0, %s23
      %s24 = sphi 0, %s21
      %s25 = sphi 0, %s24
      %s41 = sphi 0, %s25
      %s49 = sphi 0, %s51
      %s52 = sphi 0, %s49
      %s53 = sphi 0, %s52
      %s69 = sphi 0, %s53
    $region4: #{custom-call.22} parent=1 // loop_header_branch
      %12 = sbr.rel (%p10) target = $region8
    $region5: #{custom-call.22} parent=1 // loop_body
      %s14 = ssub.s32 %s9, 1
      %s15 = ssub.s32 %s9, 2
      %s16 = sadd.s32 %s9, 1
      %s17 = sshrl.u32 %s9, 3
      %s18 = sshrl.u32 %s16, 3
      %s19 = ssub.s32 %s17, %s18
      %p20 = scmp.eq.s32.totalorder %s19, 0
      %s22 = sadd.s32 %s21, 1
      %s23 = scalar_select %p20, %s21, %s22
      %p26 = pneg %p20
      %p27 = scmp.eq.s32.totalorder %s9, 1
      %p28 = por %p26, %p27
      %p29 = scmp.ne.s32.totalorder %s21, %s24
      %p30 = scmp.eq.s32.totalorder %s9, 0
      %p31 = por %p29, %p30
      %p32 = scmp.ne.s32.totalorder %s21, %s24
      %p33 = scmp.eq.s32.totalorder %s14, 1
      %p34 = por %p32, %p33
      %p35 = scmp.ne.s32.totalorder %s24, %s25
      %p36 = scmp.eq.s32.totalorder %s14, 0
      %p37 = por %p35, %p36
      %p38 = scmp.ne.s32.totalorder %s24, %s25
      %p39 = scmp.eq.s32.totalorder %s15, 1
      %p40 = por %p38, %p39
      %p42 = scmp.ne.s32.totalorder %s25, %s41
      %p43 = scmp.eq.s32.totalorder %s15, 0
      %p44 = por %p42, %p43
      %s45 = sshrl.u32 %s9, 3
      %s46 = sshrl.u32 %s16, 3
      %s47 = ssub.s32 %s45, %s46
      %p48 = scmp.eq.s32.totalorder %s47, 0
      %s50 = sadd.s32 %s49, 1
      %s51 = scalar_select %p48, %s49, %s50
      %p54 = pneg %p48
      %p55 = scmp.eq.s32.totalorder %s9, 1
      %p56 = por %p54, %p55
      %p57 = scmp.ne.s32.totalorder %s49, %s52
      %p58 = scmp.eq.s32.totalorder %s9, 0
      %p59 = por %p57, %p58
      %p60 = scmp.ne.s32.totalorder %s49, %s52
      %p61 = scmp.eq.s32.totalorder %s14, 1
      %p62 = por %p60, %p61
      %p63 = scmp.ne.s32.totalorder %s52, %s53
      %p64 = scmp.eq.s32.totalorder %s14, 0
      %p65 = por %p63, %p64
      %p66 = scmp.ne.s32.totalorder %s52, %s53
      %p67 = scmp.eq.s32.totalorder %s15, 1
      %p68 = por %p66, %p67
      %p70 = scmp.ne.s32.totalorder %s53, %s69
      %p71 = scmp.eq.s32.totalorder %s15, 0
      %p72 = por %p70, %p71
      %p73 = scmp.le.s32.totalorder 1, %s9
      %p74 = scmp.lt.s32.totalorder %s9, 3
      %p75 = pnand %p73, %p74
      %p76 = pneg %p75
      // Predicated region
      $region9: #{custom-call.22} parent=5 // pred_check
        _
      $region10: #{custom-call.22} parent=5 // pred_check_branch
        %78 = sbr.rel (%p75) target = $region12
      $region11: #{custom-call.22} parent=5 // pred_region
        %s79 = ssub.s32 %s9, 1
      $region12: #{custom-call.22} parent=5 // pred_fallthru
        _
      %p80 = scmp.lt.s32.totalorder %s9, 2
      // Predicated region
      $region13: #{custom-call.22} parent=5 // pred_check
        %p81 = pneg %p80
      $region14: #{custom-call.22} parent=5 // pred_check_branch
        %83 = sbr.rel (%p81) target = $region16
      $region15: #{custom-call.22} parent=5 // pred_region
        %s84 = sand.u32 %s9, 1
        %s85 = sand.u32 %s9, 1
        %s86 = smul.addr %s85, 4
        %s87 = scalar_lea.vmem [#allocation1], %s86
        %s88 = smul.addr %s9, 4
        %s89 = scalar_lea.vmem %s0, %s88
        // Predicated region
        $region17: #{custom-call.22} parent=15 // pred_check
          _
        $region18: #{custom-call.22} parent=15 // pred_check_branch
          %91 = sbr.rel (0) target = $region20
        $region19: #{custom-call.22} parent=15 // pred_region
          // Predicated region
          $region21: #{custom-call.22} parent=19 // pred_check
            _
          $region22: #{custom-call.22} parent=19 // pred_check_branch
            %93 = sbr.rel target = $region24
          $region23: #{custom-call.22} parent=19 // pred_region
            // Predicated region
            $region36: #{custom-call.22} parent=23 // pred_check
              _
            $region37: #{custom-call.22} parent=23 // pred_check_branch
              %109 = sbr.rel (0) target = $region39
            $region38: #{custom-call.22} parent=23 // pred_region
              %s111 = ssub.s32 16, 1
              loop: start=0, step=1, limit=1
              $region40: #{custom-call.22} parent=38 // loop_pre_header
                _
              $region41: #{custom-call.22} parent=38 // loop_header
                %s113 = sphi 0, %s117
                %p114 = scmp.ge.s32.totalorder %s113, 1
                %s118 = sphi %s89, %s89
                %s119 = sphi %s87, %s87
              $region42: #{custom-call.22} parent=38 // loop_header_branch
                %116 = sbr.rel (%p114) target = $region46
              $region43: #{custom-call.22} parent=38 // loop_body
                %v120 = vld [vmem:[%s118] sm:%s111]
                %121 = vst [vmem:[%s119] sm:%s111] %v120
              $region44: #{custom-call.22} parent=38 // loop_footer
                %s117 = sadd.s32 1, %s113
              $region45: #{custom-call.22} parent=38 // loop_footer_branch
                %112 = sbr.rel target = $region41
              $region46: #{custom-call.22} parent=38 // loop_exit
                _
            $region39: #{custom-call.22} parent=23 // pred_fallthru
              _
          $region24: #{custom-call.22} parent=19 // pred_fallthru
            _
          // Predicated region
          $region25: #{custom-call.22} parent=19 // pred_check
            _
          $region26: #{custom-call.22} parent=19 // pred_check_branch
            %95 = sbr.rel (0) target = $region28
          $region27: #{custom-call.22} parent=19 // pred_region
            %s97 = ssub.s32 16, 1
            loop: start=0, step=1, limit=1
            $region29: #{custom-call.22} parent=27 // loop_pre_header
              _
            $region30: #{custom-call.22} parent=27 // loop_header
              %s99 = sphi 0, %s103
              %p100 = scmp.ge.s32.totalorder %s99, 1
              %s104 = sphi %s89, %s89
              %s105 = sphi %s87, %s87
            $region31: #{custom-call.22} parent=27 // loop_header_branch
              %102 = sbr.rel (%p100) target = $region35
            $region32: #{custom-call.22} parent=27 // loop_body
              %v106 = vld [vmem:[%s104] sm:%s97]
              %107 = vst [vmem:[%s105] sm:%s97] %v106
            $region33: #{custom-call.22} parent=27 // loop_footer
              %s103 = sadd.s32 1, %s99
            $region34: #{custom-call.22} parent=27 // loop_footer_branch
              %98 = sbr.rel target = $region30
            $region35: #{custom-call.22} parent=27 // loop_exit
              _
          $region28: #{custom-call.22} parent=19 // pred_fallthru
            _
        $region20: #{custom-call.22} parent=15 // pred_fallthru
          _
        %122 = vnop
      $region16: #{custom-call.22} parent=5 // pred_fallthru
        _
      %p123 = scmp.le.s32.totalorder 1, %s9
      %p124 = scmp.lt.s32.totalorder %s9, 3
      %p125 = pnand %p123, %p124
      %p126 = pneg %p125
      // Predicated region
      $region47: #{custom-call.22} parent=5 // pred_check
        _
      $region48: #{custom-call.22} parent=5 // pred_check_branch
        %128 = sbr.rel (%p125) target = $region50
      $region49: #{custom-call.22} parent=5 // pred_region
        #allocation9 [shape = 's32[4,128]{1,0}', space=vmem, size = 0x1000, scoped, tag = 'scratch for permutations']
        %s129 = ssub.s32 %s9, 1
        %s130 = sand.u32 %s14, 1
        %s131 = sand.u32 %s14, 1
        %s132 = smul.addr %s131, 4
        %s133 = scalar_lea.vmem [#allocation1], %s132
        %s134 = sand.u32 %s14, 1
        %s135 = sand.u32 %s14, 1
        %s136 = smul.addr %s135, 4
        %s137 = scalar_lea.vmem [#allocation1], %s136
        %s138 = sand.u32 %s14, 1
        %s139 = sand.u32 %s14, 1
        %s140 = smul.addr %s139, 4
        %s141 = scalar_lea.vmem [#allocation3], %s140
        %p142 = pneg %p37
        %p143 = pneg %p34
        %s144 = sand.u32 %s24, 1
        %s145 = scalar_lea.sflag [#allocation6], %s144
        %s146 = sand.u32 %s24, 1
        %s147 = smul.addr %s146, 2
        %s148 = scalar_lea.vmem [#allocation5], %s147
        %p149 = pneg %p65
        %p150 = pneg %p62
        %s151 = sand.u32 %s52, 1
        %s152 = sand.u32 %s52, 1
        %s153 = smul.addr %s152, 2
        %s154 = scalar_lea.vmem [#allocation8], %s153
        %s156 = sshll.u32 1, 4
        %s157 = ssub.s32 %s156, 1
        %v158 = vld [vmem:[%s137] sm:%s157]
        %159 = vst [vmem:[#allocation0] sm:%s157] %v158
        %s160 = sshrl.u32 %s14, 3
        %s161 = sshrl.u32 %s14, 3
        %v162 = vld [vmem:[#allocation0] sm:$0xff]
        %163 = vst [vmem:[#allocation2] sm:$0xff] %v162
        %s164 = sand.u32 %s14, 7
        %s165 = scalar_lea.vmem [#allocation4], %s164
        %s166 = sand.u32 %s14, 7
        %s167 = scalar_lea.vmem [#allocation7], %s166
        %168 = vst [vmem:[%s165] sm:$0x1] 0
        %v169 = vlaneseq
        %v170 = vshrl.u32 %v169, 7
        %v171 = vmov %v170
        %173 = vst [vmem:[#allocation9] sm:$0xff] %v171
        loop: start=0, step=1, limit=4
        $region52: #{custom-call.22} parent=49 // loop_pre_header
          _
        $region53: #{custom-call.22} parent=49 // loop_header
          %s175 = sphi 0, %s179
          %p176 = scmp.ge.s32.totalorder %s175, 4
        $region54: #{custom-call.22} parent=49 // loop_header_branch
          %178 = sbr.rel (%p176) target = $region58
        $region55: #{custom-call.22} parent=49 // loop_body
          %v180 = vstv %s175
          %v181 = vlaneseq
          %v182 = vshrl.u32 %v181, 7
          %v183 = vmov %v182
          %v184 = vld [vmem:[#allocation2] sm:$0xff]
          %v185 = vand.u32 2147483647, %v184
          %v187 = vstv %s175
          %vm188 = vcmp.ge.s32.totalorder %v183, %v187
          %vm189 = vcmp.lt.s32.totalorder %v183, 4
          %vm190 = vmand %vm188, %vm189
          %vm191 = vcmp.lt.f32.partialorder -inf, %v185
          %vm192 = vmand %vm190, %vm191
          %v193 = vsel %vm192, %v183, %v180
          %v194 = vsel %vm192, %v185, -inf
          %v195 = vrot.slane %v194, 1
          %v196 = vrot.slane %v193, 1
          %vm197 = vcmp.ge.f32.partialorder %v195, %v194
          %v198 = vsel %vm197, %v195, %v194
          %v199 = vsel %vm197, %v196, %v193
          %v200 = vrot.slane %v195, 1
          %v201 = vrot.slane %v196, 1
          %vm202 = vcmp.ge.f32.partialorder %v200, %v198
          %v203 = vsel %vm202, %v200, %v198
          %v204 = vsel %vm202, %v201, %v199
          %v205 = vrot.slane %v200, 1
          %v206 = vrot.slane %v201, 1
          %vm207 = vcmp.ge.f32.partialorder %v205, %v203
          %v208 = vsel %vm207, %v205, %v203
          %v209 = vsel %vm207, %v206, %v204
          %v210 = vrot.slane %v205, 1
          %v211 = vrot.slane %v206, 1
          %vm212 = vcmp.ge.f32.partialorder %v210, %v208
          %v213 = vsel %vm212, %v210, %v208
          %v214 = vsel %vm212, %v211, %v209
          %v215 = vrot.slane %v210, 1
          %v216 = vrot.slane %v211, 1
          %vm217 = vcmp.ge.f32.partialorder %v215, %v213
          %v218 = vsel %vm217, %v215, %v213
          %v219 = vsel %vm217, %v216, %v214
          %v220 = vrot.slane %v215, 1
          %v221 = vrot.slane %v216, 1
          %vm222 = vcmp.ge.f32.partialorder %v220, %v218
          %v223 = vsel %vm222, %v220, %v218
          %v224 = vsel %vm222, %v221, %v219
          %v225 = vrot.slane %v220, 1
          %v226 = vrot.slane %v221, 1
          %vm227 = vcmp.ge.f32.partialorder %v225, %v223
          %v228 = vsel %vm227, %v225, %v223
          %v229 = vsel %vm227, %v226, %v224
          %s230 = ssub.s32 128, %s175
          %231 = vrot.lane.b32.xlu0 %v229, %s230
          %v232 = vpop.permute.xlu0 %231
          %s233 = vtos %v232
          %v234 = vstv %s175
          %v235 = vlaneseq
          %v236 = vand.u32 %v235, 127
          %vm237 = vcmp.eq.s32.totalorder %v236, %v234
          %v238 = vstv %s233
          %v239 = vld [vmem:[%s165] ss:$0 sm:$0xff]
          %v240 = vsel %vm237, %v238, %v239
          %241 = vst [vmem:[%s165] sm:$0x1] %v240
          %s242 = scalar_lea.vmem [#allocation2], %s175
          %s243 = scalar_lea.vmem [#allocation2], %s233
          %v244 = vld [vmem:[%s242] ss:$0 sm:$0xff]
          %v245 = vld [vmem:[%s243] ss:$0 sm:$0xff]
          %246 = vst [vmem:[%s243] sm:$0x1] %v244
          %247 = vst [vmem:[%s242] sm:$0x1] %v245
          %s248 = scalar_lea.vmem [#allocation9], %s175
          %s249 = scalar_lea.vmem [#allocation9], %s233
          %v250 = vld [vmem:[%s248] ss:$0 sm:$0xff]
          %v251 = vld [vmem:[%s249] ss:$0 sm:$0xff]
          %252 = vst [vmem:[%s249] sm:$0x1] %v250
          %253 = vst [vmem:[%s248] sm:$0x1] %v251
          %vm254 = vcmp.ne.f32.partialorder %v245, 0.0
          %vm255 = vmand %vm237, %vm254
          %v256 = vsel %vm255, %v245, 1.0
          %v257 = vlaneseq
          %v258 = vand.u32 %v257, 127
          %v259 = vstv %s175
          %vm260 = vcmp.gt.s32.totalorder %v258, %v259
          %v261 = vsel %vm260, %v245, 0.0
          %v262 = vlaneseq
          %v263 = vshrl.u32 %v262, 7
          %v264 = vmov %v263
          %v265 = vld [vmem:[#allocation2] sm:$0xff]
          %v267 = vstv %s175
          %vm268 = vcmp.gt.s32.totalorder %v264, %v267
          %v269 = vsel %vm268, %v256, 1.0
          %v270 = vrcp.pop %v269
          %v271 = vmul.f32 %v265, %v270
          %vm272 = vmand %vm268, %vm237
          %v273 = vsel %vm272, %v271, 0.0
          %274 = vadd.xlane.f32.xlu0 %v273
          %v275 = vpop.xlane.xlu0 %274
          %v276 = vmul.f32 %v275, %v261
          %v277 = vsub.f32 %v271, %v276
          %278 = vst [vmem:[#allocation2] sm:$0xff] %v277
        $region56: #{custom-call.22} parent=49 // loop_footer
          %s179 = sadd.s32 1, %s175
        $region57: #{custom-call.22} parent=49 // loop_footer_branch
          %174 = sbr.rel target = $region53
        $region58: #{custom-call.22} parent=49 // loop_exit
          _
        %v279 = vld [vmem:[#allocation9] sm:$0xff]
        %s280 = scalar_lea.vmem [#allocation9], 8
        %s281 = scalar_lea.vmem [#allocation9], 16
        %s282 = scalar_lea.vmem [#allocation9], 24
        %s283 = scalar_lea.vmem [#allocation9], 32
        %s284 = scalar_lea.vmem [#allocation9], 40
        %s285 = scalar_lea.vmem [#allocation9], 48
        %s286 = scalar_lea.vmem [#allocation9], 56
        %s287 = scalar_lea.vmem [#allocation9], 64
        %s288 = scalar_lea.vmem [#allocation9], 72
        %s289 = scalar_lea.vmem [#allocation9], 80
        %s290 = scalar_lea.vmem [#allocation9], 88
        %s291 = scalar_lea.vmem [#allocation9], 96
        %s292 = scalar_lea.vmem [#allocation9], 104
        %s293 = scalar_lea.vmem [#allocation9], 112
        %s294 = scalar_lea.vmem [#allocation9], 120
        %295 = vxpose.xlu0.b32.start [1/16] %v279, 128
        %296 = vxpose.xlu0.b32.cont [2/16] 0, 128
        %297 = vxpose.xlu0.b32.cont [3/16] 0, 128
        %298 = vxpose.xlu0.b32.cont [4/16] 0, 128
        %299 = vxpose.xlu0.b32.cont [5/16] 0, 128
        %300 = vxpose.xlu0.b32.cont [6/16] 0, 128
        %301 = vxpose.xlu0.b32.cont [7/16] 0, 128
        %302 = vxpose.xlu0.b32.cont [8/16] 0, 128
        %303 = vxpose.xlu0.b32.cont [9/16] 0, 128
        %304 = vxpose.xlu0.b32.cont [10/16] 0, 128
        %305 = vxpose.xlu0.b32.cont [11/16] 0, 128
        %306 = vxpose.xlu0.b32.cont [12/16] 0, 128
        %307 = vxpose.xlu0.b32.cont [13/16] 0, 128
        %308 = vxpose.xlu0.b32.cont [14/16] 0, 128
        %309 = vxpose.xlu0.b32.cont [15/16] 0, 128
        %310 = vxpose.xlu0.b32.end [16/16] 0, 128
        %v311 = vpop.trf.xlu0
        %v312 = vpop.trf.xlu0
        %v313 = vpop.trf.xlu0
        %v314 = vpop.trf.xlu0
        %v315 = vpop.trf.xlu0
        %v316 = vpop.trf.xlu0
        %v317 = vpop.trf.xlu0
        %v318 = vpop.trf.xlu0
        %v319 = vpop.trf.xlu0
        %v320 = vpop.trf.xlu0
        %v321 = vpop.trf.xlu0
        %v322 = vpop.trf.xlu0
        %v323 = vpop.trf.xlu0
        %v324 = vpop.trf.xlu0
        %v325 = vpop.trf.xlu0
        %v326 = vpop.trf.xlu0
        %327 = vst [vmem:[%s167] sm:$0x1] %v311
        %s329 = sshll.u32 1, 4
        %s330 = ssub.s32 %s329, 1
        %v332 = vld [vmem:[#allocation2] sm:%s330]
        %s333 = sshll.u32 1, 4
        %s334 = ssub.s32 %s333, 1
        %335 = vst [vmem:[%s141] sm:%s334] %v332
        %s337 = sshll.u32 1, 2
        %s338 = ssub.s32 %s337, 1
        %v340 = vld [vmem:[#allocation4] sm:%s338]
        %s341 = sshll.u32 1, 2
        %s342 = ssub.s32 %s341, 1
        %343 = vst [vmem:[%s148] sm:%s342] %v340
        %s345 = sshll.u32 1, 2
        %s346 = ssub.s32 %s345, 1
        %v348 = vld [vmem:[#allocation7] sm:%s346]
        %s349 = sshll.u32 1, 2
        %s350 = ssub.s32 %s349, 1
        %351 = vst [vmem:[%s154] sm:%s350] %v348
        %s352 = sand.u32 %s14, 1
        %s353 = sand.u32 %s14, 1
        %s354 = smul.addr %s353, 4
        %s355 = scalar_lea.vmem [#allocation3], %s354
        %s356 = sand.u32 %s24, 1
        %s357 = scalar_lea.sflag [#allocation6], %s356
        %s358 = sand.u32 %s24, 1
        %s359 = smul.addr %s358, 2
        %s360 = scalar_lea.vmem [#allocation5], %s359
        %s361 = sand.u32 %s52, 1
        %s362 = sand.u32 %s52, 1
        %s363 = smul.addr %s362, 2
        %s364 = scalar_lea.vmem [#allocation8], %s363
        %s365 = smul.addr %s14, 4
        %s366 = scalar_lea.vmem %s1, %s365
        // Predicated region
        $region59: #{custom-call.22} parent=49 // pred_check
          _
        $region60: #{custom-call.22} parent=49 // pred_check_branch
          %368 = sbr.rel (0) target = $region62
        $region61: #{custom-call.22} parent=49 // pred_region
          // Predicated region
          $region63: #{custom-call.22} parent=61 // pred_check
            _
          $region64: #{custom-call.22} parent=61 // pred_check_branch
            %370 = sbr.rel target = $region66
          $region65: #{custom-call.22} parent=61 // pred_region
            // Predicated region
            $region78: #{custom-call.22} parent=65 // pred_check
              _
            $region79: #{custom-call.22} parent=65 // pred_check_branch
              %386 = sbr.rel (0) target = $region81
            $region80: #{custom-call.22} parent=65 // pred_region
              %s388 = ssub.s32 16, 1
              loop: start=0, step=1, limit=1
              $region82: #{custom-call.22} parent=80 // loop_pre_header
                _
              $region83: #{custom-call.22} parent=80 // loop_header
                %s390 = sphi 0, %s394
                %p391 = scmp.ge.s32.totalorder %s390, 1
                %s395 = sphi %s355, %s355
                %s396 = sphi %s366, %s366
              $region84: #{custom-call.22} parent=80 // loop_header_branch
                %393 = sbr.rel (%p391) target = $region88
              $region85: #{custom-call.22} parent=80 // loop_body
                %v397 = vld [vmem:[%s395] sm:%s388]
                %398 = vst [vmem:[%s396] sm:%s388] %v397
              $region86: #{custom-call.22} parent=80 // loop_footer
                %s394 = sadd.s32 1, %s390
              $region87: #{custom-call.22} parent=80 // loop_footer_branch
                %389 = sbr.rel target = $region83
              $region88: #{custom-call.22} parent=80 // loop_exit
                _
            $region81: #{custom-call.22} parent=65 // pred_fallthru
              _
          $region66: #{custom-call.22} parent=61 // pred_fallthru
            _
          // Predicated region
          $region67: #{custom-call.22} parent=61 // pred_check
            _
          $region68: #{custom-call.22} parent=61 // pred_check_branch
            %372 = sbr.rel (0) target = $region70
          $region69: #{custom-call.22} parent=61 // pred_region
            %s374 = ssub.s32 16, 1
            loop: start=0, step=1, limit=1
            $region71: #{custom-call.22} parent=69 // loop_pre_header
              _
            $region72: #{custom-call.22} parent=69 // loop_header
              %s376 = sphi 0, %s380
              %p377 = scmp.ge.s32.totalorder %s376, 1
              %s381 = sphi %s355, %s355
              %s382 = sphi %s366, %s366
            $region73: #{custom-call.22} parent=69 // loop_header_branch
              %379 = sbr.rel (%p377) target = $region77
            $region74: #{custom-call.22} parent=69 // loop_body
              %v383 = vld [vmem:[%s381] sm:%s374]
              %384 = vst [vmem:[%s382] sm:%s374] %v383
            $region75: #{custom-call.22} parent=69 // loop_footer
              %s380 = sadd.s32 1, %s376
            $region76: #{custom-call.22} parent=69 // loop_footer_branch
              %375 = sbr.rel target = $region72
            $region77: #{custom-call.22} parent=69 // loop_exit
              _
          $region70: #{custom-call.22} parent=61 // pred_fallthru
            _
        $region62: #{custom-call.22} parent=49 // pred_fallthru
          _
        %399 = vnop
        // Predicated region
        $region89: #{custom-call.22} parent=49 // pred_check
          %p400 = pneg %p34
        $region90: #{custom-call.22} parent=49 // pred_check_branch
          %402 = sbr.rel (%p400) target = $region92
        $region91: #{custom-call.22} parent=49 // pred_region
          %s403 = sshrl.u32 %s14, 3
          %s405 = ssub.s32 32, 32
          %406 = vsyncadd %s357, %s405
          %s407 = smul.addr %s403, 32
          %s408 = scalar_lea.hbm %s2, %s407
          %s410 = sshll.u32 %s360, 4
          %s411 = int_to_ptr.vmem [resolvable:$true] %s410
          %413 = dma.vmem_to_hbm [thread:$0]  %s411, 32, %s408, %s357
        $region92: #{custom-call.22} parent=49 // pred_fallthru
          _
        // Predicated region
        $region93: #{custom-call.22} parent=49 // pred_check
          %p414 = pneg %p62
        $region94: #{custom-call.22} parent=49 // pred_check_branch
          %416 = sbr.rel (%p414) target = $region96
        $region95: #{custom-call.22} parent=49 // pred_region
          %s417 = sshrl.u32 %s14, 3
          %s418 = smul.addr %s417, 2
          %s419 = scalar_lea.vmem %s3, %s418
          // Predicated region
          $region97: #{custom-call.22} parent=95 // pred_check
            _
          $region98: #{custom-call.22} parent=95 // pred_check_branch
            %421 = sbr.rel (0) target = $region100
          $region99: #{custom-call.22} parent=95 // pred_region
            // Predicated region
            $region101: #{custom-call.22} parent=99 // pred_check
              _
            $region102: #{custom-call.22} parent=99 // pred_check_branch
              %423 = sbr.rel target = $region104
            $region103: #{custom-call.22} parent=99 // pred_region
              // Predicated region
              $region116: #{custom-call.22} parent=103 // pred_check
                _
              $region117: #{custom-call.22} parent=103 // pred_check_branch
                %439 = sbr.rel (0) target = $region119
              $region118: #{custom-call.22} parent=103 // pred_region
                %s441 = ssub.s32 4, 1
                loop: start=0, step=1, limit=1
                $region120: #{custom-call.22} parent=118 // loop_pre_header
                  _
                $region121: #{custom-call.22} parent=118 // loop_header
                  %s443 = sphi 0, %s447
                  %p444 = scmp.ge.s32.totalorder %s443, 1
                  %s448 = sphi %s364, %s364
                  %s449 = sphi %s419, %s419
                $region122: #{custom-call.22} parent=118 // loop_header_branch
                  %446 = sbr.rel (%p444) target = $region126
                $region123: #{custom-call.22} parent=118 // loop_body
                  %v450 = vld [vmem:[%s448] sm:%s441]
                  %451 = vst [vmem:[%s449] sm:%s441] %v450
                $region124: #{custom-call.22} parent=118 // loop_footer
                  %s447 = sadd.s32 1, %s443
                $region125: #{custom-call.22} parent=118 // loop_footer_branch
                  %442 = sbr.rel target = $region121
                $region126: #{custom-call.22} parent=118 // loop_exit
                  _
              $region119: #{custom-call.22} parent=103 // pred_fallthru
                _
            $region104: #{custom-call.22} parent=99 // pred_fallthru
              _
            // Predicated region
            $region105: #{custom-call.22} parent=99 // pred_check
              _
            $region106: #{custom-call.22} parent=99 // pred_check_branch
              %425 = sbr.rel (0) target = $region108
            $region107: #{custom-call.22} parent=99 // pred_region
              %s427 = ssub.s32 4, 1
              loop: start=0, step=1, limit=1
              $region109: #{custom-call.22} parent=107 // loop_pre_header
                _
              $region110: #{custom-call.22} parent=107 // loop_header
                %s429 = sphi 0, %s433
                %p430 = scmp.ge.s32.totalorder %s429, 1
                %s434 = sphi %s364, %s364
                %s435 = sphi %s419, %s419
              $region111: #{custom-call.22} parent=107 // loop_header_branch
                %432 = sbr.rel (%p430) target = $region115
              $region112: #{custom-call.22} parent=107 // loop_body
                %v436 = vld [vmem:[%s434] sm:%s427]
                %437 = vst [vmem:[%s435] sm:%s427] %v436
              $region113: #{custom-call.22} parent=107 // loop_footer
                %s433 = sadd.s32 1, %s429
              $region114: #{custom-call.22} parent=107 // loop_footer_branch
                %428 = sbr.rel target = $region110
              $region115: #{custom-call.22} parent=107 // loop_exit
                _
            $region108: #{custom-call.22} parent=99 // pred_fallthru
              _
          $region100: #{custom-call.22} parent=95 // pred_fallthru
            _
          %452 = vnop
        $region96: #{custom-call.22} parent=49 // pred_fallthru
          _
      $region50: #{custom-call.22} parent=5 // pred_fallthru
        _
      %p453 = scmp.le.s32.totalorder 2, %s9
      // Predicated region
      $region127: #{custom-call.22} parent=5 // pred_check
        %p454 = pneg %p453
      $region128: #{custom-call.22} parent=5 // pred_check_branch
        %456 = sbr.rel (%p454) target = $region130
      $region129: #{custom-call.22} parent=5 // pred_region
        %s457 = ssub.s32 %s9, 2
        %s458 = sand.u32 %s15, 1
        %s459 = sand.u32 %s15, 1
        %s460 = smul.addr %s459, 4
        %s461 = scalar_lea.vmem [#allocation3], %s460
        // Predicated region
        $region131: #{custom-call.22} parent=129 // pred_check
          %p462 = pneg %p40
        $region132: #{custom-call.22} parent=129 // pred_check_branch
          %464 = sbr.rel (%p462) target = $region134
        $region133: #{custom-call.22} parent=129 // pred_region
          %s465 = sand.u32 %s25, 1
          %s466 = scalar_lea.sflag [#allocation6], %s465
          %s467 = sand.u32 %s25, 1
          %s468 = smul.addr %s467, 2
          %s469 = scalar_lea.vmem [#allocation5], %s468
          %470 = dma.done %s466, 32
        $region134: #{custom-call.22} parent=129 // pred_fallthru
          _
        // Predicated region
        $region135: #{custom-call.22} parent=129 // pred_check
          %p471 = pneg %p68
        $region136: #{custom-call.22} parent=129 // pred_check_branch
          %473 = sbr.rel (%p471) target = $region138
        $region137: #{custom-call.22} parent=129 // pred_region
          %s474 = sand.u32 %s53, 1
          %s475 = sand.u32 %s53, 1
          %s476 = smul.addr %s475, 2
          %s477 = scalar_lea.vmem [#allocation8], %s476
        $region138: #{custom-call.22} parent=129 // pred_fallthru
          _
      $region130: #{custom-call.22} parent=5 // pred_fallthru
        _
    $region6: #{custom-call.22} parent=1 // loop_footer
      %s13 = sadd.s32 1, %s9
    $region7: #{custom-call.22} parent=1 // loop_footer_branch
      %8 = sbr.rel target = $region3
    $region8: #{custom-call.22} parent=1 // loop_exit
      _
    %478 = vsyncpa [#allocation6], 1
    %s479 = scalar_lea.sflag [#allocation6], 1
    %480 = vsyncpa %s479, 1

// kernel: custom-call.23
$region0: #{custom-call.23}
  %s0 = inlined_call_operand.vmem [shape: f32[2,1,4,4], index: 0, kind: input, shape index: {}]
  %s1 = inlined_call_operand.vmem [shape: f32[2,1,4,4], index: 1, kind: output, shape index: {}]
  $region1: #{custom-call.23} parent=0
    #allocation0 [shape = 'u8[4096]{0}', space=vmem, size = 0x1000, scoped, tag = 'operand span for operand 0']
    #allocation1 [shape = 'u8[4096]{0}', space=vmem, size = 0x1000, scoped, tag = 'packed  for operand 0']
    #allocation2 [shape = 'u8[4096]{0}', space=vmem, size = 0x1000, scoped, tag = 'operand span for operand 1']
    #allocation3 [shape = 'u8[4096]{0}', space=vmem, size = 0x1000, scoped, tag = 'packed  for operand 1']
    loop: start=0, step=1, limit=4
    $region2: #{custom-call.23} parent=1 // loop_pre_header
      _
    $region3: #{custom-call.23} parent=1 // loop_header
      %s3 = sphi 0, %s7
      %p4 = scmp.ge.s32.totalorder %s3, 4
      %s10 = sphi 0, %s36
      %s11 = sphi 0, %s32
      %s12 = sphi 0, %s28
      %s13 = sphi 0, %s24
      %s14 = sphi 0, %s10
      %s15 = sphi 0, %s11
      %s16 = sphi 0, %s12
      %s17 = sphi 0, %s13
      %s18 = sphi 0, %s14
      %s19 = sphi 0, %s15
      %s20 = sphi 0, %s16
      %s21 = sphi 0, %s17
    $region4: #{custom-call.23} parent=1 // loop_header_branch
      %6 = sbr.rel (%p4) target = $region8
    $region5: #{custom-call.23} parent=1 // loop_body
      %s8 = ssub.s32 %s3, 1
      %s9 = ssub.s32 %s3, 2
      %s22 = sadd.s32 1, %s13
      %p23 = scmp.ge.s32.totalorder %s22, 1
      %s24 = scalar_select %p23, 0, %s22
      %s25 = sadd.s32 1, %s12
      %s26 = scalar_select %p23, %s25, %s12
      %p27 = scmp.ge.s32.totalorder %s26, 1
      %s28 = scalar_select %p27, 0, %s26
      %s29 = sadd.s32 1, %s11
      %s30 = scalar_select %p27, %s29, %s11
      %p31 = scmp.ge.s32.totalorder %s30, 1
      %s32 = scalar_select %p31, 0, %s30
      %s33 = sadd.s32 1, %s10
      %s34 = scalar_select %p31, %s33, %s10
      %p35 = scmp.ge.s32.totalorder %s34, 2
      %s36 = scalar_select %p35, 0, %s34
      %p37 = scmp.le.s32.totalorder 1, %s3
      %p38 = scmp.lt.s32.totalorder %s3, 3
      %p39 = pnand %p37, %p38
      %p40 = pneg %p39
      // Predicated region
      $region9: #{custom-call.23} parent=5 // pred_check
        _
      $region10: #{custom-call.23} parent=5 // pred_check_branch
        %42 = sbr.rel (%p39) target = $region12
      $region11: #{custom-call.23} parent=5 // pred_region
        %s43 = ssub.s32 %s3, 1
      $region12: #{custom-call.23} parent=5 // pred_fallthru
        _
      %p44 = scmp.lt.s32.totalorder %s3, 2
      // Predicated region
      $region13: #{custom-call.23} parent=5 // pred_check
        %p45 = pneg %p44
      $region14: #{custom-call.23} parent=5 // pred_check_branch
        %47 = sbr.rel (%p45) target = $region16
      $region15: #{custom-call.23} parent=5 // pred_region
        %s48 = sand.u32 %s3, 1
        %s49 = sand.u32 %s3, 1
        %s50 = smul.addr %s49, 4
        %s51 = scalar_lea.vmem [#allocation1], %s50
        %s52 = sadd.s32 %s13, %s12
        %s53 = sadd.s32 %s52, %s11
        %s54 = sadd.s32 %s53, %s10
        %s55 = smul.addr %s54, 4
        %s56 = scalar_lea.vmem %s0, %s55
        // Predicated region
        $region17: #{custom-call.23} parent=15 // pred_check
          _
        $region18: #{custom-call.23} parent=15 // pred_check_branch
          %58 = sbr.rel (0) target = $region20
        $region19: #{custom-call.23} parent=15 // pred_region
          // Predicated region
          $region21: #{custom-call.23} parent=19 // pred_check
            _
          $region22: #{custom-call.23} parent=19 // pred_check_branch
            %60 = sbr.rel target = $region24
          $region23: #{custom-call.23} parent=19 // pred_region
            // Predicated region
            $region36: #{custom-call.23} parent=23 // pred_check
              _
            $region37: #{custom-call.23} parent=23 // pred_check_branch
              %76 = sbr.rel (0) target = $region39
            $region38: #{custom-call.23} parent=23 // pred_region
              %s78 = ssub.s32 16, 1
              loop: start=0, step=1, limit=1
              $region40: #{custom-call.23} parent=38 // loop_pre_header
                _
              $region41: #{custom-call.23} parent=38 // loop_header
                %s80 = sphi 0, %s84
                %p81 = scmp.ge.s32.totalorder %s80, 1
                %s85 = sphi %s56, %s56
                %s86 = sphi %s51, %s51
              $region42: #{custom-call.23} parent=38 // loop_header_branch
                %83 = sbr.rel (%p81) target = $region46
              $region43: #{custom-call.23} parent=38 // loop_body
                %v87 = vld [vmem:[%s85] sm:%s78]
                %88 = vst [vmem:[%s86] sm:%s78] %v87
              $region44: #{custom-call.23} parent=38 // loop_footer
                %s84 = sadd.s32 1, %s80
              $region45: #{custom-call.23} parent=38 // loop_footer_branch
                %79 = sbr.rel target = $region41
              $region46: #{custom-call.23} parent=38 // loop_exit
                _
            $region39: #{custom-call.23} parent=23 // pred_fallthru
              _
          $region24: #{custom-call.23} parent=19 // pred_fallthru
            _
          // Predicated region
          $region25: #{custom-call.23} parent=19 // pred_check
            _
          $region26: #{custom-call.23} parent=19 // pred_check_branch
            %62 = sbr.rel (0) target = $region28
          $region27: #{custom-call.23} parent=19 // pred_region
            %s64 = ssub.s32 16, 1
            loop: start=0, step=1, limit=1
            $region29: #{custom-call.23} parent=27 // loop_pre_header
              _
            $region30: #{custom-call.23} parent=27 // loop_header
              %s66 = sphi 0, %s70
              %p67 = scmp.ge.s32.totalorder %s66, 1
              %s71 = sphi %s56, %s56
              %s72 = sphi %s51, %s51
            $region31: #{custom-call.23} parent=27 // loop_header_branch
              %69 = sbr.rel (%p67) target = $region35
            $region32: #{custom-call.23} parent=27 // loop_body
              %v73 = vld [vmem:[%s71] sm:%s64]
              %74 = vst [vmem:[%s72] sm:%s64] %v73
            $region33: #{custom-call.23} parent=27 // loop_footer
              %s70 = sadd.s32 1, %s66
            $region34: #{custom-call.23} parent=27 // loop_footer_branch
              %65 = sbr.rel target = $region30
            $region35: #{custom-call.23} parent=27 // loop_exit
              _
          $region28: #{custom-call.23} parent=19 // pred_fallthru
            _
        $region20: #{custom-call.23} parent=15 // pred_fallthru
          _
        %89 = vnop
      $region16: #{custom-call.23} parent=5 // pred_fallthru
        _
      %p90 = scmp.le.s32.totalorder 1, %s3
      %p91 = scmp.lt.s32.totalorder %s3, 3
      %p92 = pnand %p90, %p91
      %p93 = pneg %p92
      // Predicated region
      $region47: #{custom-call.23} parent=5 // pred_check
        _
      $region48: #{custom-call.23} parent=5 // pred_check_branch
        %95 = sbr.rel (%p92) target = $region50
      $region49: #{custom-call.23} parent=5 // pred_region
        #allocation4 [shape = 'f32[4,4]{1,0}', space=vmem, size = 0x1000, scoped, tag = 'rescaled input a']
        %s96 = ssub.s32 %s3, 1
        %s97 = sand.u32 %s8, 1
        %s98 = sand.u32 %s8, 1
        %s99 = smul.addr %s98, 4
        %s100 = scalar_lea.vmem [#allocation1], %s99
        %s101 = sand.u32 %s8, 1
        %s102 = sand.u32 %s8, 1
        %s103 = smul.addr %s102, 4
        %s104 = scalar_lea.vmem [#allocation1], %s103
        %s105 = sand.u32 %s8, 1
        %s106 = sand.u32 %s8, 1
        %s107 = smul.addr %s106, 4
        %s108 = scalar_lea.vmem [#allocation3], %s107
        %s110 = sshll.u32 1, 4
        %s111 = ssub.s32 %s110, 1
        %v112 = vld [vmem:[%s104] sm:%s111]
        %113 = vst [vmem:[#allocation0] sm:%s111] %v112
        %v114 = vlaneseq
        %v115 = vand.u32 %v114, 127
        %vm116 = vcmp.lt.s32.totalorder %v115, 4
        %v117 = vlaneseq
        %v118 = vshrl.u32 %v117, 7
        %vm120 = vcmp.eq.s32.totalorder %v118, %v115
        %v121 = vld [vmem:[#allocation0] sm:$0xff]
        %v122 = vsel %vm120, %v121, 0.0
        %123 = vadd.xlane.f32.xlu0 %v122
        %v124 = vpop.xlane.xlu0 %123
        %vm125 = vcmp.le.s32.totalorder %v118, %v115
        %vm126 = vmand %vm125, %vm116
        %v127 = vsel %vm126, %v121, 0.0
        %v128 = vrcp.pop %v124
        %v129 = vmul.f32 %v127, %v128
        %130 = vst [vmem:[#allocation4] sm:$0xff] %v129
        %v131 = vlaneseq
        %v132 = vand.u32 %v131, 127
        %v133 = vlaneseq
        %v134 = vshrl.u32 %v133, 7
        %vm136 = vcmp.eq.s32.totalorder %v132, %v134
        %v137 = vlaneseq
        %v138 = vand.u32 %v137, 127
        %vm139 = vcmp.eq.s32.totalorder %v138, 3
        %v140 = vsel %vm139, 1.0, -1.0
        %v141 = vsel %vm136, %v140, 0.0
        %s142 = scalar_lea.vmem [#allocation4], 2
        %v143 = vld [vmem:[%s142] ss:$0 sm:$0xff]
        %v144 = vxor.u32 %v143, 2147483648
        %v145 = vlaneseq
        %v146 = vand.u32 %v145, 127
        %vm147 = vcmp.eq.s32.totalorder %v146, 2
        %v148 = vmul.f32 %v144, %v141
        %149 = vadd.xlane.f32.xlu0 %v148
        %v150 = vpop.xlane.xlu0 %149
        %v151 = vsel %vm147, %v150, %v141
        %s152 = scalar_lea.vmem [#allocation4], 1
        %v153 = vld [vmem:[%s152] ss:$0 sm:$0xff]
        %v154 = vxor.u32 %v153, 2147483648
        %v155 = vlaneseq
        %v156 = vand.u32 %v155, 127
        %vm157 = vcmp.eq.s32.totalorder %v156, 1
        %v158 = vmul.f32 %v154, %v151
        %159 = vadd.xlane.f32.xlu0 %v158
        %v160 = vpop.xlane.xlu0 %159
        %v161 = vsel %vm157, %v160, %v151
        %v162 = vld [vmem:[#allocation4] ss:$0 sm:$0xff]
        %v163 = vxor.u32 %v162, 2147483648
        %v164 = vlaneseq
        %v165 = vand.u32 %v164, 127
        %vm166 = vcmp.eq.s32.totalorder %v165, 0
        %v167 = vmul.f32 %v163, %v161
        %168 = vadd.xlane.f32.xlu0 %v167
        %v169 = vpop.xlane.xlu0 %168
        %v170 = vsel %vm166, %v169, %v161
        %v171 = vrcp.pop %v124
        %v172 = vmul.f32 %v170, %v171
        %vm173 = vweird.f32 %v124
        %v174 = vsel %vm173, %v170, %v172
        %175 = vst [vmem:[#allocation2] sm:$0xff] %v174
        %s177 = sshll.u32 1, 4
        %s178 = ssub.s32 %s177, 1
        %v180 = vld [vmem:[#allocation2] sm:%s178]
        %s181 = sshll.u32 1, 4
        %s182 = ssub.s32 %s181, 1
        %183 = vst [vmem:[%s108] sm:%s182] %v180
        %s184 = sand.u32 %s8, 1
        %s185 = sand.u32 %s8, 1
        %s186 = smul.addr %s185, 4
        %s187 = scalar_lea.vmem [#allocation3], %s186
        %s188 = sadd.s32 %s17, %s16
        %s189 = sadd.s32 %s188, %s15
        %s190 = sadd.s32 %s189, %s14
        %s191 = smul.addr %s190, 4
        %s192 = scalar_lea.vmem %s1, %s191
        // Predicated region
        $region51: #{custom-call.23} parent=49 // pred_check
          _
        $region52: #{custom-call.23} parent=49 // pred_check_branch
          %194 = sbr.rel (0) target = $region54
        $region53: #{custom-call.23} parent=49 // pred_region
          // Predicated region
          $region55: #{custom-call.23} parent=53 // pred_check
            _
          $region56: #{custom-call.23} parent=53 // pred_check_branch
            %196 = sbr.rel target = $region58
          $region57: #{custom-call.23} parent=53 // pred_region
            // Predicated region
            $region70: #{custom-call.23} parent=57 // pred_check
              _
            $region71: #{custom-call.23} parent=57 // pred_check_branch
              %212 = sbr.rel (0) target = $region73
            $region72: #{custom-call.23} parent=57 // pred_region
              %s214 = ssub.s32 16, 1
              loop: start=0, step=1, limit=1
              $region74: #{custom-call.23} parent=72 // loop_pre_header
                _
              $region75: #{custom-call.23} parent=72 // loop_header
                %s216 = sphi 0, %s220
                %p217 = scmp.ge.s32.totalorder %s216, 1
                %s221 = sphi %s187, %s187
                %s222 = sphi %s192, %s192
              $region76: #{custom-call.23} parent=72 // loop_header_branch
                %219 = sbr.rel (%p217) target = $region80
              $region77: #{custom-call.23} parent=72 // loop_body
                %v223 = vld [vmem:[%s221] sm:%s214]
                %224 = vst [vmem:[%s222] sm:%s214] %v223
              $region78: #{custom-call.23} parent=72 // loop_footer
                %s220 = sadd.s32 1, %s216
              $region79: #{custom-call.23} parent=72 // loop_footer_branch
                %215 = sbr.rel target = $region75
              $region80: #{custom-call.23} parent=72 // loop_exit
                _
            $region73: #{custom-call.23} parent=57 // pred_fallthru
              _
          $region58: #{custom-call.23} parent=53 // pred_fallthru
            _
          // Predicated region
          $region59: #{custom-call.23} parent=53 // pred_check
            _
          $region60: #{custom-call.23} parent=53 // pred_check_branch
            %198 = sbr.rel (0) target = $region62
          $region61: #{custom-call.23} parent=53 // pred_region
            %s200 = ssub.s32 16, 1
            loop: start=0, step=1, limit=1
            $region63: #{custom-call.23} parent=61 // loop_pre_header
              _
            $region64: #{custom-call.23} parent=61 // loop_header
              %s202 = sphi 0, %s206
              %p203 = scmp.ge.s32.totalorder %s202, 1
              %s207 = sphi %s187, %s187
              %s208 = sphi %s192, %s192
            $region65: #{custom-call.23} parent=61 // loop_header_branch
              %205 = sbr.rel (%p203) target = $region69
            $region66: #{custom-call.23} parent=61 // loop_body
              %v209 = vld [vmem:[%s207] sm:%s200]
              %210 = vst [vmem:[%s208] sm:%s200] %v209
            $region67: #{custom-call.23} parent=61 // loop_footer
              %s206 = sadd.s32 1, %s202
            $region68: #{custom-call.23} parent=61 // loop_footer_branch
              %201 = sbr.rel target = $region64
            $region69: #{custom-call.23} parent=61 // loop_exit
              _
          $region62: #{custom-call.23} parent=53 // pred_fallthru
            _
        $region54: #{custom-call.23} parent=49 // pred_fallthru
          _
        %225 = vnop
      $region50: #{custom-call.23} parent=5 // pred_fallthru
        _
      %p226 = scmp.le.s32.totalorder 2, %s3
      // Predicated region
      $region81: #{custom-call.23} parent=5 // pred_check
        %p227 = pneg %p226
      $region82: #{custom-call.23} parent=5 // pred_check_branch
        %229 = sbr.rel (%p227) target = $region84
      $region83: #{custom-call.23} parent=5 // pred_region
        %s230 = ssub.s32 %s3, 2
        %s231 = sand.u32 %s9, 1
        %s232 = sand.u32 %s9, 1
        %s233 = smul.addr %s232, 4
        %s234 = scalar_lea.vmem [#allocation3], %s233
      $region84: #{custom-call.23} parent=5 // pred_fallthru
        _
    $region6: #{custom-call.23} parent=1 // loop_footer
      %s7 = sadd.s32 1, %s3
    $region7: #{custom-call.23} parent=1 // loop_footer_branch
      %2 = sbr.rel target = $region3
    $region8: #{custom-call.23} parent=1 // loop_exit
      _

// kernel: custom-call.24
$region0: #{custom-call.24}
  %s0 = inlined_call_operand.vmem [shape: f32[2,1,4,4], index: 0, kind: input, shape index: {}]
  %s1 = inlined_call_operand.vmem [shape: f32[2,1,4,4], index: 1, kind: output, shape index: {}]
  $region1: #{custom-call.24} parent=0
    #allocation0 [shape = 'u8[4096]{0}', space=vmem, size = 0x1000, scoped, tag = 'operand span for operand 0']
    #allocation1 [shape = 'u8[4096]{0}', space=vmem, size = 0x1000, scoped, tag = 'packed  for operand 0']
    #allocation2 [shape = 'u8[4096]{0}', space=vmem, size = 0x1000, scoped, tag = 'operand span for operand 1']
    #allocation3 [shape = 'u8[4096]{0}', space=vmem, size = 0x1000, scoped, tag = 'packed  for operand 1']
    loop: start=0, step=1, limit=4
    $region2: #{custom-call.24} parent=1 // loop_pre_header
      _
    $region3: #{custom-call.24} parent=1 // loop_header
      %s3 = sphi 0, %s7
      %p4 = scmp.ge.s32.totalorder %s3, 4
      %s10 = sphi 0, %s36
      %s11 = sphi 0, %s32
      %s12 = sphi 0, %s28
      %s13 = sphi 0, %s24
      %s14 = sphi 0, %s10
      %s15 = sphi 0, %s11
      %s16 = sphi 0, %s12
      %s17 = sphi 0, %s13
      %s18 = sphi 0, %s14
      %s19 = sphi 0, %s15
      %s20 = sphi 0, %s16
      %s21 = sphi 0, %s17
    $region4: #{custom-call.24} parent=1 // loop_header_branch
      %6 = sbr.rel (%p4) target = $region8
    $region5: #{custom-call.24} parent=1 // loop_body
      %s8 = ssub.s32 %s3, 1
      %s9 = ssub.s32 %s3, 2
      %s22 = sadd.s32 1, %s13
      %p23 = scmp.ge.s32.totalorder %s22, 1
      %s24 = scalar_select %p23, 0, %s22
      %s25 = sadd.s32 1, %s12
      %s26 = scalar_select %p23, %s25, %s12
      %p27 = scmp.ge.s32.totalorder %s26, 1
      %s28 = scalar_select %p27, 0, %s26
      %s29 = sadd.s32 1, %s11
      %s30 = scalar_select %p27, %s29, %s11
      %p31 = scmp.ge.s32.totalorder %s30, 1
      %s32 = scalar_select %p31, 0, %s30
      %s33 = sadd.s32 1, %s10
      %s34 = scalar_select %p31, %s33, %s10
      %p35 = scmp.ge.s32.totalorder %s34, 2
      %s36 = scalar_select %p35, 0, %s34
      %p37 = scmp.le.s32.totalorder 1, %s3
      %p38 = scmp.lt.s32.totalorder %s3, 3
      %p39 = pnand %p37, %p38
      %p40 = pneg %p39
      // Predicated region
      $region9: #{custom-call.24} parent=5 // pred_check
        _
      $region10: #{custom-call.24} parent=5 // pred_check_branch
        %42 = sbr.rel (%p39) target = $region12
      $region11: #{custom-call.24} parent=5 // pred_region
        %s43 = ssub.s32 %s3, 1
      $region12: #{custom-call.24} parent=5 // pred_fallthru
        _
      %p44 = scmp.lt.s32.totalorder %s3, 2
      // Predicated region
      $region13: #{custom-call.24} parent=5 // pred_check
        %p45 = pneg %p44
      $region14: #{custom-call.24} parent=5 // pred_check_branch
        %47 = sbr.rel (%p45) target = $region16
      $region15: #{custom-call.24} parent=5 // pred_region
        %s48 = sand.u32 %s3, 1
        %s49 = sand.u32 %s3, 1
        %s50 = smul.addr %s49, 4
        %s51 = scalar_lea.vmem [#allocation1], %s50
        %s52 = sadd.s32 %s13, %s12
        %s53 = sadd.s32 %s52, %s11
        %s54 = sadd.s32 %s53, %s10
        %s55 = smul.addr %s54, 4
        %s56 = scalar_lea.vmem %s0, %s55
        // Predicated region
        $region17: #{custom-call.24} parent=15 // pred_check
          _
        $region18: #{custom-call.24} parent=15 // pred_check_branch
          %58 = sbr.rel (0) target = $region20
        $region19: #{custom-call.24} parent=15 // pred_region
          // Predicated region
          $region21: #{custom-call.24} parent=19 // pred_check
            _
          $region22: #{custom-call.24} parent=19 // pred_check_branch
            %60 = sbr.rel target = $region24
          $region23: #{custom-call.24} parent=19 // pred_region
            // Predicated region
            $region36: #{custom-call.24} parent=23 // pred_check
              _
            $region37: #{custom-call.24} parent=23 // pred_check_branch
              %76 = sbr.rel (0) target = $region39
            $region38: #{custom-call.24} parent=23 // pred_region
              %s78 = ssub.s32 16, 1
              loop: start=0, step=1, limit=1
              $region40: #{custom-call.24} parent=38 // loop_pre_header
                _
              $region41: #{custom-call.24} parent=38 // loop_header
                %s80 = sphi 0, %s84
                %p81 = scmp.ge.s32.totalorder %s80, 1
                %s85 = sphi %s56, %s56
                %s86 = sphi %s51, %s51
              $region42: #{custom-call.24} parent=38 // loop_header_branch
                %83 = sbr.rel (%p81) target = $region46
              $region43: #{custom-call.24} parent=38 // loop_body
                %v87 = vld [vmem:[%s85] sm:%s78]
                %88 = vst [vmem:[%s86] sm:%s78] %v87
              $region44: #{custom-call.24} parent=38 // loop_footer
                %s84 = sadd.s32 1, %s80
              $region45: #{custom-call.24} parent=38 // loop_footer_branch
                %79 = sbr.rel target = $region41
              $region46: #{custom-call.24} parent=38 // loop_exit
                _
            $region39: #{custom-call.24} parent=23 // pred_fallthru
              _
          $region24: #{custom-call.24} parent=19 // pred_fallthru
            _
          // Predicated region
          $region25: #{custom-call.24} parent=19 // pred_check
            _
          $region26: #{custom-call.24} parent=19 // pred_check_branch
            %62 = sbr.rel (0) target = $region28
          $region27: #{custom-call.24} parent=19 // pred_region
            %s64 = ssub.s32 16, 1
            loop: start=0, step=1, limit=1
            $region29: #{custom-call.24} parent=27 // loop_pre_header
              _
            $region30: #{custom-call.24} parent=27 // loop_header
              %s66 = sphi 0, %s70
              %p67 = scmp.ge.s32.totalorder %s66, 1
              %s71 = sphi %s56, %s56
              %s72 = sphi %s51, %s51
            $region31: #{custom-call.24} parent=27 // loop_header_branch
              %69 = sbr.rel (%p67) target = $region35
            $region32: #{custom-call.24} parent=27 // loop_body
              %v73 = vld [vmem:[%s71] sm:%s64]
              %74 = vst [vmem:[%s72] sm:%s64] %v73
            $region33: #{custom-call.24} parent=27 // loop_footer
              %s70 = sadd.s32 1, %s66
            $region34: #{custom-call.24} parent=27 // loop_footer_branch
              %65 = sbr.rel target = $region30
            $region35: #{custom-call.24} parent=27 // loop_exit
              _
          $region28: #{custom-call.24} parent=19 // pred_fallthru
            _
        $region20: #{custom-call.24} parent=15 // pred_fallthru
          _
        %89 = vnop
      $region16: #{custom-call.24} parent=5 // pred_fallthru
        _
      %p90 = scmp.le.s32.totalorder 1, %s3
      %p91 = scmp.lt.s32.totalorder %s3, 3
      %p92 = pnand %p90, %p91
      %p93 = pneg %p92
      // Predicated region
      $region47: #{custom-call.24} parent=5 // pred_check
        _
      $region48: #{custom-call.24} parent=5 // pred_check_branch
        %95 = sbr.rel (%p92) target = $region50
      $region49: #{custom-call.24} parent=5 // pred_region
        #allocation4 [shape = 'f32[4,4]{1,0}', space=vmem, size = 0x1000, scoped, tag = 'rescaled input a']
        %s96 = ssub.s32 %s3, 1
        %s97 = sand.u32 %s8, 1
        %s98 = sand.u32 %s8, 1
        %s99 = smul.addr %s98, 4
        %s100 = scalar_lea.vmem [#allocation1], %s99
        %s101 = sand.u32 %s8, 1
        %s102 = sand.u32 %s8, 1
        %s103 = smul.addr %s102, 4
        %s104 = scalar_lea.vmem [#allocation1], %s103
        %s105 = sand.u32 %s8, 1
        %s106 = sand.u32 %s8, 1
        %s107 = smul.addr %s106, 4
        %s108 = scalar_lea.vmem [#allocation3], %s107
        %s110 = sshll.u32 1, 4
        %s111 = ssub.s32 %s110, 1
        %v112 = vld [vmem:[%s104] sm:%s111]
        %113 = vst [vmem:[#allocation0] sm:%s111] %v112
        %v114 = vlaneseq
        %v115 = vand.u32 %v114, 127
        %vm116 = vcmp.lt.s32.totalorder %v115, 4
        %v117 = vlaneseq
        %v118 = vshrl.u32 %v117, 7
        %vm120 = vcmp.eq.s32.totalorder %v118, %v115
        %v121 = vld [vmem:[#allocation0] sm:$0xff]
        %v122 = vsel %vm120, %v121, 0.0
        %123 = vadd.xlane.f32.xlu0 %v122
        %v124 = vpop.xlane.xlu0 %123
        %vm125 = vcmp.ge.s32.totalorder %v118, %v115
        %vm126 = vmand %vm125, %vm116
        %v127 = vsel %vm126, %v121, 0.0
        %v128 = vrcp.pop %v124
        %v129 = vmul.f32 %v127, %v128
        %130 = vst [vmem:[#allocation4] sm:$0xff] %v129
        %v131 = vlaneseq
        %v132 = vand.u32 %v131, 127
        %v133 = vlaneseq
        %v134 = vshrl.u32 %v133, 7
        %vm136 = vcmp.eq.s32.totalorder %v132, %v134
        %v137 = vlaneseq
        %v138 = vand.u32 %v137, 127
        %vm139 = vcmp.eq.s32.totalorder %v138, 0
        %v140 = vsel %vm139, 1.0, -1.0
        %v141 = vsel %vm136, %v140, 0.0
        %s142 = scalar_lea.vmem [#allocation4], 1
        %v143 = vld [vmem:[%s142] ss:$0 sm:$0xff]
        %v144 = vxor.u32 %v143, 2147483648
        %v145 = vlaneseq
        %v146 = vand.u32 %v145, 127
        %vm147 = vcmp.eq.s32.totalorder %v146, 1
        %v148 = vmul.f32 %v144, %v141
        %149 = vadd.xlane.f32.xlu0 %v148
        %v150 = vpop.xlane.xlu0 %149
        %v151 = vsel %vm147, %v150, %v141
        %s152 = scalar_lea.vmem [#allocation4], 2
        %v153 = vld [vmem:[%s152] ss:$0 sm:$0xff]
        %v154 = vxor.u32 %v153, 2147483648
        %v155 = vlaneseq
        %v156 = vand.u32 %v155, 127
        %vm157 = vcmp.eq.s32.totalorder %v156, 2
        %v158 = vmul.f32 %v154, %v151
        %159 = vadd.xlane.f32.xlu0 %v158
        %v160 = vpop.xlane.xlu0 %159
        %v161 = vsel %vm157, %v160, %v151
        %s162 = scalar_lea.vmem [#allocation4], 3
        %v163 = vld [vmem:[%s162] ss:$0 sm:$0xff]
        %v164 = vxor.u32 %v163, 2147483648
        %v165 = vlaneseq
        %v166 = vand.u32 %v165, 127
        %vm167 = vcmp.eq.s32.totalorder %v166, 3
        %v168 = vmul.f32 %v164, %v161
        %169 = vadd.xlane.f32.xlu0 %v168
        %v170 = vpop.xlane.xlu0 %169
        %v171 = vsel %vm167, %v170, %v161
        %v172 = vrcp.pop %v124
        %v173 = vmul.f32 %v171, %v172
        %vm174 = vweird.f32 %v124
        %v175 = vsel %vm174, %v171, %v173
        %176 = vst [vmem:[#allocation2] sm:$0xff] %v175
        %s178 = sshll.u32 1, 4
        %s179 = ssub.s32 %s178, 1
        %v181 = vld [vmem:[#allocation2] sm:%s179]
        %s182 = sshll.u32 1, 4
        %s183 = ssub.s32 %s182, 1
        %184 = vst [vmem:[%s108] sm:%s183] %v181
        %s185 = sand.u32 %s8, 1
        %s186 = sand.u32 %s8, 1
        %s187 = smul.addr %s186, 4
        %s188 = scalar_lea.vmem [#allocation3], %s187
        %s189 = sadd.s32 %s17, %s16
        %s190 = sadd.s32 %s189, %s15
        %s191 = sadd.s32 %s190, %s14
        %s192 = smul.addr %s191, 4
        %s193 = scalar_lea.vmem %s1, %s192
        // Predicated region
        $region51: #{custom-call.24} parent=49 // pred_check
          _
        $region52: #{custom-call.24} parent=49 // pred_check_branch
          %195 = sbr.rel (0) target = $region54
        $region53: #{custom-call.24} parent=49 // pred_region
          // Predicated region
          $region55: #{custom-call.24} parent=53 // pred_check
            _
          $region56: #{custom-call.24} parent=53 // pred_check_branch
            %197 = sbr.rel target = $region58
          $region57: #{custom-call.24} parent=53 // pred_region
            // Predicated region
            $region70: #{custom-call.24} parent=57 // pred_check
              _
            $region71: #{custom-call.24} parent=57 // pred_check_branch
              %213 = sbr.rel (0) target = $region73
            $region72: #{custom-call.24} parent=57 // pred_region
              %s215 = ssub.s32 16, 1
              loop: start=0, step=1, limit=1
              $region74: #{custom-call.24} parent=72 // loop_pre_header
                _
              $region75: #{custom-call.24} parent=72 // loop_header
                %s217 = sphi 0, %s221
                %p218 = scmp.ge.s32.totalorder %s217, 1
                %s222 = sphi %s188, %s188
                %s223 = sphi %s193, %s193
              $region76: #{custom-call.24} parent=72 // loop_header_branch
                %220 = sbr.rel (%p218) target = $region80
              $region77: #{custom-call.24} parent=72 // loop_body
                %v224 = vld [vmem:[%s222] sm:%s215]
                %225 = vst [vmem:[%s223] sm:%s215] %v224
              $region78: #{custom-call.24} parent=72 // loop_footer
                %s221 = sadd.s32 1, %s217
              $region79: #{custom-call.24} parent=72 // loop_footer_branch
                %216 = sbr.rel target = $region75
              $region80: #{custom-call.24} parent=72 // loop_exit
                _
            $region73: #{custom-call.24} parent=57 // pred_fallthru
              _
          $region58: #{custom-call.24} parent=53 // pred_fallthru
            _
          // Predicated region
          $region59: #{custom-call.24} parent=53 // pred_check
            _
          $region60: #{custom-call.24} parent=53 // pred_check_branch
            %199 = sbr.rel (0) target = $region62
          $region61: #{custom-call.24} parent=53 // pred_region
            %s201 = ssub.s32 16, 1
            loop: start=0, step=1, limit=1
            $region63: #{custom-call.24} parent=61 // loop_pre_header
              _
            $region64: #{custom-call.24} parent=61 // loop_header
              %s203 = sphi 0, %s207
              %p204 = scmp.ge.s32.totalorder %s203, 1
              %s208 = sphi %s188, %s188
              %s209 = sphi %s193, %s193
            $region65: #{custom-call.24} parent=61 // loop_header_branch
              %206 = sbr.rel (%p204) target = $region69
            $region66: #{custom-call.24} parent=61 // loop_body
              %v210 = vld [vmem:[%s208] sm:%s201]
              %211 = vst [vmem:[%s209] sm:%s201] %v210
            $region67: #{custom-call.24} parent=61 // loop_footer
              %s207 = sadd.s32 1, %s203
            $region68: #{custom-call.24} parent=61 // loop_footer_branch
              %202 = sbr.rel target = $region64
            $region69: #{custom-call.24} parent=61 // loop_exit
              _
          $region62: #{custom-call.24} parent=53 // pred_fallthru
            _
        $region54: #{custom-call.24} parent=49 // pred_fallthru
          _
        %226 = vnop
      $region50: #{custom-call.24} parent=5 // pred_fallthru
        _
      %p227 = scmp.le.s32.totalorder 2, %s3
      // Predicated region
      $region81: #{custom-call.24} parent=5 // pred_check
        %p228 = pneg %p227
      $region82: #{custom-call.24} parent=5 // pred_check_branch
        %230 = sbr.rel (%p228) target = $region84
      $region83: #{custom-call.24} parent=5 // pred_region
        %s231 = ssub.s32 %s3, 2
        %s232 = sand.u32 %s9, 1
        %s233 = sand.u32 %s9, 1
        %s234 = smul.addr %s233, 4
        %s235 = scalar_lea.vmem [#allocation3], %s234
      $region84: #{custom-call.24} parent=5 // pred_fallthru
        _
    $region6: #{custom-call.24} parent=1 // loop_footer
      %s7 = sadd.s32 1, %s3
    $region7: #{custom-call.24} parent=1 // loop_footer_branch
      %2 = sbr.rel target = $region3
    $region8: #{custom-call.24} parent=1 // loop_exit
      _

// kernel: _lambda_.1
$region0: #{_lambda_.1}
  #allocation0 [shape = 'u32[]', space=smem, size = 0x4, offset = 0x4, fixed_abs, tag = 'smem constant byte address 0x4 - core index']
  #allocation1 [shape = 'u32[144,128]{1,0:T(1,128)}', space=vmem, size = 0x12000, scoped, tag = 'internal scratch']
  %s0 = inlined_call_operand.vmem [shape: f32[2,24], index: 0, kind: input, shape index: {}]
  %s1 = inlined_call_operand.vmem [shape: f32[2,1,256], index: 1, kind: input, shape index: {}]
  %s2 = inlined_call_operand.vmem [shape: f32[1,2,256], index: 2, kind: input, shape index: {}]
  %s3 = inlined_call_operand.vmem [shape: f32[2,1,256], index: 3, kind: input, shape index: {}]
  %s4 = inlined_call_operand.vmem [shape: f32[2,3,256], index: 4, kind: input, shape index: {}]
  %s5 = inlined_call_operand.vmem [shape: f32[8,4], index: 5, kind: input, shape index: {}]
  %s6 = inlined_call_operand.vmem [shape: f32[2,32,12], index: 6, kind: input, shape index: {}]
  %s7 = inlined_call_operand.vmem [shape: f32[3,33], index: 7, kind: input, shape index: {}]
  %s8 = inlined_call_operand.vmem [shape: f32[2,3,256], index: 8, kind: output, shape index: {}]
  %s9 = sld [smem:[#allocation0]]
  $region69: #{_lambda_.1} parent=0
    _
  %s11 = ssub.s32 1, %s9
  %s12 = scalar_select 0, %s11, %s9
  $region1: #{_lambda_.1} parent=0
    #allocation2 [shape = 'u8[1024]{0}', space=smem, size = 0x400, scoped, tag = 'input window, operand 0, single buffered']
    #allocation3 [shape = 's32[2]{0}', space=sflag, size = 0x8, scoped, tag = 'scoped memory for _lambda_.1']
    %13 = vsyncpa [#allocation3], 0
    loop: start=0, step=1, limit=4
    $region2: #{_lambda_.1} parent=1 // loop_pre_header
      _
    $region3: #{_lambda_.1} parent=1 // loop_header
      %s15 = sphi 0, %s19
      %p16 = scmp.ge.s32.totalorder %s15, 4
      %s23 = sphi 0, %s23
      %s25 = sphi 0, %s23
      %s26 = sphi 0, %s25
      %s40 = sphi 0, %s26
      %s46 = sphi 0, %s48
      %s49 = sphi 0, %s46
      %s50 = sphi 0, %s49
      %s66 = sphi 0, %s50
      %s70 = sphi 0, %s70
      %s72 = sphi 0, %s70
      %s73 = sphi 0, %s72
      %s87 = sphi 0, %s73
      %s93 = sphi 0, %s95
      %s96 = sphi 0, %s93
      %s97 = sphi 0, %s96
      %s113 = sphi 0, %s97
      %s119 = sphi 0, %s121
      %s122 = sphi 0, %s119
      %s123 = sphi 0, %s122
      %s139 = sphi 0, %s123
      %s143 = sphi 0, %s143
      %s145 = sphi 0, %s143
      %s146 = sphi 0, %s145
      %s160 = sphi 0, %s146
      %s166 = sphi 0, %s168
      %s169 = sphi 0, %s166
      %s170 = sphi 0, %s169
      %s186 = sphi 0, %s170
      %s190 = sphi 0, %s190
      %s192 = sphi 0, %s190
      %s193 = sphi 0, %s192
      %s207 = sphi 0, %s193
      %s213 = sphi 0, %s215
      %s216 = sphi 0, %s213
      %s217 = sphi 0, %s216
      %s233 = sphi 0, %s217
    $region4: #{_lambda_.1} parent=1 // loop_header_branch
      %18 = sbr.rel (%p16) target = $region8
    $region5: #{_lambda_.1} parent=1 // loop_body
      %s20 = ssub.s32 %s15, 1
      %s21 = ssub.s32 %s15, 2
      %s22 = sadd.s32 %s15, 1
      %s24 = sadd.s32 %s23, 1
      %p27 = scmp.eq.s32.totalorder %s15, 1
      %p28 = scmp.ne.s32.totalorder %s23, %s25
      %p29 = scmp.eq.s32.totalorder %s15, 0
      %p30 = por %p28, %p29
      %p31 = scmp.ne.s32.totalorder %s23, %s25
      %p32 = scmp.eq.s32.totalorder %s20, 1
      %p33 = por %p31, %p32
      %p34 = scmp.ne.s32.totalorder %s25, %s26
      %p35 = scmp.eq.s32.totalorder %s20, 0
      %p36 = por %p34, %p35
      %p37 = scmp.ne.s32.totalorder %s25, %s26
      %p38 = scmp.eq.s32.totalorder %s21, 1
      %p39 = por %p37, %p38
      %p41 = scmp.ne.s32.totalorder %s26, %s40
      %p42 = scmp.eq.s32.totalorder %s21, 0
      %p43 = por %p41, %p42
      %s44 = ssub.s32 %s15, %s22
      %p45 = scmp.eq.s32.totalorder %s44, 0
      %s47 = sadd.s32 %s46, 1
      %s48 = scalar_select %p45, %s46, %s47
      %p51 = pneg %p45
      %p52 = scmp.eq.s32.totalorder %s15, 1
      %p53 = por %p51, %p52
      %p54 = scmp.ne.s32.totalorder %s46, %s49
      %p55 = scmp.eq.s32.totalorder %s15, 0
      %p56 = por %p54, %p55
      %p57 = scmp.ne.s32.totalorder %s46, %s49
      %p58 = scmp.eq.s32.totalorder %s20, 1
      %p59 = por %p57, %p58
      %p60 = scmp.ne.s32.totalorder %s49, %s50
      %p61 = scmp.eq.s32.totalorder %s20, 0
      %p62 = por %p60, %p61
      %p63 = scmp.ne.s32.totalorder %s49, %s50
      %p64 = scmp.eq.s32.totalorder %s21, 1
      %p65 = por %p63, %p64
      %p67 = scmp.ne.s32.totalorder %s50, %s66
      %p68 = scmp.eq.s32.totalorder %s21, 0
      %p69 = por %p67, %p68
      %s71 = sadd.s32 %s70, 1
      %p74 = scmp.eq.s32.totalorder %s15, 1
      %p75 = scmp.ne.s32.totalorder %s70, %s72
      %p76 = scmp.eq.s32.totalorder %s15, 0
      %p77 = por %p75, %p76
      %p78 = scmp.ne.s32.totalorder %s70, %s72
      %p79 = scmp.eq.s32.totalorder %s20, 1
      %p80 = por %p78, %p79
      %p81 = scmp.ne.s32.totalorder %s72, %s73
      %p82 = scmp.eq.s32.totalorder %s20, 0
      %p83 = por %p81, %p82
      %p84 = scmp.ne.s32.totalorder %s72, %s73
      %p85 = scmp.eq.s32.totalorder %s21, 1
      %p86 = por %p84, %p85
      %p88 = scmp.ne.s32.totalorder %s73, %s87
      %p89 = scmp.eq.s32.totalorder %s21, 0
      %p90 = por %p88, %p89
      %s91 = ssub.s32 %s15, %s22
      %p92 = scmp.eq.s32.totalorder %s91, 0
      %s94 = sadd.s32 %s93, 1
      %s95 = scalar_select %p92, %s93, %s94
      %p98 = pneg %p92
      %p99 = scmp.eq.s32.totalorder %s15, 1
      %p100 = por %p98, %p99
      %p101 = scmp.ne.s32.totalorder %s93, %s96
      %p102 = scmp.eq.s32.totalorder %s15, 0
      %p103 = por %p101, %p102
      %p104 = scmp.ne.s32.totalorder %s93, %s96
      %p105 = scmp.eq.s32.totalorder %s20, 1
      %p106 = por %p104, %p105
      %p107 = scmp.ne.s32.totalorder %s96, %s97
      %p108 = scmp.eq.s32.totalorder %s20, 0
      %p109 = por %p107, %p108
      %p110 = scmp.ne.s32.totalorder %s96, %s97
      %p111 = scmp.eq.s32.totalorder %s21, 1
      %p112 = por %p110, %p111
      %p114 = scmp.ne.s32.totalorder %s97, %s113
      %p115 = scmp.eq.s32.totalorder %s21, 0
      %p116 = por %p114, %p115
      %s117 = ssub.s32 %s15, %s22
      %p118 = scmp.eq.s32.totalorder %s117, 0
      %s120 = sadd.s32 %s119, 1
      %s121 = scalar_select %p118, %s119, %s120
      %p124 = pneg %p118
      %p125 = scmp.eq.s32.totalorder %s15, 1
      %p126 = por %p124, %p125
      %p127 = scmp.ne.s32.totalorder %s119, %s122
      %p128 = scmp.eq.s32.totalorder %s15, 0
      %p129 = por %p127, %p128
      %p130 = scmp.ne.s32.totalorder %s119, %s122
      %p131 = scmp.eq.s32.totalorder %s20, 1
      %p132 = por %p130, %p131
      %p133 = scmp.ne.s32.totalorder %s122, %s123
      %p134 = scmp.eq.s32.totalorder %s20, 0
      %p135 = por %p133, %p134
      %p136 = scmp.ne.s32.totalorder %s122, %s123
      %p137 = scmp.eq.s32.totalorder %s21, 1
      %p138 = por %p136, %p137
      %p140 = scmp.ne.s32.totalorder %s123, %s139
      %p141 = scmp.eq.s32.totalorder %s21, 0
      %p142 = por %p140, %p141
      %s144 = sadd.s32 %s143, 1
      %p147 = scmp.eq.s32.totalorder %s15, 1
      %p148 = scmp.ne.s32.totalorder %s143, %s145
      %p149 = scmp.eq.s32.totalorder %s15, 0
      %p150 = por %p148, %p149
      %p151 = scmp.ne.s32.totalorder %s143, %s145
      %p152 = scmp.eq.s32.totalorder %s20, 1
      %p153 = por %p151, %p152
      %p154 = scmp.ne.s32.totalorder %s145, %s146
      %p155 = scmp.eq.s32.totalorder %s20, 0
      %p156 = por %p154, %p155
      %p157 = scmp.ne.s32.totalorder %s145, %s146
      %p158 = scmp.eq.s32.totalorder %s21, 1
      %p159 = por %p157, %p158
      %p161 = scmp.ne.s32.totalorder %s146, %s160
      %p162 = scmp.eq.s32.totalorder %s21, 0
      %p163 = por %p161, %p162
      %s164 = ssub.s32 %s15, %s22
      %p165 = scmp.eq.s32.totalorder %s164, 0
      %s167 = sadd.s32 %s166, 1
      %s168 = scalar_select %p165, %s166, %s167
      %p171 = pneg %p165
      %p172 = scmp.eq.s32.totalorder %s15, 1
      %p173 = por %p171, %p172
      %p174 = scmp.ne.s32.totalorder %s166, %s169
      %p175 = scmp.eq.s32.totalorder %s15, 0
      %p176 = por %p174, %p175
      %p177 = scmp.ne.s32.totalorder %s166, %s169
      %p178 = scmp.eq.s32.totalorder %s20, 1
      %p179 = por %p177, %p178
      %p180 = scmp.ne.s32.totalorder %s169, %s170
      %p181 = scmp.eq.s32.totalorder %s20, 0
      %p182 = por %p180, %p181
      %p183 = scmp.ne.s32.totalorder %s169, %s170
      %p184 = scmp.eq.s32.totalorder %s21, 1
      %p185 = por %p183, %p184
      %p187 = scmp.ne.s32.totalorder %s170, %s186
      %p188 = scmp.eq.s32.totalorder %s21, 0
      %p189 = por %p187, %p188
      %s191 = sadd.s32 %s190, 1
      %p194 = scmp.eq.s32.totalorder %s15, 1
      %p195 = scmp.ne.s32.totalorder %s190, %s192
      %p196 = scmp.eq.s32.totalorder %s15, 0
      %p197 = por %p195, %p196
      %p198 = scmp.ne.s32.totalorder %s190, %s192
      %p199 = scmp.eq.s32.totalorder %s20, 1
      %p200 = por %p198, %p199
      %p201 = scmp.ne.s32.totalorder %s192, %s193
      %p202 = scmp.eq.s32.totalorder %s20, 0
      %p203 = por %p201, %p202
      %p204 = scmp.ne.s32.totalorder %s192, %s193
      %p205 = scmp.eq.s32.totalorder %s21, 1
      %p206 = por %p204, %p205
      %p208 = scmp.ne.s32.totalorder %s193, %s207
      %p209 = scmp.eq.s32.totalorder %s21, 0
      %p210 = por %p208, %p209
      %s211 = ssub.s32 %s15, %s22
      %p212 = scmp.eq.s32.totalorder %s211, 0
      %s214 = sadd.s32 %s213, 1
      %s215 = scalar_select %p212, %s213, %s214
      %p218 = pneg %p212
      %p219 = scmp.eq.s32.totalorder %s15, 1
      %p220 = por %p218, %p219
      %p221 = scmp.ne.s32.totalorder %s213, %s216
      %p222 = scmp.eq.s32.totalorder %s15, 0
      %p223 = por %p221, %p222
      %p224 = scmp.ne.s32.totalorder %s213, %s216
      %p225 = scmp.eq.s32.totalorder %s20, 1
      %p226 = por %p224, %p225
      %p227 = scmp.ne.s32.totalorder %s216, %s217
      %p228 = scmp.eq.s32.totalorder %s20, 0
      %p229 = por %p227, %p228
      %p230 = scmp.ne.s32.totalorder %s216, %s217
      %p231 = scmp.eq.s32.totalorder %s21, 1
      %p232 = por %p230, %p231
      %p234 = scmp.ne.s32.totalorder %s217, %s233
      %p235 = scmp.eq.s32.totalorder %s21, 0
      %p236 = por %p234, %p235
      %p237 = scmp.le.s32.totalorder 1, %s15
      %p238 = scmp.lt.s32.totalorder %s15, 3
      %p239 = pnand %p237, %p238
      %p240 = pneg %p239
      // Predicated region
      $region9: #{_lambda_.1} parent=5 // pred_check
        _
      $region10: #{_lambda_.1} parent=5 // pred_check_branch
        %242 = sbr.rel (%p239) target = $region12
      $region11: #{_lambda_.1} parent=5 // pred_region
        %s243 = ssub.s32 %s15, 1
        // Predicated region
        $region13: #{_lambda_.1} parent=11 // pred_check
          %p244 = pneg %p36
        $region14: #{_lambda_.1} parent=11 // pred_check_branch
          %246 = sbr.rel (%p244) target = $region16
        $region15: #{_lambda_.1} parent=11 // pred_region
          %s248 = ssub.s32 32, 32
          %249 = vsyncadd [#allocation3], %s248
          %s251 = sshll.u32 %s0, 4
          %s252 = int_to_ptr.vmem [resolvable:$true] %s251
          %254 = dma.vmem_to_smem %s252, 32, [#allocation2], [#allocation3]
        $region16: #{_lambda_.1} parent=11 // pred_fallthru
          _
        // Predicated region
        $region17: #{_lambda_.1} parent=11 // pred_check
          %p255 = pneg %p83
        $region18: #{_lambda_.1} parent=11 // pred_check_branch
          %257 = sbr.rel (%p255) target = $region20
        $region19: #{_lambda_.1} parent=11 // pred_region
          _
        $region20: #{_lambda_.1} parent=11 // pred_fallthru
          _
        // Predicated region
        $region21: #{_lambda_.1} parent=11 // pred_check
          %p258 = pneg %p156
        $region22: #{_lambda_.1} parent=11 // pred_check_branch
          %260 = sbr.rel (%p258) target = $region24
        $region23: #{_lambda_.1} parent=11 // pred_region
          _
        $region24: #{_lambda_.1} parent=11 // pred_fallthru
          _
        // Predicated region
        $region25: #{_lambda_.1} parent=11 // pred_check
          %p261 = pneg %p203
        $region26: #{_lambda_.1} parent=11 // pred_check_branch
          %263 = sbr.rel (%p261) target = $region28
        $region27: #{_lambda_.1} parent=11 // pred_region
          _
        $region28: #{_lambda_.1} parent=11 // pred_fallthru
          _
      $region12: #{_lambda_.1} parent=5 // pred_fallthru
        _
      %p264 = scmp.lt.s32.totalorder %s15, 2
      // Predicated region
      $region29: #{_lambda_.1} parent=5 // pred_check
        %p265 = pneg %p264
      $region30: #{_lambda_.1} parent=5 // pred_check_branch
        %267 = sbr.rel (%p265) target = $region32
      $region31: #{_lambda_.1} parent=5 // pred_region
        // Predicated region
        $region33: #{_lambda_.1} parent=31 // pred_check
          %p268 = pneg %p56
        $region34: #{_lambda_.1} parent=31 // pred_check_branch
          %270 = sbr.rel (%p268) target = $region36
        $region35: #{_lambda_.1} parent=31 // pred_region
          %p271 = scmp.lt.s32.totalorder %s15, 1
          %s272 = scalar_select %p271, %s15, 1
          %s273 = smul.addr %s272, 2
          %s274 = scalar_lea.vmem %s1, %s273
        $region36: #{_lambda_.1} parent=31 // pred_fallthru
          _
        // Predicated region
        $region37: #{_lambda_.1} parent=31 // pred_check
          %p275 = pneg %p103
        $region38: #{_lambda_.1} parent=31 // pred_check_branch
          %277 = sbr.rel (%p275) target = $region40
        $region39: #{_lambda_.1} parent=31 // pred_region
          %p278 = scmp.lt.s32.totalorder %s15, 1
          %s279 = scalar_select %p278, %s15, 1
          %s280 = smul.addr %s279, 2
          %s281 = scalar_lea.vmem %s3, %s280
        $region40: #{_lambda_.1} parent=31 // pred_fallthru
          _
        // Predicated region
        $region41: #{_lambda_.1} parent=31 // pred_check
          %p282 = pneg %p129
        $region42: #{_lambda_.1} parent=31 // pred_check_branch
          %284 = sbr.rel (%p282) target = $region44
        $region43: #{_lambda_.1} parent=31 // pred_region
          %p285 = scmp.lt.s32.totalorder %s15, 1
          %s286 = scalar_select %p285, %s15, 1
          %s287 = smul.addr %s286, 2
          %s288 = smul.addr %s287, 4
          %s289 = scalar_lea.vmem %s4, %s288
        $region44: #{_lambda_.1} parent=31 // pred_fallthru
          _
        // Predicated region
        $region45: #{_lambda_.1} parent=31 // pred_check
          %p290 = pneg %p176
        $region46: #{_lambda_.1} parent=31 // pred_check_branch
          %292 = sbr.rel (%p290) target = $region48
        $region47: #{_lambda_.1} parent=31 // pred_region
          %p293 = scmp.lt.s32.totalorder %s15, 1
          %s294 = scalar_select %p293, %s15, 1
          %s295 = smul.addr %s294, 4
          %s296 = smul.addr %s295, 8
          %s297 = scalar_lea.vmem %s6, %s296
        $region48: #{_lambda_.1} parent=31 // pred_fallthru
          _
      $region32: #{_lambda_.1} parent=5 // pred_fallthru
        _
      %p298 = scmp.le.s32.totalorder 1, %s15
      %p299 = scmp.lt.s32.totalorder %s15, 3
      %p300 = pnand %p298, %p299
      %p301 = pneg %p300
      // Predicated region
      $region49: #{_lambda_.1} parent=5 // pred_check
        _
      $region50: #{_lambda_.1} parent=5 // pred_check_branch
        %303 = sbr.rel (%p300) target = $region52
      $region51: #{_lambda_.1} parent=5 // pred_region
        %s304 = ssub.s32 %s15, 1
        // Predicated region
        $region53: #{_lambda_.1} parent=51 // pred_check
          %p305 = pneg %p36
        $region54: #{_lambda_.1} parent=51 // pred_check_branch
          %307 = sbr.rel (%p305) target = $region56
        $region55: #{_lambda_.1} parent=51 // pred_region
          %308 = dma.done [#allocation3], 32
        $region56: #{_lambda_.1} parent=51 // pred_fallthru
          _
        %309 = sfence
        %p310 = pneg %p36
        %p311 = pneg %p33
        %p312 = scmp.lt.s32.totalorder %s20, 1
        %s313 = scalar_select %p312, %s20, 1
        %s314 = smul.addr %s313, 2
        %s315 = scalar_lea.vmem %s1, %s314
        %p316 = pneg %p62
        %p317 = pneg %p59
        %p318 = pneg %p83
        %p319 = pneg %p80
        %p320 = scmp.lt.s32.totalorder %s20, 1
        %s321 = scalar_select %p320, %s20, 1
        %s322 = smul.addr %s321, 2
        %s323 = scalar_lea.vmem %s3, %s322
        %p324 = pneg %p109
        %p325 = pneg %p106
        %p326 = scmp.lt.s32.totalorder %s20, 1
        %s327 = scalar_select %p326, %s20, 1
        %s328 = smul.addr %s327, 2
        %s329 = smul.addr %s328, 4
        %s330 = scalar_lea.vmem %s4, %s329
        %p331 = pneg %p135
        %p332 = pneg %p132
        %p333 = pneg %p156
        %p334 = pneg %p153
        %p335 = scmp.lt.s32.totalorder %s20, 1
        %s336 = scalar_select %p335, %s20, 1
        %s337 = smul.addr %s336, 4
        %s338 = smul.addr %s337, 8
        %s339 = scalar_lea.vmem %s6, %s338
        %p340 = pneg %p182
        %p341 = pneg %p179
        %p342 = pneg %p203
        %p343 = pneg %p200
        %p344 = pneg %p229
        %p345 = pneg %p226
        %p346 = scmp.lt.s32.totalorder %s20, 1
        %s347 = scalar_select %p346, %s20, 1
        %s348 = smul.addr %s347, 2
        %s349 = smul.addr %s348, 4
        %s350 = scalar_lea.vmem %s8, %s349
        %p351 = scmp.lt.s32.totalorder %s20, 1
        %s352 = scalar_select %p351, %s20, 1
        %s353 = smul.addr %s352, 2
        %s354 = scalar_lea.vmem %s1, %s353
        %p355 = scmp.lt.s32.totalorder %s20, 1
        %s356 = scalar_select %p355, %s20, 1
        %s357 = smul.addr %s356, 2
        %s358 = scalar_lea.vmem %s3, %s357
        %p359 = scmp.lt.s32.totalorder %s20, 1
        %s360 = scalar_select %p359, %s20, 1
        %s361 = smul.addr %s360, 2
        %s362 = smul.addr %s361, 4
        %s363 = scalar_lea.vmem %s4, %s362
        %p364 = scmp.lt.s32.totalorder %s20, 1
        %s365 = scalar_select %p364, %s20, 1
        %s366 = smul.addr %s365, 4
        %s367 = smul.addr %s366, 8
        %s368 = scalar_lea.vmem %s6, %s367
        %p369 = scmp.lt.s32.totalorder %s20, 1
        %s370 = scalar_select %p369, %s20, 1
        %s371 = smul.addr %s370, 2
        %s372 = smul.addr %s371, 4
        %s373 = scalar_lea.vmem %s8, %s372
        %v374 = vld [vmem:[%s354] sm:$0x3]
        %v375 = vld [vmem:[%s2] sm:$0xf]
        %v376 = vld [vmem:[%s358] sm:$0x3]
        %v377 = vld [vmem:[%s363] sm:$0x77]
        %v378 = vld [vmem:[%s5] sm:$0xff]
        %v379 = vld [vmem:[%s368] sm:$0xff]
        %v380 = vld [vmem:[%s368 + $0x8] sm:$0xff]
        %v381 = vld [vmem:[%s368 + $0x10] sm:$0xff]
        %v382 = vld [vmem:[%s368 + $0x18] sm:$0xff]
        %v383 = vld [vmem:[%s7] sm:$0x7]
        %v384 = vand.u32 2147483647, %v374
        %vm385 = vcmp.eq.f32.partialorder %v384, inf
        %vm386 = vmxor %vm385, 1
        %v387 = vsel %vm386, 1, 0
        %v388 = vcvt.s32.f32 %v387
        %v389 = vsel %vm385, 0.0, %v374
        %v392 = vunpack.c.l.s4 857870592
        %v393 = vunpack.c.0.s8 %v392
        %v394 = vlaneseq
        %v395 = vshrl.u32 %v394, 7
        %v396 = vsub.s32 %v393, %v395
        %v397 = vrot.slane %v389, %v396
        %v399 = vmul.f32 %v375, %v397
        %s400 = smul.u32 %s20, 128
        %s401 = sld [smem:[#allocation2 + %s400]]
        %s402 = sadd.s32 %s400, 1
        %s403 = sld [smem:[#allocation2 + %s402]]
        %s404 = sadd.s32 %s400, 2
        %s405 = sld [smem:[#allocation2 + %s404]]
        %s406 = sadd.s32 %s400, 3
        %s407 = sld [smem:[#allocation2 + %s406]]
        %v408 = vstv %s401
        %v409 = vmul.f32 %v408, %v399
        %v410 = vstv %s403
        %v411 = vmul.f32 %v410, %v399
        %v413 = vrot.slane %v411, 7
        %v414 = vrot.slane %v413, 2
        %v416 = vadd.f32 %v409, %v414
        %v417 = vstv %s405
        %v418 = vmul.f32 %v417, %v389
        %v421 = vunpack.c.l.s4 857870592
        %v422 = vunpack.c.0.s8 %v421
        %v423 = vlaneseq
        %v424 = vshrl.u32 %v423, 7
        %v425 = vsub.s32 %v422, %v424
        %v426 = vrot.slane %v418, %v425
        %v428 = vadd.f32 %v416, %v426
        %v429 = vstv %s407
        %v430 = vadd.f32 %v428, %v429
        %s431 = sadd.s32 %s400, 4
        %s432 = sld [smem:[#allocation2 + %s431]]
        %s433 = sadd.s32 %s400, 5
        %s434 = sld [smem:[#allocation2 + %s433]]
        %s435 = sadd.s32 %s400, 6
        %s436 = sld [smem:[#allocation2 + %s435]]
        %s437 = sadd.s32 %s400, 7
        %s438 = sld [smem:[#allocation2 + %s437]]
        %v439 = vstv %s432
        %v440 = vmul.f32 %v439, %v399
        %v441 = vstv %s434
        %v442 = vmul.f32 %v441, %v399
        %v444 = vrot.slane %v442, 7
        %v445 = vrot.slane %v444, 2
        %v447 = vadd.f32 %v440, %v445
        %v448 = vstv %s436
        %v449 = vmul.f32 %v448, %v389
        %v452 = vunpack.c.l.s4 857870592
        %v453 = vunpack.c.0.s8 %v452
        %v454 = vlaneseq
        %v455 = vshrl.u32 %v454, 7
        %v456 = vsub.s32 %v453, %v455
        %v457 = vrot.slane %v449, %v456
        %v459 = vadd.f32 %v447, %v457
        %v460 = vstv %s438
        %v461 = vadd.f32 %v459, %v460
        %s462 = sadd.s32 %s400, 8
        %s463 = sld [smem:[#allocation2 + %s462]]
        %s464 = sadd.s32 %s400, 9
        %s465 = sld [smem:[#allocation2 + %s464]]
        %s466 = sadd.s32 %s400, 10
        %s467 = sld [smem:[#allocation2 + %s466]]
        %s468 = sadd.s32 %s400, 11
        %s469 = sld [smem:[#allocation2 + %s468]]
        %v470 = vstv %s463
        %v471 = vmul.f32 %v470, %v399
        %v472 = vstv %s465
        %v473 = vmul.f32 %v472, %v399
        %v475 = vrot.slane %v473, 7
        %v476 = vrot.slane %v475, 2
        %v478 = vadd.f32 %v471, %v476
        %v479 = vstv %s467
        %v480 = vmul.f32 %v479, %v389
        %v483 = vunpack.c.l.s4 857870592
        %v484 = vunpack.c.0.s8 %v483
        %v485 = vlaneseq
        %v486 = vshrl.u32 %v485, 7
        %v487 = vsub.s32 %v484, %v486
        %v488 = vrot.slane %v480, %v487
        %v490 = vadd.f32 %v478, %v488
        %v491 = vstv %s469
        %v492 = vadd.f32 %v490, %v491
        %s493 = sadd.s32 %s400, 12
        %s494 = sld [smem:[#allocation2 + %s493]]
        %s495 = sadd.s32 %s400, 13
        %s496 = sld [smem:[#allocation2 + %s495]]
        %s497 = sadd.s32 %s400, 14
        %s498 = sld [smem:[#allocation2 + %s497]]
        %s499 = sadd.s32 %s400, 15
        %s500 = sld [smem:[#allocation2 + %s499]]
        %v501 = vstv %s494
        %v502 = vmul.f32 %v501, %v399
        %v503 = vstv %s496
        %v504 = vmul.f32 %v503, %v399
        %v506 = vrot.slane %v504, 7
        %v507 = vrot.slane %v506, 2
        %v509 = vadd.f32 %v502, %v507
        %v510 = vstv %s498
        %v511 = vmul.f32 %v510, %v389
        %v514 = vunpack.c.l.s4 857870592
        %v515 = vunpack.c.0.s8 %v514
        %v516 = vlaneseq
        %v517 = vshrl.u32 %v516, 7
        %v518 = vsub.s32 %v515, %v517
        %v519 = vrot.slane %v511, %v518
        %v521 = vadd.f32 %v509, %v519
        %v522 = vstv %s500
        %v523 = vadd.f32 %v521, %v522
        %s524 = sadd.s32 %s400, 16
        %s525 = sld [smem:[#allocation2 + %s524]]
        %s526 = sadd.s32 %s400, 17
        %s527 = sld [smem:[#allocation2 + %s526]]
        %s528 = sadd.s32 %s400, 18
        %s529 = sld [smem:[#allocation2 + %s528]]
        %s530 = sadd.s32 %s400, 19
        %s531 = sld [smem:[#allocation2 + %s530]]
        %v532 = vstv %s525
        %v533 = vmul.f32 %v532, %v399
        %v534 = vstv %s527
        %v535 = vmul.f32 %v534, %v399
        %v537 = vrot.slane %v535, 7
        %v538 = vrot.slane %v537, 2
        %v540 = vadd.f32 %v533, %v538
        %v541 = vstv %s529
        %v542 = vmul.f32 %v541, %v389
        %v545 = vunpack.c.l.s4 857870592
        %v546 = vunpack.c.0.s8 %v545
        %v547 = vlaneseq
        %v548 = vshrl.u32 %v547, 7
        %v549 = vsub.s32 %v546, %v548
        %v550 = vrot.slane %v542, %v549
        %v552 = vadd.f32 %v540, %v550
        %v553 = vstv %s531
        %v554 = vadd.f32 %v552, %v553
        %s555 = sadd.s32 %s400, 20
        %s556 = sld [smem:[#allocation2 + %s555]]
        %s557 = sadd.s32 %s400, 21
        %s558 = sld [smem:[#allocation2 + %s557]]
        %s559 = sadd.s32 %s400, 22
        %s560 = sld [smem:[#allocation2 + %s559]]
        %s561 = sadd.s32 %s400, 23
        %s562 = sld [smem:[#allocation2 + %s561]]
        %v563 = vstv %s556
        %v564 = vmul.f32 %v563, %v399
        %v565 = vstv %s558
        %v566 = vmul.f32 %v565, %v399
        %v568 = vrot.slane %v566, 7
        %v569 = vrot.slane %v568, 2
        %v571 = vadd.f32 %v564, %v569
        %v572 = vstv %s560
        %v573 = vmul.f32 %v572, %v389
        %v576 = vunpack.c.l.s4 857870592
        %v577 = vunpack.c.0.s8 %v576
        %v578 = vlaneseq
        %v579 = vshrl.u32 %v578, 7
        %v580 = vsub.s32 %v577, %v579
        %v581 = vrot.slane %v573, %v580
        %v583 = vadd.f32 %v571, %v581
        %v584 = vstv %s562
        %v585 = vadd.f32 %v583, %v584
        %v586 = vmul.f32 %v585, 0.008928572
        %v587 = vand.u32 2147483647, %v586
        %vm588 = vcmp.lt.f32.partialorder %v587, 1e-08
        %v589 = vsel %vm588, 1e-08, %v586
        %v590 = vrcp.pop %v589
        %v591 = vmul.f32 1.0, %v590
        %v592 = vmul.f32 %v554, %v591
        %v593 = vround.ne.pseudo %v592
        %v594 = vsub.f32 16.0, %v593
        %v595 = vmax.f32 %v594, 0.0
        %v596 = vmin.f32 %v595, 15.0
        %v597 = vmul.f32 %v523, %v591
        %v598 = vround.ne.pseudo %v597
        %v599 = vmax.f32 %v598, 0.0
        %v600 = vmin.f32 %v599, 15.0
        %v601 = vmul.f32 %v596, 16.0
        %v602 = vadd.f32 %v601, %v600
        %v603 = vcvt.f32.s32.to.zero.pseudo %v602
        %v604 = vlaneseq
        %v605 = vshrl.u32 %v604, 7
        %v606 = vadd.s32 %v605, 8
        %v607 = vadd.s32 %v605, 16
        %v608 = vadd.s32 %v605, 24
        %v609 = vadd.s32 %v605, 32
        %v610 = vadd.s32 %v605, 40
        %v611 = vadd.s32 %v605, 48
        %v612 = vadd.s32 %v605, 56
        %v613 = vadd.s32 %v605, 64
        %v614 = vadd.s32 %v605, 72
        %v615 = vadd.s32 %v605, 80
        %v616 = vadd.s32 %v605, 88
        %v617 = vadd.s32 %v605, 96
        %v618 = vadd.s32 %v605, 104
        %v619 = vadd.s32 %v605, 112
        %v620 = vadd.s32 %v605, 120
        %v621 = vadd.s32 %v605, 128
        %v622 = vadd.s32 %v605, 136
        %v623 = vadd.s32 %v605, 144
        %v624 = vadd.s32 %v605, 152
        %v625 = vadd.s32 %v605, 160
        %v626 = vadd.s32 %v605, 168
        %v627 = vadd.s32 %v605, 176
        %v628 = vadd.s32 %v605, 184
        %v629 = vadd.s32 %v605, 192
        %v630 = vadd.s32 %v605, 200
        %v631 = vadd.s32 %v605, 208
        %v632 = vadd.s32 %v605, 216
        %v633 = vadd.s32 %v605, 224
        %v634 = vadd.s32 %v605, 232
        %v635 = vadd.s32 %v605, 240
        %v636 = vadd.s32 %v605, 248
        %v637 = vlaneseq
        %v638 = vshrl.u32 %v637, 7
        %v639 = vsub.s32 0, %v638
        %v640 = vrot.slane %v603, %v639
        %v641 = vlaneseq
        %v642 = vshrl.u32 %v641, 7
        %v643 = vsub.s32 2, %v642
        %v644 = vrot.slane %v603, %v643
        %v645 = vlaneseq
        %v646 = vshrl.u32 %v645, 7
        %v647 = vsub.s32 0, %v646
        %v648 = vrot.slane %v640, %v647
        %v649 = vlaneseq
        %v650 = vshrl.u32 %v649, 7
        %v651 = vsub.s32 0, %v650
        %v652 = vrot.slane %v644, %v651
        %vm653 = vcmp.eq.s32.totalorder %v605, %v648
        %vm654 = vcmp.eq.s32.totalorder %v605, %v652
        %vm655 = vcmp.eq.s32.totalorder %v606, %v648
        %vm656 = vcmp.eq.s32.totalorder %v606, %v652
        %vm657 = vcmp.eq.s32.totalorder %v607, %v648
        %vm658 = vcmp.eq.s32.totalorder %v607, %v652
        %vm659 = vcmp.eq.s32.totalorder %v608, %v648
        %vm660 = vcmp.eq.s32.totalorder %v608, %v652
        %vm661 = vcmp.eq.s32.totalorder %v609, %v648
        %vm662 = vcmp.eq.s32.totalorder %v609, %v652
        %vm663 = vcmp.eq.s32.totalorder %v610, %v648
        %vm664 = vcmp.eq.s32.totalorder %v610, %v652
        %vm665 = vcmp.eq.s32.totalorder %v611, %v648
        %vm666 = vcmp.eq.s32.totalorder %v611, %v652
        %vm667 = vcmp.eq.s32.totalorder %v612, %v648
        %vm668 = vcmp.eq.s32.totalorder %v612, %v652
        %vm669 = vcmp.eq.s32.totalorder %v613, %v648
        %vm670 = vcmp.eq.s32.totalorder %v613, %v652
        %vm671 = vcmp.eq.s32.totalorder %v614, %v648
        %vm672 = vcmp.eq.s32.totalorder %v614, %v652
        %vm673 = vcmp.eq.s32.totalorder %v615, %v648
        %vm674 = vcmp.eq.s32.totalorder %v615, %v652
        %vm675 = vcmp.eq.s32.totalorder %v616, %v648
        %vm676 = vcmp.eq.s32.totalorder %v616, %v652
        %vm677 = vcmp.eq.s32.totalorder %v617, %v648
        %vm678 = vcmp.eq.s32.totalorder %v617, %v652
        %vm679 = vcmp.eq.s32.totalorder %v618, %v648
        %vm680 = vcmp.eq.s32.totalorder %v618, %v652
        %vm681 = vcmp.eq.s32.totalorder %v619, %v648
        %vm682 = vcmp.eq.s32.totalorder %v619, %v652
        %vm683 = vcmp.eq.s32.totalorder %v620, %v648
        %vm684 = vcmp.eq.s32.totalorder %v620, %v652
        %vm685 = vcmp.eq.s32.totalorder %v621, %v648
        %vm686 = vcmp.eq.s32.totalorder %v621, %v652
        %vm687 = vcmp.eq.s32.totalorder %v622, %v648
        %vm688 = vcmp.eq.s32.totalorder %v622, %v652
        %vm689 = vcmp.eq.s32.totalorder %v623, %v648
        %vm690 = vcmp.eq.s32.totalorder %v623, %v652
        %vm691 = vcmp.eq.s32.totalorder %v624, %v648
        %vm692 = vcmp.eq.s32.totalorder %v624, %v652
        %vm693 = vcmp.eq.s32.totalorder %v625, %v648
        %vm694 = vcmp.eq.s32.totalorder %v625, %v652
        %vm695 = vcmp.eq.s32.totalorder %v626, %v648
        %vm696 = vcmp.eq.s32.totalorder %v626, %v652
        %vm697 = vcmp.eq.s32.totalorder %v627, %v648
        %vm698 = vcmp.eq.s32.totalorder %v627, %v652
        %vm699 = vcmp.eq.s32.totalorder %v628, %v648
        %vm700 = vcmp.eq.s32.totalorder %v628, %v652
        %vm701 = vcmp.eq.s32.totalorder %v629, %v648
        %vm702 = vcmp.eq.s32.totalorder %v629, %v652
        %vm703 = vcmp.eq.s32.totalorder %v630, %v648
        %vm704 = vcmp.eq.s32.totalorder %v630, %v652
        %vm705 = vcmp.eq.s32.totalorder %v631, %v648
        %vm706 = vcmp.eq.s32.totalorder %v631, %v652
        %vm707 = vcmp.eq.s32.totalorder %v632, %v648
        %vm708 = vcmp.eq.s32.totalorder %v632, %v652
        %vm709 = vcmp.eq.s32.totalorder %v633, %v648
        %vm710 = vcmp.eq.s32.totalorder %v633, %v652
        %vm711 = vcmp.eq.s32.totalorder %v634, %v648
        %vm712 = vcmp.eq.s32.totalorder %v634, %v652
        %vm713 = vcmp.eq.s32.totalorder %v635, %v648
        %vm714 = vcmp.eq.s32.totalorder %v635, %v652
        %vm715 = vcmp.eq.s32.totalorder %v636, %v648
        %vm716 = vcmp.eq.s32.totalorder %v636, %v652
        %v717 = vsel %vm653, 1, 0
        %v718 = vsel %vm654, 1, 0
        %v719 = vsel %vm655, 1, 0
        %v720 = vsel %vm656, 1, 0
        %v721 = vsel %vm657, 1, 0
        %v722 = vsel %vm658, 1, 0
        %v723 = vsel %vm659, 1, 0
        %v724 = vsel %vm660, 1, 0
        %v725 = vsel %vm661, 1, 0
        %v726 = vsel %vm662, 1, 0
        %v727 = vsel %vm663, 1, 0
        %v728 = vsel %vm664, 1, 0
        %v729 = vsel %vm665, 1, 0
        %v730 = vsel %vm666, 1, 0
        %v731 = vsel %vm667, 1, 0
        %v732 = vsel %vm668, 1, 0
        %v733 = vsel %vm669, 1, 0
        %v734 = vsel %vm670, 1, 0
        %v735 = vsel %vm671, 1, 0
        %v736 = vsel %vm672, 1, 0
        %v737 = vsel %vm673, 1, 0
        %v738 = vsel %vm674, 1, 0
        %v739 = vsel %vm675, 1, 0
        %v740 = vsel %vm676, 1, 0
        %v741 = vsel %vm677, 1, 0
        %v742 = vsel %vm678, 1, 0
        %v743 = vsel %vm679, 1, 0
        %v744 = vsel %vm680, 1, 0
        %v745 = vsel %vm681, 1, 0
        %v746 = vsel %vm682, 1, 0
        %v747 = vsel %vm683, 1, 0
        %v748 = vsel %vm684, 1, 0
        %v749 = vsel %vm685, 1, 0
        %v750 = vsel %vm686, 1, 0
        %v751 = vsel %vm687, 1, 0
        %v752 = vsel %vm688, 1, 0
        %v753 = vsel %vm689, 1, 0
        %v754 = vsel %vm690, 1, 0
        %v755 = vsel %vm691, 1, 0
        %v756 = vsel %vm692, 1, 0
        %v757 = vsel %vm693, 1, 0
        %v758 = vsel %vm694, 1, 0
        %v759 = vsel %vm695, 1, 0
        %v760 = vsel %vm696, 1, 0
        %v761 = vsel %vm697, 1, 0
        %v762 = vsel %vm698, 1, 0
        %v763 = vsel %vm699, 1, 0
        %v764 = vsel %vm700, 1, 0
        %v765 = vsel %vm701, 1, 0
        %v766 = vsel %vm702, 1, 0
        %v767 = vsel %vm703, 1, 0
        %v768 = vsel %vm704, 1, 0
        %v769 = vsel %vm705, 1, 0
        %v770 = vsel %vm706, 1, 0
        %v771 = vsel %vm707, 1, 0
        %v772 = vsel %vm708, 1, 0
        %v773 = vsel %vm709, 1, 0
        %v774 = vsel %vm710, 1, 0
        %v775 = vsel %vm711, 1, 0
        %v776 = vsel %vm712, 1, 0
        %v777 = vsel %vm713, 1, 0
        %v778 = vsel %vm714, 1, 0
        %v779 = vsel %vm715, 1, 0
        %v780 = vsel %vm716, 1, 0
        %v781 = vcvt.s32.f32 %v717
        %v782 = vcvt.s32.f32 %v718
        %v783 = vcvt.s32.f32 %v719
        %v784 = vcvt.s32.f32 %v720
        %v785 = vcvt.s32.f32 %v721
        %v786 = vcvt.s32.f32 %v722
        %v787 = vcvt.s32.f32 %v723
        %v788 = vcvt.s32.f32 %v724
        %v789 = vcvt.s32.f32 %v725
        %v790 = vcvt.s32.f32 %v726
        %v791 = vcvt.s32.f32 %v727
        %v792 = vcvt.s32.f32 %v728
        %v793 = vcvt.s32.f32 %v729
        %v794 = vcvt.s32.f32 %v730
        %v795 = vcvt.s32.f32 %v731
        %v796 = vcvt.s32.f32 %v732
        %v797 = vcvt.s32.f32 %v733
        %v798 = vcvt.s32.f32 %v734
        %v799 = vcvt.s32.f32 %v735
        %v800 = vcvt.s32.f32 %v736
        %v801 = vcvt.s32.f32 %v737
        %v802 = vcvt.s32.f32 %v738
        %v803 = vcvt.s32.f32 %v739
        %v804 = vcvt.s32.f32 %v740
        %v805 = vcvt.s32.f32 %v741
        %v806 = vcvt.s32.f32 %v742
        %v807 = vcvt.s32.f32 %v743
        %v808 = vcvt.s32.f32 %v744
        %v809 = vcvt.s32.f32 %v745
        %v810 = vcvt.s32.f32 %v746
        %v811 = vcvt.s32.f32 %v747
        %v812 = vcvt.s32.f32 %v748
        %v813 = vcvt.s32.f32 %v749
        %v814 = vcvt.s32.f32 %v750
        %v815 = vcvt.s32.f32 %v751
        %v816 = vcvt.s32.f32 %v752
        %v817 = vcvt.s32.f32 %v753
        %v818 = vcvt.s32.f32 %v754
        %v819 = vcvt.s32.f32 %v755
        %v820 = vcvt.s32.f32 %v756
        %v821 = vcvt.s32.f32 %v757
        %v822 = vcvt.s32.f32 %v758
        %v823 = vcvt.s32.f32 %v759
        %v824 = vcvt.s32.f32 %v760
        %v825 = vcvt.s32.f32 %v761
        %v826 = vcvt.s32.f32 %v762
        %v827 = vcvt.s32.f32 %v763
        %v828 = vcvt.s32.f32 %v764
        %v829 = vcvt.s32.f32 %v765
        %v830 = vcvt.s32.f32 %v766
        %v831 = vcvt.s32.f32 %v767
        %v832 = vcvt.s32.f32 %v768
        %v833 = vcvt.s32.f32 %v769
        %v834 = vcvt.s32.f32 %v770
        %v835 = vcvt.s32.f32 %v771
        %v836 = vcvt.s32.f32 %v772
        %v837 = vcvt.s32.f32 %v773
        %v838 = vcvt.s32.f32 %v774
        %v839 = vcvt.s32.f32 %v775
        %v840 = vcvt.s32.f32 %v776
        %v841 = vcvt.s32.f32 %v777
        %v842 = vcvt.s32.f32 %v778
        %v843 = vcvt.s32.f32 %v779
        %v844 = vcvt.s32.f32 %v780
        %v845 = vmul.f32 %v586, 1.6350365
        %v847 = vlaneseq
        %v848 = vshrl.u32 %v847, 7
        %v849 = vsub.s32 0, %v848
        %v850 = vrot.slane %v845, %v849
        %v851 = vlaneseq
        %v852 = vshrl.u32 %v851, 7
        %v853 = vsub.s32 2, %v852
        %v854 = vrot.slane %v845, %v853
        %857 = vmatprep.subr.mxu0 %v812
        %858 = vmatpush1.xpose.msra.mxu0 %v811
        %859 = vmatprep.subr.mxu0 %v810
        %860 = vmatpush1.xpose.msra.mxu0 %v809
        %861 = vmatprep.subr.mxu0 %v808
        %862 = vmatpush1.xpose.msra.mxu0 %v807
        %863 = vmatprep.subr.mxu0 %v806
        %864 = vmatpush1.xpose.msra.mxu0 %v805
        %865 = vmatprep.subr.mxu0 %v804
        %866 = vmatpush1.xpose.msra.mxu0 %v803
        %867 = vmatprep.subr.mxu0 %v802
        %868 = vmatpush1.xpose.msra.mxu0 %v801
        %869 = vmatprep.subr.mxu0 %v800
        %870 = vmatpush1.xpose.msra.mxu0 %v799
        %871 = vmatprep.subr.mxu0 %v798
        %872 = vmatpush1.xpose.msra.mxu0 %v797
        %873 = vmatprep.subr.mxu0 %v796
        %874 = vmatpush1.xpose.msra.mxu0 %v795
        %875 = vmatprep.subr.mxu0 %v794
        %876 = vmatpush1.xpose.msra.mxu0 %v793
        %877 = vmatprep.subr.mxu0 %v792
        %878 = vmatpush1.xpose.msra.mxu0 %v791
        %879 = vmatprep.subr.mxu0 %v790
        %880 = vmatpush1.xpose.msra.mxu0 %v789
        %881 = vmatprep.subr.mxu0 %v788
        %882 = vmatpush1.xpose.msra.mxu0 %v787
        %883 = vmatprep.subr.mxu0 %v786
        %884 = vmatpush1.xpose.msra.mxu0 %v785
        %885 = vmatprep.subr.mxu0 %v784
        %886 = vmatpush1.xpose.msra.mxu0 %v783
        %887 = vmatprep.subr.mxu0 %v782
        %888 = vmatpush1.xpose.msra.mxu0 %v781
        %889 = vmatprep.subr.mxu0 %v844
        %890 = vmatpush2.xpose.msra.mxu0 %v843
        %891 = vmatprep.subr.mxu0 %v842
        %892 = vmatpush2.xpose.msra.mxu0 %v841
        %893 = vmatprep.subr.mxu0 %v840
        %894 = vmatpush2.xpose.msra.mxu0 %v839
        %895 = vmatprep.subr.mxu0 %v838
        %896 = vmatpush2.xpose.msra.mxu0 %v837
        %897 = vmatprep.subr.mxu0 %v836
        %898 = vmatpush2.xpose.msra.mxu0 %v835
        %899 = vmatprep.subr.mxu0 %v834
        %900 = vmatpush2.xpose.msra.mxu0 %v833
        %901 = vmatprep.subr.mxu0 %v832
        %902 = vmatpush2.xpose.msra.mxu0 %v831
        %903 = vmatprep.subr.mxu0 %v830
        %904 = vmatpush2.xpose.msra.mxu0 %v829
        %905 = vmatprep.subr.mxu0 %v828
        %906 = vmatpush2.xpose.msra.mxu0 %v827
        %907 = vmatprep.subr.mxu0 %v826
        %908 = vmatpush2.xpose.msra.mxu0 %v825
        %909 = vmatprep.subr.mxu0 %v824
        %910 = vmatpush2.xpose.msra.mxu0 %v823
        %911 = vmatprep.subr.mxu0 %v822
        %912 = vmatpush2.xpose.msra.mxu0 %v821
        %913 = vmatprep.subr.mxu0 %v820
        %914 = vmatpush2.xpose.msra.mxu0 %v819
        %915 = vmatprep.subr.mxu0 %v818
        %916 = vmatpush2.xpose.msra.mxu0 %v817
        %917 = vmatprep.subr.mxu0 %v816
        %918 = vmatpush2.xpose.msra.mxu0 %v815
        %919 = vmatprep.subr.mxu0 %v814
        %920 = vmatpush2.xpose.msra.mxu0 %v813
        %921 = vmatprep.mubr.f32.mxu0 %v854
        %922 = vmatmul.mubr.f32.gmra.mxu0 %v850
        %v923 = vpop.f32.mrf.mxu0
        %v924 = vadd.f32 0.0, %v923
        %v925 = vpop.f32.mrf.mxu0
        %v926 = vadd.f32 0.0, %v925
        %927 = vdwg.mxu0
        %v929 = vlaneseq
        %v930 = vshrl.u32 %v929, 7
        %v931 = vsub.s32 0, %v930
        %v932 = vrot.slane %v376, %v931
        %v933 = vlaneseq
        %v934 = vshrl.u32 %v933, 7
        %v935 = vsub.s32 1, %v934
        %v936 = vrot.slane %v376, %v935
        %v939 = vsub.f32 %v924, %v932
        %v940 = vsub.f32 %v926, %v936
        %v941 = vand.u32 2147483647, %v939
        %v942 = vand.u32 2147483647, %v940
        %vm943 = vcmp.lt.f32.partialorder %v941, 0.02
        %vm944 = vcmp.lt.f32.partialorder %v942, 0.02
        %vm945 = vcmp.ne.f32.partialorder %v924, 0.0
        %vm946 = vcmp.ne.f32.partialorder %v926, 0.0
        %vm947 = vmand %vm943, %vm945
        %vm948 = vmand %vm944, %vm946
        %v949 = vsel %vm947, 1, 0
        %v950 = vsel %vm948, 1, 0
        %v951 = vcvt.s32.f32 %v949
        %v952 = vcvt.s32.f32 %v950
        %954 = vset.pattern.permute.xlu0 0
        %955 = vperm.xlu0 %954, %v378
        %v956 = vpop.permute.xlu0 %955
        %v959 = vlaneseq
        %v960 = vshrl.u32 %v959, 7
        %v961 = vsub.s32 0, %v960
        %v962 = vrot.slane %v377, %v961
        %v963 = vlaneseq
        %v964 = vshrl.u32 %v963, 7
        %v965 = vsub.s32 4, %v964
        %v966 = vrot.slane %v377, %v965
        %v969 = vlaneseq
        %v970 = vshrl.u32 %v969, 7
        %v971 = vsub.s32 0, %v970
        %v972 = vrot.slane %v962, %v971
        %v973 = vlaneseq
        %v974 = vshrl.u32 %v973, 7
        %v975 = vsub.s32 0, %v974
        %v976 = vrot.slane %v966, %v975
        %v977 = vmul.f32 %v956, %v972
        %v978 = vmul.f32 %v956, %v976
        %979 = vset.pattern.permute.xlu0 1
        %980 = vperm.xlu0 %979, %v378
        %v981 = vpop.permute.xlu0 %980
        %v983 = vlaneseq
        %v984 = vshrl.u32 %v983, 7
        %v985 = vsub.s32 1, %v984
        %v986 = vrot.slane %v377, %v985
        %v987 = vlaneseq
        %v988 = vshrl.u32 %v987, 7
        %v989 = vsub.s32 5, %v988
        %v990 = vrot.slane %v377, %v989
        %v993 = vlaneseq
        %v994 = vshrl.u32 %v993, 7
        %v995 = vsub.s32 1, %v994
        %v996 = vrot.slane %v986, %v995
        %v997 = vlaneseq
        %v998 = vshrl.u32 %v997, 7
        %v999 = vsub.s32 1, %v998
        %v1000 = vrot.slane %v990, %v999
        %v1001 = vmul.f32 %v981, %v996
        %v1002 = vmul.f32 %v981, %v1000
        %v1003 = vadd.f32 %v977, %v1001
        %v1004 = vadd.f32 %v978, %v1002
        %1005 = vset.pattern.permute.xlu0 2
        %1006 = vperm.xlu0 %1005, %v378
        %v1007 = vpop.permute.xlu0 %1006
        %v1009 = vlaneseq
        %v1010 = vshrl.u32 %v1009, 7
        %v1011 = vsub.s32 2, %v1010
        %v1012 = vrot.slane %v377, %v1011
        %v1013 = vlaneseq
        %v1014 = vshrl.u32 %v1013, 7
        %v1015 = vsub.s32 6, %v1014
        %v1016 = vrot.slane %v377, %v1015
        %v1019 = vlaneseq
        %v1020 = vshrl.u32 %v1019, 7
        %v1021 = vsub.s32 2, %v1020
        %v1022 = vrot.slane %v1012, %v1021
        %v1023 = vlaneseq
        %v1024 = vshrl.u32 %v1023, 7
        %v1025 = vsub.s32 2, %v1024
        %v1026 = vrot.slane %v1016, %v1025
        %v1027 = vmul.f32 %v1007, %v1022
        %v1028 = vmul.f32 %v1007, %v1026
        %v1029 = vadd.f32 %v1003, %v1027
        %v1030 = vadd.f32 %v1004, %v1028
        %1031 = vset.pattern.permute.xlu0 3
        %1032 = vperm.xlu0 %1031, %v378
        %v1033 = vpop.permute.xlu0 %1032
        %v1035 = vadd.f32 %v1029, %v1033
        %v1036 = vadd.f32 %v1030, %v1033
        %v1037 = vmax.f32 %v1035, 0.0
        %v1038 = vmax.f32 %v1036, 0.0
        %v1039 = vlaneseq
        %v1040 = vshrl.u32 %v1039, 7
        %v1041 = vsub.s32 0, %v1040
        %v1042 = vrot.slane %v951, %v1041
        %v1043 = vlaneseq
        %v1044 = vshrl.u32 %v1043, 7
        %v1045 = vsub.s32 0, %v1044
        %v1046 = vrot.slane %v952, %v1045
        %v1047 = vmul.f32 %v1037, %v1042
        %v1048 = vmul.f32 %v1038, %v1046
        %1049 = vmatprep.subr.mxu0 %v812
        %1050 = vmatpush1.msra.mxu0 %v811
        %1051 = vmatprep.subr.mxu0 %v810
        %1052 = vmatpush1.msra.mxu0 %v809
        %1053 = vmatprep.subr.mxu0 %v808
        %1054 = vmatpush1.msra.mxu0 %v807
        %1055 = vmatprep.subr.mxu0 %v806
        %1056 = vmatpush1.msra.mxu0 %v805
        %1057 = vmatprep.subr.mxu0 %v804
        %1058 = vmatpush1.msra.mxu0 %v803
        %1059 = vmatprep.subr.mxu0 %v802
        %1060 = vmatpush1.msra.mxu0 %v801
        %1061 = vmatprep.subr.mxu0 %v800
        %1062 = vmatpush1.msra.mxu0 %v799
        %1063 = vmatprep.subr.mxu0 %v798
        %1064 = vmatpush1.msra.mxu0 %v797
        %1065 = vmatprep.subr.mxu0 %v796
        %1066 = vmatpush1.msra.mxu0 %v795
        %1067 = vmatprep.subr.mxu0 %v794
        %1068 = vmatpush1.msra.mxu0 %v793
        %1069 = vmatprep.subr.mxu0 %v792
        %1070 = vmatpush1.msra.mxu0 %v791
        %1071 = vmatprep.subr.mxu0 %v790
        %1072 = vmatpush1.msra.mxu0 %v789
        %1073 = vmatprep.subr.mxu0 %v788
        %1074 = vmatpush1.msra.mxu0 %v787
        %1075 = vmatprep.subr.mxu0 %v786
        %1076 = vmatpush1.msra.mxu0 %v785
        %1077 = vmatprep.subr.mxu0 %v784
        %1078 = vmatpush1.msra.mxu0 %v783
        %1079 = vmatprep.subr.mxu0 %v782
        %1080 = vmatpush1.msra.mxu0 %v781
        %1081 = vmatprep.subr.mxu0 %v844
        %1082 = vmatpush2.msra.mxu0 %v843
        %1083 = vmatprep.subr.mxu0 %v842
        %1084 = vmatpush2.msra.mxu0 %v841
        %1085 = vmatprep.subr.mxu0 %v840
        %1086 = vmatpush2.msra.mxu0 %v839
        %1087 = vmatprep.subr.mxu0 %v838
        %1088 = vmatpush2.msra.mxu0 %v837
        %1089 = vmatprep.subr.mxu0 %v836
        %1090 = vmatpush2.msra.mxu0 %v835
        %1091 = vmatprep.subr.mxu0 %v834
        %1092 = vmatpush2.msra.mxu0 %v833
        %1093 = vmatprep.subr.mxu0 %v832
        %1094 = vmatpush2.msra.mxu0 %v831
        %1095 = vmatprep.subr.mxu0 %v830
        %1096 = vmatpush2.msra.mxu0 %v829
        %1097 = vmatprep.subr.mxu0 %v828
        %1098 = vmatpush2.msra.mxu0 %v827
        %1099 = vmatprep.subr.mxu0 %v826
        %1100 = vmatpush2.msra.mxu0 %v825
        %1101 = vmatprep.subr.mxu0 %v824
        %1102 = vmatpush2.msra.mxu0 %v823
        %1103 = vmatprep.subr.mxu0 %v822
        %1104 = vmatpush2.msra.mxu0 %v821
        %1105 = vmatprep.subr.mxu0 %v820
        %1106 = vmatpush2.msra.mxu0 %v819
        %1107 = vmatprep.subr.mxu0 %v818
        %1108 = vmatpush2.msra.mxu0 %v817
        %1109 = vmatprep.subr.mxu0 %v816
        %1110 = vmatpush2.msra.mxu0 %v815
        %1111 = vmatprep.subr.mxu0 %v814
        %1112 = vmatpush2.msra.mxu0 %v813
        %1113 = vmatprep.mubr.f32.mxu0 %v1048
        %1114 = vmatmul.mubr.f32.gmra.mxu0 %v1047
        %v1115 = vpop.f32.mrf.mxu0
        %v1116 = vadd.f32 0.0, %v1115
        %v1117 = vpop.f32.mrf.mxu0
        %v1118 = vadd.f32 0.0, %v1117
        %1119 = vdwg.mxu0
        %v1121 = vlaneseq
        %v1122 = vshrl.u32 %v1121, 7
        %v1123 = vsub.s32 0, %v1122
        %v1124 = vrot.slane %v430, %v1123
        %v1125 = vlaneseq
        %v1126 = vshrl.u32 %v1125, 7
        %v1127 = vsub.s32 2, %v1126
        %v1128 = vrot.slane %v430, %v1127
        %v1132 = vlaneseq
        %v1133 = vshrl.u32 %v1132, 7
        %v1134 = vsub.s32 0, %v1133
        %v1135 = vrot.slane %v461, %v1134
        %v1136 = vlaneseq
        %v1137 = vshrl.u32 %v1136, 7
        %v1138 = vsub.s32 2, %v1137
        %v1139 = vrot.slane %v461, %v1138
        %v1143 = vlaneseq
        %v1144 = vshrl.u32 %v1143, 7
        %v1145 = vsub.s32 0, %v1144
        %v1146 = vrot.slane %v492, %v1145
        %v1147 = vlaneseq
        %v1148 = vshrl.u32 %v1147, 7
        %v1149 = vsub.s32 2, %v1148
        %v1150 = vrot.slane %v492, %v1149
        %v1155 = vrot.slane %v1116, 5
        %v1156 = vrot.slane %v1118, 5
        %vm1159 = vcmask 1040384
        %v1160 = vsel %vm1159, %v1124, %v1135
        %v1161 = vsel %vm1159, %v1128, %v1139
        %vm1162 = vcmask 1041408
        %v1163 = vsel %vm1162, %v1160, %v1146
        %v1164 = vsel %vm1162, %v1161, %v1150
        %vm1165 = vcmask 1042432
        %v1166 = vsel %vm1165, %v1163, %v1155
        %v1167 = vsel %vm1165, %v1164, %v1156
        %v1168 = vsel %vm1165, %v1155, 1.0
        %v1169 = vsel %vm1165, %v1156, 1.0
        %vm1170 = vcmask 97280
        %v1172 = vsel %vm1170, %v379, 0
        %v1175 = vsel %vm1170, %v380, 0
        %v1178 = vsel %vm1170, %v381, 0
        %v1181 = vsel %vm1170, %v382, 0
        %vm1183 = vcmask 1043456
        %v1185 = vsel %vm1183, %v1168, 0
        %v1188 = vsel %vm1183, %v1169, 0
        %1190 = vmatprep.subr.mxu0 0.0
        %1191 = vmatpush1.msra.mxu0 0.0
        %1192 = vmatprep.subr.mxu0 0.0
        %1193 = vmatpush1.msra.mxu0 0.0
        %1194 = vmatprep.subr.mxu0 0.0
        %1195 = vmatpush1.msra.mxu0 0.0
        %1196 = vmatprep.subr.mxu0 0.0
        %1197 = vmatpush1.msra.mxu0 0.0
        %1198 = vmatprep.subr.mxu0 0.0
        %1199 = vmatpush1.msra.mxu0 0.0
        %1200 = vmatprep.subr.mxu0 0.0
        %1201 = vmatpush1.msra.mxu0 0.0
        %1202 = vmatprep.subr.mxu0 0.0
        %1203 = vmatpush1.msra.mxu0 0.0
        %1204 = vmatprep.subr.mxu0 0.0
        %1205 = vmatpush1.msra.mxu0 0.0
        %1206 = vmatprep.subr.mxu0 0.0
        %1207 = vmatpush1.msra.mxu0 0.0
        %1208 = vmatprep.subr.mxu0 0.0
        %1209 = vmatpush1.msra.mxu0 0.0
        %1210 = vmatprep.subr.mxu0 0.0
        %1211 = vmatpush1.msra.mxu0 0.0
        %1212 = vmatprep.subr.mxu0 0.0
        %1213 = vmatpush1.msra.mxu0 0.0
        %1214 = vmatprep.subr.mxu0 0.0
        %1215 = vmatpush1.msra.mxu0 0.0
        %1216 = vmatprep.subr.mxu0 0.0
        %1217 = vmatpush1.msra.mxu0 0.0
        %1218 = vmatprep.subr.mxu0 %v1188
        %1219 = vmatpush1.msra.mxu0 %v1185
        %1220 = vmatprep.subr.mxu0 %v1167
        %1221 = vmatpush1.msra.mxu0 %v1166
        %1222 = vmatprep.subr.mxu0 0.0
        %1223 = vmatpush2.msra.mxu0 0.0
        %1224 = vmatprep.subr.mxu0 0.0
        %1225 = vmatpush2.msra.mxu0 0.0
        %1226 = vmatprep.subr.mxu0 0.0
        %1227 = vmatpush2.msra.mxu0 0.0
        %1228 = vmatprep.subr.mxu0 0.0
        %1229 = vmatpush2.msra.mxu0 0.0
        %1230 = vmatprep.subr.mxu0 0.0
        %1231 = vmatpush2.msra.mxu0 0.0
        %1232 = vmatprep.subr.mxu0 0.0
        %1233 = vmatpush2.msra.mxu0 0.0
        %1234 = vmatprep.subr.mxu0 0.0
        %1235 = vmatpush2.msra.mxu0 0.0
        %1236 = vmatprep.subr.mxu0 0.0
        %1237 = vmatpush2.msra.mxu0 0.0
        %1238 = vmatprep.subr.mxu0 0.0
        %1239 = vmatpush2.msra.mxu0 0.0
        %1240 = vmatprep.subr.mxu0 0.0
        %1241 = vmatpush2.msra.mxu0 0.0
        %1242 = vmatprep.subr.mxu0 0.0
        %1243 = vmatpush2.msra.mxu0 0.0
        %1244 = vmatprep.subr.mxu0 0.0
        %1245 = vmatpush2.msra.mxu0 0.0
        %1246 = vmatprep.subr.mxu0 0.0
        %1247 = vmatpush2.msra.mxu0 0.0
        %1248 = vmatprep.subr.mxu0 0.0
        %1249 = vmatpush2.msra.mxu0 0.0
        %1250 = vmatprep.subr.mxu0 0.0
        %1251 = vmatpush2.msra.mxu0 0.0
        %1252 = vmatprep.subr.mxu0 0.0
        %1253 = vmatpush2.msra.mxu0 0.0
        %1254 = vmatprep.mubr.f32.mxu0 0.0
        %1255 = vmatmul.mubr.f32.gmra.mxu0 %v1172
        %v1256 = vpop.f32.mrf.mxu0
        %v1257 = vadd.f32 0.0, %v1256
        %v1258 = vpop.f32.mrf.mxu0
        %v1259 = vadd.f32 0.0, %v1258
        %1260 = vmatprep.mubr.f32.mxu0 0.0
        %1261 = vmatmul.mubr.f32.gmra.mxu0 %v1175
        %v1262 = vpop.f32.mrf.mxu0
        %v1263 = vadd.f32 0.0, %v1262
        %v1264 = vpop.f32.mrf.mxu0
        %v1265 = vadd.f32 0.0, %v1264
        %1266 = vmatprep.mubr.f32.mxu0 0.0
        %1267 = vmatmul.mubr.f32.gmra.mxu0 %v1178
        %v1268 = vpop.f32.mrf.mxu0
        %v1269 = vadd.f32 0.0, %v1268
        %v1270 = vpop.f32.mrf.mxu0
        %v1271 = vadd.f32 0.0, %v1270
        %1272 = vmatprep.mubr.f32.mxu0 0.0
        %1273 = vmatmul.mubr.f32.gmra.mxu0 %v1181
        %v1274 = vpop.f32.mrf.mxu0
        %v1275 = vadd.f32 0.0, %v1274
        %v1276 = vpop.f32.mrf.mxu0
        %v1277 = vadd.f32 0.0, %v1276
        %1278 = vdwg.mxu0
        %v1279 = vmax.f32 %v1257, 0.0
        %v1280 = vmax.f32 %v1259, 0.0
        %v1281 = vmax.f32 %v1263, 0.0
        %v1282 = vmax.f32 %v1265, 0.0
        %v1283 = vmax.f32 %v1269, 0.0
        %v1284 = vmax.f32 %v1271, 0.0
        %v1285 = vmax.f32 %v1275, 0.0
        %v1286 = vmax.f32 %v1277, 0.0
        %vm1287 = vcmask 269312
        %v1289 = vsel %vm1287, %v383, 0
        %v1292 = vsel %vm1159, 1.0, 0
        %1294 = vmatprep.subr.mxu0 0.0
        %1295 = vmatpush1.msra.mxu0 0.0
        %1296 = vmatprep.subr.mxu0 0.0
        %1297 = vmatpush1.msra.mxu0 0.0
        %1298 = vmatprep.subr.mxu0 0.0
        %1299 = vmatpush1.msra.mxu0 0.0
        %1300 = vmatprep.subr.mxu0 0.0
        %1301 = vmatpush1.msra.mxu0 0.0
        %1302 = vmatprep.subr.mxu0 0.0
        %1303 = vmatpush1.msra.mxu0 0.0
        %1304 = vmatprep.subr.mxu0 0.0
        %1305 = vmatpush1.msra.mxu0 0.0
        %1306 = vmatprep.subr.mxu0 0.0
        %1307 = vmatpush1.msra.mxu0 0.0
        %1308 = vmatprep.subr.mxu0 0.0
        %1309 = vmatpush1.msra.mxu0 0.0
        %1310 = vmatprep.subr.mxu0 0.0
        %1311 = vmatpush1.msra.mxu0 0.0
        %1312 = vmatprep.subr.mxu0 0.0
        %1313 = vmatpush1.msra.mxu0 0.0
        %1314 = vmatprep.subr.mxu0 0.0
        %1315 = vmatpush1.msra.mxu0 0.0
        %1316 = vmatprep.subr.mxu0 %v1292
        %1317 = vmatpush1.msra.mxu0 %v1292
        %1318 = vmatprep.subr.mxu0 %v1286
        %1319 = vmatpush1.msra.mxu0 %v1285
        %1320 = vmatprep.subr.mxu0 %v1284
        %1321 = vmatpush1.msra.mxu0 %v1283
        %1322 = vmatprep.subr.mxu0 %v1282
        %1323 = vmatpush1.msra.mxu0 %v1281
        %1324 = vmatprep.subr.mxu0 %v1280
        %1325 = vmatpush1.msra.mxu0 %v1279
        %1326 = vmatprep.subr.mxu0 0.0
        %1327 = vmatpush2.msra.mxu0 0.0
        %1328 = vmatprep.subr.mxu0 0.0
        %1329 = vmatpush2.msra.mxu0 0.0
        %1330 = vmatprep.subr.mxu0 0.0
        %1331 = vmatpush2.msra.mxu0 0.0
        %1332 = vmatprep.subr.mxu0 0.0
        %1333 = vmatpush2.msra.mxu0 0.0
        %1334 = vmatprep.subr.mxu0 0.0
        %1335 = vmatpush2.msra.mxu0 0.0
        %1336 = vmatprep.subr.mxu0 0.0
        %1337 = vmatpush2.msra.mxu0 0.0
        %1338 = vmatprep.subr.mxu0 0.0
        %1339 = vmatpush2.msra.mxu0 0.0
        %1340 = vmatprep.subr.mxu0 0.0
        %1341 = vmatpush2.msra.mxu0 0.0
        %1342 = vmatprep.subr.mxu0 0.0
        %1343 = vmatpush2.msra.mxu0 0.0
        %1344 = vmatprep.subr.mxu0 0.0
        %1345 = vmatpush2.msra.mxu0 0.0
        %1346 = vmatprep.subr.mxu0 0.0
        %1347 = vmatpush2.msra.mxu0 0.0
        %1348 = vmatprep.subr.mxu0 0.0
        %1349 = vmatpush2.msra.mxu0 0.0
        %1350 = vmatprep.subr.mxu0 0.0
        %1351 = vmatpush2.msra.mxu0 0.0
        %1352 = vmatprep.subr.mxu0 0.0
        %1353 = vmatpush2.msra.mxu0 0.0
        %1354 = vmatprep.subr.mxu0 0.0
        %1355 = vmatpush2.msra.mxu0 0.0
        %1356 = vmatprep.subr.mxu0 0.0
        %1357 = vmatpush2.msra.mxu0 0.0
        %1358 = vmatprep.mubr.f32.mxu0 0.0
        %1359 = vmatmul.mubr.f32.gmra.mxu0 %v1289
        %v1360 = vpop.f32.mrf.mxu0
        %v1361 = vadd.f32 0.0, %v1360
        %v1362 = vpop.f32.mrf.mxu0
        %v1363 = vadd.f32 0.0, %v1362
        %1364 = vdwg.mxu0
        %v1365 = vxor.u32 %v1361, 2147483648
        %v1366 = vxor.u32 %v1363, 2147483648
        %v1367 = vmul.f32 %v1365, 1.442695
        %v1368 = vpow.pop %v1367
        %v1369 = vmul.f32 %v1366, 1.442695
        %v1370 = vpow.pop %v1369
        %v1371 = vadd.f32 %v1368, 1.0
        %v1372 = vadd.f32 %v1370, 1.0
        %v1373 = vrcp.pop %v1371
        %v1374 = vmul.f32 1.0, %v1373
        %v1375 = vrcp.pop %v1372
        %v1376 = vmul.f32 1.0, %v1375
        %v1378 = vlaneseq
        %v1379 = vshrl.u32 %v1378, 7
        %v1380 = vsub.s32 0, %v1379
        %v1381 = vrot.slane %v388, %v1380
        %v1382 = vlaneseq
        %v1383 = vshrl.u32 %v1382, 7
        %v1384 = vsub.s32 1, %v1383
        %v1385 = vrot.slane %v388, %v1384
        %v1388 = vmul.f32 %v1381, %v1374
        %v1389 = vmul.f32 %v1385, %v1376
        %v1390 = vsub.f32 1.0, %v388
        %v1392 = vlaneseq
        %v1393 = vshrl.u32 %v1392, 7
        %v1394 = vsub.s32 0, %v1393
        %v1395 = vrot.slane %v1390, %v1394
        %v1396 = vlaneseq
        %v1397 = vshrl.u32 %v1396, 7
        %v1398 = vsub.s32 1, %v1397
        %v1399 = vrot.slane %v1390, %v1398
        %v1402 = vadd.f32 %v1388, %v1395
        %v1403 = vadd.f32 %v1389, %v1399
        %v1406 = vcombine.low %v1402, %v1403
        %1408 = vst [vmem:[%s373] sm:$0x77] %v1406
        %p1409 = scmp.lt.s32.totalorder %s20, 1
        %s1410 = scalar_select %p1409, %s20, 1
        %s1411 = smul.addr %s1410, 2
        %s1412 = smul.addr %s1411, 4
        %s1413 = scalar_lea.vmem %s8, %s1412
        // Predicated region
        $region57: #{_lambda_.1} parent=51 // pred_check
          %p1414 = pneg %p226
        $region58: #{_lambda_.1} parent=51 // pred_check_branch
          %1416 = sbr.rel (%p1414) target = $region60
        $region59: #{_lambda_.1} parent=51 // pred_region
          _
        $region60: #{_lambda_.1} parent=51 // pred_fallthru
          _
      $region52: #{_lambda_.1} parent=5 // pred_fallthru
        _
      %p1417 = scmp.le.s32.totalorder 2, %s15
      // Predicated region
      $region61: #{_lambda_.1} parent=5 // pred_check
        %p1418 = pneg %p1417
      $region62: #{_lambda_.1} parent=5 // pred_check_branch
        %1420 = sbr.rel (%p1418) target = $region64
      $region63: #{_lambda_.1} parent=5 // pred_region
        %s1421 = ssub.s32 %s15, 2
        // Predicated region
        $region65: #{_lambda_.1} parent=63 // pred_check
          %p1422 = pneg %p232
        $region66: #{_lambda_.1} parent=63 // pred_check_branch
          %1424 = sbr.rel (%p1422) target = $region68
        $region67: #{_lambda_.1} parent=63 // pred_region
          %p1425 = scmp.lt.s32.totalorder %s21, 1
          %s1426 = scalar_select %p1425, %s21, 1
          %s1427 = smul.addr %s1426, 2
          %s1428 = smul.addr %s1427, 4
          %s1429 = scalar_lea.vmem %s8, %s1428
        $region68: #{_lambda_.1} parent=63 // pred_fallthru
          _
      $region64: #{_lambda_.1} parent=5 // pred_fallthru
        _
    $region6: #{_lambda_.1} parent=1 // loop_footer
      %s19 = sadd.s32 1, %s15
    $region7: #{_lambda_.1} parent=1 // loop_footer_branch
      %14 = sbr.rel target = $region3
    $region8: #{_lambda_.1} parent=1 // loop_exit
      _
    %1430 = vsyncpa [#allocation3], 1
    %s1431 = scalar_lea.sflag [#allocation3], 1
    %1432 = vsyncpa %s1431, 1

</llo_original>
